<compile_context>
chip_gen: v7x
topology: tpu7x:2x2x1
jax: 0.10.0
libtpu: 0.0.40
codegen_flags: <defaults>
</compile_context>

<pallas_src>
import functools

import jax
import jax.numpy as jnp
from jax.experimental import pallas as pl
from jax.experimental.pallas import tpu as pltpu


# ----------------------------- Pallas kernel ------------------------------ #
def _gnn_forecast_kernel(adj_ref, x_ref, *rest, t_future, t_past, num_layers,
                         negative_slope):
    """Fully fused GNN forward (include_t=False branch).

    rest layout (refs):
      [w_i, b_i] * (num_layers-2)              hidden (leaky-relu) convs
      [wt_0 .. wt_{num_layers-2}]              row-split blocks of temp conv W
      b_temp
      w_head, b_head
      out_ref
    """
    out_ref = rest[-1]
    refs = rest[:-1]
    n = adj_ref.shape[0]
    nh = num_layers - 2                       # number of hidden-producing convs
    f32 = jnp.float32

    # ---- Hoist ALL parameter loads + bias broadcasts out of the time loop ---
    pos = 0
    hid_ws, hid_bs = [], []
    for _ in range(nh):
        hid_ws.append(refs[pos][...])
        fo = refs[pos + 1].shape[1]
        hid_bs.append(jnp.broadcast_to(refs[pos + 1][...], (n, fo)))
        pos += 2
    temp_w_blocks = []
    for _ in range(nh + 1):                   # matches [x_init, h1, ..., h_nh]
        temp_w_blocks.append(refs[pos][...])
        pos += 1
    temp_ch = refs[pos].shape[1]
    b_temp = jnp.broadcast_to(refs[pos][...], (n, temp_ch))
    pos += 1
    w_head = refs[pos][...]
    b_head = jnp.broadcast_to(refs[pos + 1][...], (n, refs[pos + 1].shape[1]))

    adj = adj_ref[...]                        # [N, N] normalized adjacency

    def leaky(v):                             # fused leaky_relu, slope in (0,1)
        return jnp.maximum(v, v * negative_slope)

    def gcn(x, w, b_full, act):
        fi, fo = w.shape
        if fi < fo:
            # aggregate-first: (A @ X) @ W  — fewer MACs when F_in < F_out
            out = jnp.dot(jnp.dot(adj, x, preferred_element_type=f32), w,
                          preferred_element_type=f32) + b_full
        else:
            # transform-first: A @ (X @ W)
            out = jnp.dot(adj, jnp.dot(x, w, preferred_element_type=f32),
                          preferred_element_type=f32) + b_full
        return leaky(out) if act else out

    # ---- Hoisted constants for the MXU-based window shift -------------------
    if t_past > 1:
        r = jax.lax.broadcasted_iota(jnp.int32, (t_past, t_past), 0)
        c = jax.lax.broadcasted_iota(jnp.int32, (t_past, t_past), 1)
        shift_mat = (r == c + 1).astype(f32)          # (X @ S)[:, i] = X[:, i+1]
        col = jax.lax.broadcasted_iota(jnp.int32, (n, t_past), 1)

    x_win = x_ref[...].astype(f32)            # [N, T_past]
    preds = []
    for _ in range(t_future):                 # static, small -> unrolled
        outs = [x_win]
        h = x_win
        for li in range(nh):
            h = gcn(h, hid_ws[li], hid_bs[li], act=True)
            outs.append(h)
        # Temp conv (square): split-weight partitioned matmul — no lane concat.
        xw = jnp.dot(outs[0], temp_w_blocks[0], preferred_element_type=f32)
        for o, wb in zip(outs[1:], temp_w_blocks[1:]):
            xw = xw + jnp.dot(o, wb, preferred_element_type=f32)
        h_temp = leaky(jnp.dot(adj, xw, preferred_element_type=f32) + b_temp)
        # Head conv (temp_ch -> 1): transform-first.
        y_t = jnp.dot(adj, jnp.dot(h_temp, w_head, preferred_element_type=f32),
                      preferred_element_type=f32) + b_head
        preds.append(y_t)
        # Autoregressive window shift (include_t=False): matmul shift + select,
        # no minor-axis slice/concat relayout.
        # TODO(synk): include_t=True time-of-day rollover branch not exercised.
        if t_past == 1:
            x_win = y_t
        else:
            shifted = jnp.dot(x_win, shift_mat, preferred_element_type=f32)
            x_win = jnp.where(col == t_past - 1, y_t, shifted)

    # Single [N, T_future] writeback.
    # TODO(synk): for large N, emit lane-dense [T_future, N] instead.
    out_ref[...] = jnp.concatenate(preds, axis=1).astype(out_ref.dtype)


def gnn_forward(adj, x, t_future, params, *, negative_slope=0.01):
    """Mirrors GNN.forward (include_t=False) as one fused Pallas kernel.

    params: list of (W[in,out], b[out]) per GCNConv, ordered as in GNN.__init__.
    """
    n, t_past = x.shape
    num_layers = len(params)
    in_ch, hidden = params[0][0].shape

    flat = []
    for w, b in params[:-2]:                          # hidden convs
        flat.append(jnp.asarray(w, jnp.float32))
        flat.append(jnp.asarray(b, jnp.float32).reshape(1, -1))
    # Pre-split the square "temp" conv weight by row blocks matching
    # [x_init (in_ch), h1 (hidden), ..., h_{L-2} (hidden)].
    w_temp, b_temp = params[-2]
    sizes = [in_ch] + [hidden] * (num_layers - 2)
    off = 0
    for s in sizes:
        flat.append(jnp.asarray(w_temp[off:off + s, :], jnp.float32))
        off += s
    flat.append(jnp.asarray(b_temp, jnp.float32).reshape(1, -1))
    w_head, b_head = params[-1]
    flat.append(jnp.asarray(w_head, jnp.float32))
    flat.append(jnp.asarray(b_head, jnp.float32).reshape(1, -1))

    kernel = functools.partial(_gnn_forecast_kernel, t_future=int(t_future),
                               t_past=int(t_past), num_layers=num_layers,
                               negative_slope=negative_slope)
    vmem = pl.BlockSpec(memory_space=pltpu.MemorySpace.VMEM)
    # TODO(synk): large-N path — grid over row blocks of adj/out with
    # dimension_semantics=("parallel",), bf16 operands (f32 accum), and
    # pltpu.CompilerParams(vmem_limit_bytes=...) as needed.
    return pl.pallas_call(
        kernel,
        out_shape=jax.ShapeDtypeStruct((n, t_future), jnp.float32),
        in_specs=[vmem] * (2 + len(flat)),
        out_specs=vmem,
    )(adj, x, *flat)


# ------------------------------ JAX glue ---------------------------------- #
def build_norm_adj(edge_index, edge_weight, num_nodes):
    """PyG gcn_norm semantics: add_remaining_self_loops (fill=1.0, existing
    self-loop edges kept) followed by symmetric D^-1/2 A D^-1/2."""
    row, col = edge_index[0], edge_index[1]
    is_loop = row == col
    # Dense A[target, source]; duplicate edges (incl. duplicate self-loops)
    # accumulate, matching scatter-add aggregation.
    adj = jnp.zeros((num_nodes, num_nodes), jnp.float32).at[col, row].add(
        edge_weight)
    # Add a unit self-loop only for nodes with no existing self-loop.
    loop_idx = jnp.where(is_loop, row, num_nodes)       # slack slot for non-loops
    has_loop = jnp.zeros((num_nodes + 1,), jnp.float32).at[loop_idx].max(
        1.0)[:num_nodes]
    nodes = jnp.arange(num_nodes)
    adj = adj.at[nodes, nodes].add(1.0 - has_loop)
    deg = adj.sum(axis=1)
    inv_sqrt = jnp.where(deg > 0.0, 1.0 / jnp.sqrt(deg), 0.0)
    return inv_sqrt[:, None] * adj * inv_sqrt[None, :]


def init_gnn_params(key, in_channels, hidden_channels, num_layers=4):
    """Deterministic synthetic weights matching GNN.__init__ shapes."""
    temp_ch = hidden_channels * (num_layers - 2) + in_channels
    dims = [(in_channels, hidden_channels)]
    for _ in range(num_layers - 3):
        dims.append((hidden_channels, hidden_channels))
    dims.append((temp_ch, temp_ch))
    dims.append((temp_ch, 1))
    params = []
    for fi, fo in dims:
        key, sub = jax.random.split(key)
        scale = 1.0 / jnp.sqrt(jnp.float32(fi))
        w = jax.random.normal(sub, (fi, fo), jnp.float32) * scale
        b = jnp.zeros((fo,), jnp.float32)
        params.append((w, b))
    return params


# --------------------------------- main ------------------------------------ #
if __name__ == "__main__":
    key = jax.random.PRNGKey(0)

    num_nodes = 16      # N
    t_past = 8          # in_channels  (data.x: [N, T_past])
    t_future = 4        # data.y: [N, T_future]
    hidden = 32
    num_layers = 4
    num_edges = 48

    k_x, k_y, k_src, k_dst, k_w, k_p = jax.random.split(key, 6)
    x = jax.random.normal(k_x, (num_nodes, t_past), jnp.float32)
    y = jax.random.normal(k_y, (num_nodes, t_future), jnp.float32)  # fixes T_future
    src = jax.random.randint(k_src, (num_edges,), 0, num_nodes, jnp.int32)
    dst = jax.random.randint(k_dst, (num_edges,), 0, num_nodes, jnp.int32)
    edge_index = jnp.stack([src, dst], axis=0)                       # [2, E]
    edge_attr = jax.random.uniform(k_w, (num_edges,), jnp.float32)   # [E]

    adj = build_norm_adj(edge_index, edge_attr, num_nodes)           # [N, N]
    params = init_gnn_params(k_p, t_past, hidden, num_layers)

    y_pred = gnn_forward(adj, x, y.shape[1], params)                 # [N, T_future]
    jax.block_until_ready(y_pred)

    assert y_pred.shape == (num_nodes, t_future)
    assert y_pred.dtype == jnp.float32
    assert bool(jnp.all(jnp.isfinite(y_pred)))
    print("KERNEL_OK")
</pallas_src>

<mosaic_0001>
module attributes {stable_mosaic.version = 11 : i64} {
  func.func @_gnn_forecast_kernel(%arg0: memref<16x16xf32, #tpu.memory_space<vmem>>, %arg1: memref<16x8xf32, #tpu.memory_space<vmem>>, %arg2: memref<8x32xf32, #tpu.memory_space<vmem>>, %arg3: memref<1x32xf32, #tpu.memory_space<vmem>>, %arg4: memref<32x32xf32, #tpu.memory_space<vmem>>, %arg5: memref<1x32xf32, #tpu.memory_space<vmem>>, %arg6: memref<8x72xf32, #tpu.memory_space<vmem>>, %arg7: memref<32x72xf32, #tpu.memory_space<vmem>>, %arg8: memref<32x72xf32, #tpu.memory_space<vmem>>, %arg9: memref<1x72xf32, #tpu.memory_space<vmem>>, %arg10: memref<72x1xf32, #tpu.memory_space<vmem>>, %arg11: memref<1x1xf32, #tpu.memory_space<vmem>>, %arg12: memref<16x4xf32, #tpu.memory_space<vmem>>) attributes {dimension_semantics = [], scalar_prefetch = 0 : i64, scratch_operands = 0 : i64, tpu.core_type = #tpu.core_type<tc>} {
    %c0 = arith.constant 0 : index
    %c0_0 = arith.constant 0 : index
    %0 = vector.load %arg2[%c0, %c0_0] : memref<8x32xf32, #tpu.memory_space<vmem>>, vector<8x32xf32>
    %c0_1 = arith.constant 0 : index
    %c0_2 = arith.constant 0 : index
    %1 = vector.load %arg3[%c0_1, %c0_2] : memref<1x32xf32, #tpu.memory_space<vmem>>, vector<1x32xf32>
    %2 = vector.shape_cast %1 : vector<1x32xf32> to vector<1x32xf32>
    %3 = vector.broadcast %2 : vector<1x32xf32> to vector<16x32xf32>
    %c0_3 = arith.constant 0 : index
    %c0_4 = arith.constant 0 : index
    %4 = vector.load %arg4[%c0_3, %c0_4] : memref<32x32xf32, #tpu.memory_space<vmem>>, vector<32x32xf32>
    %c0_5 = arith.constant 0 : index
    %c0_6 = arith.constant 0 : index
    %5 = vector.load %arg5[%c0_5, %c0_6] : memref<1x32xf32, #tpu.memory_space<vmem>>, vector<1x32xf32>
    %6 = vector.shape_cast %5 : vector<1x32xf32> to vector<1x32xf32>
    %7 = vector.broadcast %6 : vector<1x32xf32> to vector<16x32xf32>
    %c0_7 = arith.constant 0 : index
    %c0_8 = arith.constant 0 : index
    %8 = vector.load %arg6[%c0_7, %c0_8] : memref<8x72xf32, #tpu.memory_space<vmem>>, vector<8x72xf32>
    %c0_9 = arith.constant 0 : index
    %c0_10 = arith.constant 0 : index
    %9 = vector.load %arg7[%c0_9, %c0_10] : memref<32x72xf32, #tpu.memory_space<vmem>>, vector<32x72xf32>
    %c0_11 = arith.constant 0 : index
    %c0_12 = arith.constant 0 : index
    %10 = vector.load %arg8[%c0_11, %c0_12] : memref<32x72xf32, #tpu.memory_space<vmem>>, vector<32x72xf32>
    %c0_13 = arith.constant 0 : index
    %c0_14 = arith.constant 0 : index
    %11 = vector.load %arg9[%c0_13, %c0_14] : memref<1x72xf32, #tpu.memory_space<vmem>>, vector<1x72xf32>
    %12 = vector.shape_cast %11 : vector<1x72xf32> to vector<1x72xf32>
    %13 = vector.broadcast %12 : vector<1x72xf32> to vector<16x72xf32>
    %c0_15 = arith.constant 0 : index
    %c0_16 = arith.constant 0 : index
    %14 = vector.load %arg10[%c0_15, %c0_16] : memref<72x1xf32, #tpu.memory_space<vmem>>, vector<72x1xf32>
    %c0_17 = arith.constant 0 : index
    %c0_18 = arith.constant 0 : index
    %15 = vector.load %arg11[%c0_17, %c0_18] : memref<1x1xf32, #tpu.memory_space<vmem>>, vector<1x1xf32>
    %16 = vector.shape_cast %15 : vector<1x1xf32> to vector<1x1xf32>
    %17 = vector.broadcast %16 : vector<1x1xf32> to vector<16x1xf32>
    %c0_19 = arith.constant 0 : index
    %c0_20 = arith.constant 0 : index
    %18 = vector.load %arg0[%c0_19, %c0_20] : memref<16x16xf32, #tpu.memory_space<vmem>>, vector<16x16xf32>
    %19 = tpu.iota {dimensions = array<i32: 0>} : vector<8x8xi32>
    %20 = tpu.iota {dimensions = array<i32: 1>} : vector<8x8xi32>
    %c1_i32 = arith.constant 1 : i32
    %21 = vector.broadcast %c1_i32 : i32 to vector<8x8xi32>
    %22 = arith.addi %20, %21 : vector<8x8xi32>
    %23 = arith.cmpi eq, %19, %22 : vector<8x8xi32>
    %24 = arith.extui %23 : vector<8x8xi1> to vector<8x8xi32>
    %25 = arith.sitofp %24 : vector<8x8xi32> to vector<8x8xf32>
    %26 = tpu.iota {dimensions = array<i32: 1>} : vector<16x8xi32>
    %c0_21 = arith.constant 0 : index
    %c0_22 = arith.constant 0 : index
    %27 = vector.load %arg1[%c0_21, %c0_22] : memref<16x8xf32, #tpu.memory_space<vmem>>, vector<16x8xf32>
    %cst = arith.constant dense<0.000000e+00> : vector<16x8xf32>
    %28 = tpu.matmul %18, %27, %cst {dimension_numbers = #tpu.dot_dimension_numbers<[1], [0], [0], [1], [0, 0, 1, 1], [], []>} : vector<16x16xf32>, vector<16x8xf32>, vector<16x8xf32> -> vector<16x8xf32>
    %cst_23 = arith.constant dense<0.000000e+00> : vector<16x32xf32>
    %29 = tpu.matmul %28, %0, %cst_23 {dimension_numbers = #tpu.dot_dimension_numbers<[1], [0], [0], [1], [0, 0, 1, 1], [], []>} : vector<16x8xf32>, vector<8x32xf32>, vector<16x32xf32> -> vector<16x32xf32>
    %30 = arith.addf %29, %3 : vector<16x32xf32>
    %cst_24 = arith.constant 0.00999999977 : f32
    %31 = vector.broadcast %cst_24 : f32 to vector<16x32xf32>
    %32 = arith.mulf %30, %31 : vector<16x32xf32>
    %33 = arith.maximumf %30, %32 : vector<16x32xf32>
    %cst_25 = arith.constant dense<0.000000e+00> : vector<16x32xf32>
    %34 = tpu.matmul %33, %4, %cst_25 {dimension_numbers = #tpu.dot_dimension_numbers<[1], [0], [0], [1], [0, 0, 1, 1], [], []>} : vector<16x32xf32>, vector<32x32xf32>, vector<16x32xf32> -> vector<16x32xf32>
    %cst_26 = arith.constant dense<0.000000e+00> : vector<16x32xf32>
    %35 = tpu.matmul %18, %34, %cst_26 {dimension_numbers = #tpu.dot_dimension_numbers<[1], [0], [0], [1], [0, 0, 1, 1], [], []>} : vector<16x16xf32>, vector<16x32xf32>, vector<16x32xf32> -> vector<16x32xf32>
    %36 = arith.addf %35, %7 : vector<16x32xf32>
    %cst_27 = arith.constant 0.00999999977 : f32
    %37 = vector.broadcast %cst_27 : f32 to vector<16x32xf32>
    %38 = arith.mulf %36, %37 : vector<16x32xf32>
    %39 = arith.maximumf %36, %38 : vector<16x32xf32>
    %cst_28 = arith.constant dense<0.000000e+00> : vector<16x72xf32>
    %40 = tpu.matmul %27, %8, %cst_28 {dimension_numbers = #tpu.dot_dimension_numbers<[1], [0], [0], [1], [0, 0, 1, 1], [], []>} : vector<16x8xf32>, vector<8x72xf32>, vector<16x72xf32> -> vector<16x72xf32>
    %cst_29 = arith.constant dense<0.000000e+00> : vector<16x72xf32>
    %41 = tpu.matmul %33, %9, %cst_29 {dimension_numbers = #tpu.dot_dimension_numbers<[1], [0], [0], [1], [0, 0, 1, 1], [], []>} : vector<16x32xf32>, vector<32x72xf32>, vector<16x72xf32> -> vector<16x72xf32>
    %42 = arith.addf %40, %41 : vector<16x72xf32>
    %cst_30 = arith.constant dense<0.000000e+00> : vector<16x72xf32>
    %43 = tpu.matmul %39, %10, %cst_30 {dimension_numbers = #tpu.dot_dimension_numbers<[1], [0], [0], [1], [0, 0, 1, 1], [], []>} : vector<16x32xf32>, vector<32x72xf32>, vector<16x72xf32> -> vector<16x72xf32>
    %44 = arith.addf %42, %43 : vector<16x72xf32>
    %cst_31 = arith.constant dense<0.000000e+00> : vector<16x72xf32>
    %45 = tpu.matmul %18, %44, %cst_31 {dimension_numbers = #tpu.dot_dimension_numbers<[1], [0], [0], [1], [0, 0, 1, 1], [], []>} : vector<16x16xf32>, vector<16x72xf32>, vector<16x72xf32> -> vector<16x72xf32>
    %46 = arith.addf %45, %13 : vector<16x72xf32>
    %cst_32 = arith.constant 0.00999999977 : f32
    %47 = vector.broadcast %cst_32 : f32 to vector<16x72xf32>
    %48 = arith.mulf %46, %47 : vector<16x72xf32>
    %49 = arith.maximumf %46, %48 : vector<16x72xf32>
    %cst_33 = arith.constant dense<0.000000e+00> : vector<16x1xf32>
    %50 = tpu.matmul %49, %14, %cst_33 {dimension_numbers = #tpu.dot_dimension_numbers<[1], [0], [0], [1], [0, 0, 1, 1], [], []>} : vector<16x72xf32>, vector<72x1xf32>, vector<16x1xf32> -> vector<16x1xf32>
    %cst_34 = arith.constant dense<0.000000e+00> : vector<16x1xf32>
    %51 = tpu.matmul %18, %50, %cst_34 {dimension_numbers = #tpu.dot_dimension_numbers<[1], [0], [0], [1], [0, 0, 1, 1], [], []>} : vector<16x16xf32>, vector<16x1xf32>, vector<16x1xf32> -> vector<16x1xf32>
    %52 = arith.addf %51, %17 : vector<16x1xf32>
    %cst_35 = arith.constant dense<0.000000e+00> : vector<16x8xf32>
    %53 = tpu.matmul %27, %25, %cst_35 {dimension_numbers = #tpu.dot_dimension_numbers<[1], [0], [0], [1], [0, 0, 1, 1], [], []>} : vector<16x8xf32>, vector<8x8xf32>, vector<16x8xf32> -> vector<16x8xf32>
    %c7_i32 = arith.constant 7 : i32
    %54 = vector.broadcast %c7_i32 : i32 to vector<16x8xi32>
    %55 = arith.cmpi eq, %26, %54 : vector<16x8xi32>
    %56 = vector.shape_cast %52 : vector<16x1xf32> to vector<16x1xf32>
    %57 = vector.broadcast %56 : vector<16x1xf32> to vector<16x8xf32>
    %58 = arith.select %55, %57, %53 : vector<16x8xi1>, vector<16x8xf32>
    %cst_36 = arith.constant dense<0.000000e+00> : vector<16x8xf32>
    %59 = tpu.matmul %18, %58, %cst_36 {dimension_numbers = #tpu.dot_dimension_numbers<[1], [0], [0], [1], [0, 0, 1, 1], [], []>} : vector<16x16xf32>, vector<16x8xf32>, vector<16x8xf32> -> vector<16x8xf32>
    %cst_37 = arith.constant dense<0.000000e+00> : vector<16x32xf32>
    %60 = tpu.matmul %59, %0, %cst_37 {dimension_numbers = #tpu.dot_dimension_numbers<[1], [0], [0], [1], [0, 0, 1, 1], [], []>} : vector<16x8xf32>, vector<8x32xf32>, vector<16x32xf32> -> vector<16x32xf32>
    %61 = arith.addf %60, %3 : vector<16x32xf32>
    %cst_38 = arith.constant 0.00999999977 : f32
    %62 = vector.broadcast %cst_38 : f32 to vector<16x32xf32>
    %63 = arith.mulf %61, %62 : vector<16x32xf32>
    %64 = arith.maximumf %61, %63 : vector<16x32xf32>
    %cst_39 = arith.constant dense<0.000000e+00> : vector<16x32xf32>
    %65 = tpu.matmul %64, %4, %cst_39 {dimension_numbers = #tpu.dot_dimension_numbers<[1], [0], [0], [1], [0, 0, 1, 1], [], []>} : vector<16x32xf32>, vector<32x32xf32>, vector<16x32xf32> -> vector<16x32xf32>
    %cst_40 = arith.constant dense<0.000000e+00> : vector<16x32xf32>
    %66 = tpu.matmul %18, %65, %cst_40 {dimension_numbers = #tpu.dot_dimension_numbers<[1], [0], [0], [1], [0, 0, 1, 1], [], []>} : vector<16x16xf32>, vector<16x32xf32>, vector<16x32xf32> -> vector<16x32xf32>
    %67 = arith.addf %66, %7 : vector<16x32xf32>
    %cst_41 = arith.constant 0.00999999977 : f32
    %68 = vector.broadcast %cst_41 : f32 to vector<16x32xf32>
    %69 = arith.mulf %67, %68 : vector<16x32xf32>
    %70 = arith.maximumf %67, %69 : vector<16x32xf32>
    %cst_42 = arith.constant dense<0.000000e+00> : vector<16x72xf32>
    %71 = tpu.matmul %58, %8, %cst_42 {dimension_numbers = #tpu.dot_dimension_numbers<[1], [0], [0], [1], [0, 0, 1, 1], [], []>} : vector<16x8xf32>, vector<8x72xf32>, vector<16x72xf32> -> vector<16x72xf32>
    %cst_43 = arith.constant dense<0.000000e+00> : vector<16x72xf32>
    %72 = tpu.matmul %64, %9, %cst_43 {dimension_numbers = #tpu.dot_dimension_numbers<[1], [0], [0], [1], [0, 0, 1, 1], [], []>} : vector<16x32xf32>, vector<32x72xf32>, vector<16x72xf32> -> vector<16x72xf32>
    %73 = arith.addf %71, %72 : vector<16x72xf32>
    %cst_44 = arith.constant dense<0.000000e+00> : vector<16x72xf32>
    %74 = tpu.matmul %70, %10, %cst_44 {dimension_numbers = #tpu.dot_dimension_numbers<[1], [0], [0], [1], [0, 0, 1, 1], [], []>} : vector<16x32xf32>, vector<32x72xf32>, vector<16x72xf32> -> vector<16x72xf32>
    %75 = arith.addf %73, %74 : vector<16x72xf32>
    %cst_45 = arith.constant dense<0.000000e+00> : vector<16x72xf32>
    %76 = tpu.matmul %18, %75, %cst_45 {dimension_numbers = #tpu.dot_dimension_numbers<[1], [0], [0], [1], [0, 0, 1, 1], [], []>} : vector<16x16xf32>, vector<16x72xf32>, vector<16x72xf32> -> vector<16x72xf32>
    %77 = arith.addf %76, %13 : vector<16x72xf32>
    %cst_46 = arith.constant 0.00999999977 : f32
    %78 = vector.broadcast %cst_46 : f32 to vector<16x72xf32>
    %79 = arith.mulf %77, %78 : vector<16x72xf32>
    %80 = arith.maximumf %77, %79 : vector<16x72xf32>
    %cst_47 = arith.constant dense<0.000000e+00> : vector<16x1xf32>
    %81 = tpu.matmul %80, %14, %cst_47 {dimension_numbers = #tpu.dot_dimension_numbers<[1], [0], [0], [1], [0, 0, 1, 1], [], []>} : vector<16x72xf32>, vector<72x1xf32>, vector<16x1xf32> -> vector<16x1xf32>
    %cst_48 = arith.constant dense<0.000000e+00> : vector<16x1xf32>
    %82 = tpu.matmul %18, %81, %cst_48 {dimension_numbers = #tpu.dot_dimension_numbers<[1], [0], [0], [1], [0, 0, 1, 1], [], []>} : vector<16x16xf32>, vector<16x1xf32>, vector<16x1xf32> -> vector<16x1xf32>
    %83 = arith.addf %82, %17 : vector<16x1xf32>
    %cst_49 = arith.constant dense<0.000000e+00> : vector<16x8xf32>
    %84 = tpu.matmul %58, %25, %cst_49 {dimension_numbers = #tpu.dot_dimension_numbers<[1], [0], [0], [1], [0, 0, 1, 1], [], []>} : vector<16x8xf32>, vector<8x8xf32>, vector<16x8xf32> -> vector<16x8xf32>
    %c7_i32_50 = arith.constant 7 : i32
    %85 = vector.broadcast %c7_i32_50 : i32 to vector<16x8xi32>
    %86 = arith.cmpi eq, %26, %85 : vector<16x8xi32>
    %87 = vector.shape_cast %83 : vector<16x1xf32> to vector<16x1xf32>
    %88 = vector.broadcast %87 : vector<16x1xf32> to vector<16x8xf32>
    %89 = arith.select %86, %88, %84 : vector<16x8xi1>, vector<16x8xf32>
    %cst_51 = arith.constant dense<0.000000e+00> : vector<16x8xf32>
    %90 = tpu.matmul %18, %89, %cst_51 {dimension_numbers = #tpu.dot_dimension_numbers<[1], [0], [0], [1], [0, 0, 1, 1], [], []>} : vector<16x16xf32>, vector<16x8xf32>, vector<16x8xf32> -> vector<16x8xf32>
    %cst_52 = arith.constant dense<0.000000e+00> : vector<16x32xf32>
    %91 = tpu.matmul %90, %0, %cst_52 {dimension_numbers = #tpu.dot_dimension_numbers<[1], [0], [0], [1], [0, 0, 1, 1], [], []>} : vector<16x8xf32>, vector<8x32xf32>, vector<16x32xf32> -> vector<16x32xf32>
    %92 = arith.addf %91, %3 : vector<16x32xf32>
    %cst_53 = arith.constant 0.00999999977 : f32
    %93 = vector.broadcast %cst_53 : f32 to vector<16x32xf32>
    %94 = arith.mulf %92, %93 : vector<16x32xf32>
    %95 = arith.maximumf %92, %94 : vector<16x32xf32>
    %cst_54 = arith.constant dense<0.000000e+00> : vector<16x32xf32>
    %96 = tpu.matmul %95, %4, %cst_54 {dimension_numbers = #tpu.dot_dimension_numbers<[1], [0], [0], [1], [0, 0, 1, 1], [], []>} : vector<16x32xf32>, vector<32x32xf32>, vector<16x32xf32> -> vector<16x32xf32>
    %cst_55 = arith.constant dense<0.000000e+00> : vector<16x32xf32>
    %97 = tpu.matmul %18, %96, %cst_55 {dimension_numbers = #tpu.dot_dimension_numbers<[1], [0], [0], [1], [0, 0, 1, 1], [], []>} : vector<16x16xf32>, vector<16x32xf32>, vector<16x32xf32> -> vector<16x32xf32>
    %98 = arith.addf %97, %7 : vector<16x32xf32>
    %cst_56 = arith.constant 0.00999999977 : f32
    %99 = vector.broadcast %cst_56 : f32 to vector<16x32xf32>
    %100 = arith.mulf %98, %99 : vector<16x32xf32>
    %101 = arith.maximumf %98, %100 : vector<16x32xf32>
    %cst_57 = arith.constant dense<0.000000e+00> : vector<16x72xf32>
    %102 = tpu.matmul %89, %8, %cst_57 {dimension_numbers = #tpu.dot_dimension_numbers<[1], [0], [0], [1], [0, 0, 1, 1], [], []>} : vector<16x8xf32>, vector<8x72xf32>, vector<16x72xf32> -> vector<16x72xf32>
    %cst_58 = arith.constant dense<0.000000e+00> : vector<16x72xf32>
    %103 = tpu.matmul %95, %9, %cst_58 {dimension_numbers = #tpu.dot_dimension_numbers<[1], [0], [0], [1], [0, 0, 1, 1], [], []>} : vector<16x32xf32>, vector<32x72xf32>, vector<16x72xf32> -> vector<16x72xf32>
    %104 = arith.addf %102, %103 : vector<16x72xf32>
    %cst_59 = arith.constant dense<0.000000e+00> : vector<16x72xf32>
    %105 = tpu.matmul %101, %10, %cst_59 {dimension_numbers = #tpu.dot_dimension_numbers<[1], [0], [0], [1], [0, 0, 1, 1], [], []>} : vector<16x32xf32>, vector<32x72xf32>, vector<16x72xf32> -> vector<16x72xf32>
    %106 = arith.addf %104, %105 : vector<16x72xf32>
    %cst_60 = arith.constant dense<0.000000e+00> : vector<16x72xf32>
    %107 = tpu.matmul %18, %106, %cst_60 {dimension_numbers = #tpu.dot_dimension_numbers<[1], [0], [0], [1], [0, 0, 1, 1], [], []>} : vector<16x16xf32>, vector<16x72xf32>, vector<16x72xf32> -> vector<16x72xf32>
    %108 = arith.addf %107, %13 : vector<16x72xf32>
    %cst_61 = arith.constant 0.00999999977 : f32
    %109 = vector.broadcast %cst_61 : f32 to vector<16x72xf32>
    %110 = arith.mulf %108, %109 : vector<16x72xf32>
    %111 = arith.maximumf %108, %110 : vector<16x72xf32>
    %cst_62 = arith.constant dense<0.000000e+00> : vector<16x1xf32>
    %112 = tpu.matmul %111, %14, %cst_62 {dimension_numbers = #tpu.dot_dimension_numbers<[1], [0], [0], [1], [0, 0, 1, 1], [], []>} : vector<16x72xf32>, vector<72x1xf32>, vector<16x1xf32> -> vector<16x1xf32>
    %cst_63 = arith.constant dense<0.000000e+00> : vector<16x1xf32>
    %113 = tpu.matmul %18, %112, %cst_63 {dimension_numbers = #tpu.dot_dimension_numbers<[1], [0], [0], [1], [0, 0, 1, 1], [], []>} : vector<16x16xf32>, vector<16x1xf32>, vector<16x1xf32> -> vector<16x1xf32>
    %114 = arith.addf %113, %17 : vector<16x1xf32>
    %cst_64 = arith.constant dense<0.000000e+00> : vector<16x8xf32>
    %115 = tpu.matmul %89, %25, %cst_64 {dimension_numbers = #tpu.dot_dimension_numbers<[1], [0], [0], [1], [0, 0, 1, 1], [], []>} : vector<16x8xf32>, vector<8x8xf32>, vector<16x8xf32> -> vector<16x8xf32>
    %c7_i32_65 = arith.constant 7 : i32
    %116 = vector.broadcast %c7_i32_65 : i32 to vector<16x8xi32>
    %117 = arith.cmpi eq, %26, %116 : vector<16x8xi32>
    %118 = vector.shape_cast %114 : vector<16x1xf32> to vector<16x1xf32>
    %119 = vector.broadcast %118 : vector<16x1xf32> to vector<16x8xf32>
    %120 = arith.select %117, %119, %115 : vector<16x8xi1>, vector<16x8xf32>
    %cst_66 = arith.constant dense<0.000000e+00> : vector<16x8xf32>
    %121 = tpu.matmul %18, %120, %cst_66 {dimension_numbers = #tpu.dot_dimension_numbers<[1], [0], [0], [1], [0, 0, 1, 1], [], []>} : vector<16x16xf32>, vector<16x8xf32>, vector<16x8xf32> -> vector<16x8xf32>
    %cst_67 = arith.constant dense<0.000000e+00> : vector<16x32xf32>
    %122 = tpu.matmul %121, %0, %cst_67 {dimension_numbers = #tpu.dot_dimension_numbers<[1], [0], [0], [1], [0, 0, 1, 1], [], []>} : vector<16x8xf32>, vector<8x32xf32>, vector<16x32xf32> -> vector<16x32xf32>
    %123 = arith.addf %122, %3 : vector<16x32xf32>
    %cst_68 = arith.constant 0.00999999977 : f32
    %124 = vector.broadcast %cst_68 : f32 to vector<16x32xf32>
    %125 = arith.mulf %123, %124 : vector<16x32xf32>
    %126 = arith.maximumf %123, %125 : vector<16x32xf32>
    %cst_69 = arith.constant dense<0.000000e+00> : vector<16x32xf32>
    %127 = tpu.matmul %126, %4, %cst_69 {dimension_numbers = #tpu.dot_dimension_numbers<[1], [0], [0], [1], [0, 0, 1, 1], [], []>} : vector<16x32xf32>, vector<32x32xf32>, vector<16x32xf32> -> vector<16x32xf32>
    %cst_70 = arith.constant dense<0.000000e+00> : vector<16x32xf32>
    %128 = tpu.matmul %18, %127, %cst_70 {dimension_numbers = #tpu.dot_dimension_numbers<[1], [0], [0], [1], [0, 0, 1, 1], [], []>} : vector<16x16xf32>, vector<16x32xf32>, vector<16x32xf32> -> vector<16x32xf32>
    %129 = arith.addf %128, %7 : vector<16x32xf32>
    %cst_71 = arith.constant 0.00999999977 : f32
    %130 = vector.broadcast %cst_71 : f32 to vector<16x32xf32>
    %131 = arith.mulf %129, %130 : vector<16x32xf32>
    %132 = arith.maximumf %129, %131 : vector<16x32xf32>
    %cst_72 = arith.constant dense<0.000000e+00> : vector<16x72xf32>
    %133 = tpu.matmul %120, %8, %cst_72 {dimension_numbers = #tpu.dot_dimension_numbers<[1], [0], [0], [1], [0, 0, 1, 1], [], []>} : vector<16x8xf32>, vector<8x72xf32>, vector<16x72xf32> -> vector<16x72xf32>
    %cst_73 = arith.constant dense<0.000000e+00> : vector<16x72xf32>
    %134 = tpu.matmul %126, %9, %cst_73 {dimension_numbers = #tpu.dot_dimension_numbers<[1], [0], [0], [1], [0, 0, 1, 1], [], []>} : vector<16x32xf32>, vector<32x72xf32>, vector<16x72xf32> -> vector<16x72xf32>
    %135 = arith.addf %133, %134 : vector<16x72xf32>
    %cst_74 = arith.constant dense<0.000000e+00> : vector<16x72xf32>
    %136 = tpu.matmul %132, %10, %cst_74 {dimension_numbers = #tpu.dot_dimension_numbers<[1], [0], [0], [1], [0, 0, 1, 1], [], []>} : vector<16x32xf32>, vector<32x72xf32>, vector<16x72xf32> -> vector<16x72xf32>
    %137 = arith.addf %135, %136 : vector<16x72xf32>
    %cst_75 = arith.constant dense<0.000000e+00> : vector<16x72xf32>
    %138 = tpu.matmul %18, %137, %cst_75 {dimension_numbers = #tpu.dot_dimension_numbers<[1], [0], [0], [1], [0, 0, 1, 1], [], []>} : vector<16x16xf32>, vector<16x72xf32>, vector<16x72xf32> -> vector<16x72xf32>
    %139 = arith.addf %138, %13 : vector<16x72xf32>
    %cst_76 = arith.constant 0.00999999977 : f32
    %140 = vector.broadcast %cst_76 : f32 to vector<16x72xf32>
    %141 = arith.mulf %139, %140 : vector<16x72xf32>
    %142 = arith.maximumf %139, %141 : vector<16x72xf32>
    %cst_77 = arith.constant dense<0.000000e+00> : vector<16x1xf32>
    %143 = tpu.matmul %142, %14, %cst_77 {dimension_numbers = #tpu.dot_dimension_numbers<[1], [0], [0], [1], [0, 0, 1, 1], [], []>} : vector<16x72xf32>, vector<72x1xf32>, vector<16x1xf32> -> vector<16x1xf32>
    %cst_78 = arith.constant dense<0.000000e+00> : vector<16x1xf32>
    %144 = tpu.matmul %18, %143, %cst_78 {dimension_numbers = #tpu.dot_dimension_numbers<[1], [0], [0], [1], [0, 0, 1, 1], [], []>} : vector<16x16xf32>, vector<16x1xf32>, vector<16x1xf32> -> vector<16x1xf32>
    %145 = arith.addf %144, %17 : vector<16x1xf32>
    %146 = tpu.concatenate %52, %83, %114, %145 in 1 : vector<16x1xf32>, vector<16x1xf32>, vector<16x1xf32>, vector<16x1xf32> -> vector<16x4xf32>
    %c0_79 = arith.constant 0 : index
    %c0_80 = arith.constant 0 : index
    %147 = vector.load %arg12[%c0_79, %c0_80] : memref<16x4xf32, #tpu.memory_space<vmem>>, vector<16x4xf32>
    tpu.vector_store %arg12[%c0_79, %c0_80], %146 {strides = array<i32>} : memref<16x4xf32, #tpu.memory_space<vmem>>, vector<16x4xf32>,
    return
  }
}

</mosaic_0001>

<llo_original>
// kernel: tpu_custom_call.1
$region0: #{tpu_custom_call.1}
  #allocation0 [shape = 'u32[]', space=smem, size = 0x4, offset = 0x4, fixed_abs, tag = 'smem constant byte address 0x4 - core index']
  #allocation1 [shape = 'u32[144,128]{1,0:T(1,128)}', space=vmem, size = 0x12000, scoped, tag = 'internal scratch']
  #allocation2 [shape = 'f32[1,1]{1,0:T(1,128)S(1)}', space=vmem, size = 0x200, scoped, tag = 'scoped memory for tpu_custom_call.1']
  %s0 = inlined_call_operand.hbm [shape: f32[16,16], index: 0, kind: input, shape index: {}]
  %s1 = inlined_call_operand.vmem [shape: f32[16,8], index: 1, kind: input, shape index: {}]
  %s2 = inlined_call_operand.vmem [shape: f32[8,32], index: 2, kind: input, shape index: {}]
  %s3 = inlined_call_operand.hbm [shape: f32[1,32], index: 3, kind: input, shape index: {}]
  %s4 = inlined_call_operand.vmem [shape: f32[32,32], index: 4, kind: input, shape index: {}]
  %s5 = inlined_call_operand.vmem [shape: f32[1,32], index: 5, kind: input, shape index: {}]
  %s6 = inlined_call_operand.vmem [shape: f32[8,72], index: 6, kind: input, shape index: {}]
  %s7 = inlined_call_operand.vmem [shape: f32[32,72], index: 7, kind: input, shape index: {}]
  %s8 = inlined_call_operand.vmem [shape: f32[32,72], index: 8, kind: input, shape index: {}]
  %s9 = inlined_call_operand.vmem [shape: f32[1,72], index: 9, kind: input, shape index: {}]
  %s10 = inlined_call_operand.vmem [shape: f32[72,1], index: 10, kind: input, shape index: {}]
  %s11 = inlined_call_operand.<no memory space> [shape: f32[1,1], index: 11, kind: input, shape index: {}]
  %s12 = inlined_call_operand.vmem [shape: f32[16,4], index: 12, kind: output, shape index: {}]
  %s13 = sld [smem:[#allocation0]]
  $region66: #{tpu_custom_call.1} parent=0
    _
  %s15 = ssub.s32 1, %s13
  %s16 = scalar_select 0, %s15, %s13
  %v17 = vstv %s11
  %18 = vst [vmem:[#allocation2] sm:$0x1] %v17
  $region1: #{tpu_custom_call.1} parent=0
    #allocation3 [shape = 'u8[8192]{0}', space=vmem, size = 0x2000, scoped, tag = 'input window, operand 0, single buffered']
    #allocation4 [shape = 's32[1]{0}', space=sflag, size = 0x4, scoped, tag = 'scoped memory for tpu_custom_call.1']
    #allocation5 [shape = 'u8[512]{0}', space=vmem, size = 0x400, scoped, tag = 'input window, operand 3, single buffered']
    #allocation6 [shape = 's32[1]{0}', space=sflag, size = 0x4, scoped, tag = 'scoped memory for tpu_custom_call.1']
    %19 = vsyncpa [#allocation4], 0
    %20 = vsyncpa [#allocation6], 0
    // Predicated region
    $region2: #{tpu_custom_call.1} parent=1 // pred_check
      _
    $region3: #{tpu_custom_call.1} parent=1 // pred_check_branch
      %22 = sbr.rel (0) target = $region5
    $region4: #{tpu_custom_call.1} parent=1 // pred_region
      %s24 = ssub.s32 256, 256
      %25 = vsyncadd [#allocation4], %s24
      %s26 = sshll.u32 [#allocation3], 4
      %s27 = int_to_ptr.vmem [resolvable:$true] %s26
      %32 = dma.hbm_to_vmem [thread:$0]  %s0, 256, %s27, [#allocation4], 128, 128, 8
    $region5: #{tpu_custom_call.1} parent=1 // pred_fallthru
      _
    // Predicated region
    $region6: #{tpu_custom_call.1} parent=1 // pred_check
      _
    $region7: #{tpu_custom_call.1} parent=1 // pred_check_branch
      %34 = sbr.rel (0) target = $region9
    $region8: #{tpu_custom_call.1} parent=1 // pred_region
      _
    $region9: #{tpu_custom_call.1} parent=1 // pred_fallthru
      _
    // Predicated region
    $region10: #{tpu_custom_call.1} parent=1 // pred_check
      _
    $region11: #{tpu_custom_call.1} parent=1 // pred_check_branch
      %36 = sbr.rel (0) target = $region13
    $region12: #{tpu_custom_call.1} parent=1 // pred_region
      _
    $region13: #{tpu_custom_call.1} parent=1 // pred_fallthru
      _
    // Predicated region
    $region14: #{tpu_custom_call.1} parent=1 // pred_check
      _
    $region15: #{tpu_custom_call.1} parent=1 // pred_check_branch
      %38 = sbr.rel (0) target = $region17
    $region16: #{tpu_custom_call.1} parent=1 // pred_region
      %s40 = ssub.s32 16, 16
      %41 = vsyncadd [#allocation6], %s40
      %s43 = sshll.u32 [#allocation5], 4
      %s44 = int_to_ptr.vmem [resolvable:$true] %s43
      %46 = dma.hbm_to_vmem [thread:$0]  %s3, 16, %s44, [#allocation6]
    $region17: #{tpu_custom_call.1} parent=1 // pred_fallthru
      _
    // Predicated region
    $region18: #{tpu_custom_call.1} parent=1 // pred_check
      _
    $region19: #{tpu_custom_call.1} parent=1 // pred_check_branch
      %48 = sbr.rel (0) target = $region21
    $region20: #{tpu_custom_call.1} parent=1 // pred_region
      _
    $region21: #{tpu_custom_call.1} parent=1 // pred_fallthru
      _
    // Predicated region
    $region22: #{tpu_custom_call.1} parent=1 // pred_check
      _
    $region23: #{tpu_custom_call.1} parent=1 // pred_check_branch
      %50 = sbr.rel (0) target = $region25
    $region24: #{tpu_custom_call.1} parent=1 // pred_region
      _
    $region25: #{tpu_custom_call.1} parent=1 // pred_fallthru
      _
    // Predicated region
    $region26: #{tpu_custom_call.1} parent=1 // pred_check
      _
    $region27: #{tpu_custom_call.1} parent=1 // pred_check_branch
      %52 = sbr.rel (0) target = $region29
    $region28: #{tpu_custom_call.1} parent=1 // pred_region
      _
    $region29: #{tpu_custom_call.1} parent=1 // pred_fallthru
      _
    // Predicated region
    $region30: #{tpu_custom_call.1} parent=1 // pred_check
      _
    $region31: #{tpu_custom_call.1} parent=1 // pred_check_branch
      %54 = sbr.rel (0) target = $region33
    $region32: #{tpu_custom_call.1} parent=1 // pred_region
      _
    $region33: #{tpu_custom_call.1} parent=1 // pred_fallthru
      _
    // Predicated region
    $region34: #{tpu_custom_call.1} parent=1 // pred_check
      _
    $region35: #{tpu_custom_call.1} parent=1 // pred_check_branch
      %56 = sbr.rel (0) target = $region37
    $region36: #{tpu_custom_call.1} parent=1 // pred_region
      _
    $region37: #{tpu_custom_call.1} parent=1 // pred_fallthru
      _
    // Predicated region
    $region38: #{tpu_custom_call.1} parent=1 // pred_check
      _
    $region39: #{tpu_custom_call.1} parent=1 // pred_check_branch
      %58 = sbr.rel (0) target = $region41
    $region40: #{tpu_custom_call.1} parent=1 // pred_region
      _
    $region41: #{tpu_custom_call.1} parent=1 // pred_fallthru
      _
    // Predicated region
    $region42: #{tpu_custom_call.1} parent=1 // pred_check
      _
    $region43: #{tpu_custom_call.1} parent=1 // pred_check_branch
      %60 = sbr.rel (0) target = $region45
    $region44: #{tpu_custom_call.1} parent=1 // pred_region
      _
    $region45: #{tpu_custom_call.1} parent=1 // pred_fallthru
      _
    // Predicated region
    $region46: #{tpu_custom_call.1} parent=1 // pred_check
      _
    $region47: #{tpu_custom_call.1} parent=1 // pred_check_branch
      %62 = sbr.rel (0) target = $region49
    $region48: #{tpu_custom_call.1} parent=1 // pred_region
      _
    $region49: #{tpu_custom_call.1} parent=1 // pred_fallthru
      _
    // Predicated region
    $region50: #{tpu_custom_call.1} parent=1 // pred_check
      _
    $region51: #{tpu_custom_call.1} parent=1 // pred_check_branch
      %64 = sbr.rel (0) target = $region53
    $region52: #{tpu_custom_call.1} parent=1 // pred_region
      %65 = dma.done [#allocation4], 256
    $region53: #{tpu_custom_call.1} parent=1 // pred_fallthru
      _
    // Predicated region
    $region54: #{tpu_custom_call.1} parent=1 // pred_check
      _
    $region55: #{tpu_custom_call.1} parent=1 // pred_check_branch
      %67 = sbr.rel (0) target = $region57
    $region56: #{tpu_custom_call.1} parent=1 // pred_region
      %68 = dma.done [#allocation6], 16
    $region57: #{tpu_custom_call.1} parent=1 // pred_fallthru
      _
    %v69 = vld [vmem:[%s2] sm:$0xff]
    %v70 = vld [vmem:[#allocation5] sm:$0x1]
    %v72 = vlaneseq
    %v73 = vshrl.u32 %v72, 7
    %v74 = vsub.s32 0, %v73
    %v75 = vrot.slane %v70, %v74
    %v77 = vld [vmem:[%s4] sm:$0xff]
    %v78 = vld [vmem:[%s4 + $0x8] sm:$0xff]
    %v79 = vld [vmem:[%s4 + $0x10] sm:$0xff]
    %v80 = vld [vmem:[%s4 + $0x18] sm:$0xff]
    %v81 = vld [vmem:[%s5] sm:$0x1]
    %v83 = vlaneseq
    %v84 = vshrl.u32 %v83, 7
    %v85 = vsub.s32 0, %v84
    %v86 = vrot.slane %v81, %v85
    %v88 = vld [vmem:[%s6] sm:$0xff]
    %v89 = vld [vmem:[%s7] sm:$0xff]
    %v90 = vld [vmem:[%s7 + $0x8] sm:$0xff]
    %v91 = vld [vmem:[%s7 + $0x10] sm:$0xff]
    %v92 = vld [vmem:[%s7 + $0x18] sm:$0xff]
    %v93 = vld [vmem:[%s8] sm:$0xff]
    %v94 = vld [vmem:[%s8 + $0x8] sm:$0xff]
    %v95 = vld [vmem:[%s8 + $0x10] sm:$0xff]
    %v96 = vld [vmem:[%s8 + $0x18] sm:$0xff]
    %v97 = vld [vmem:[%s9] sm:$0x1]
    %v99 = vlaneseq
    %v100 = vshrl.u32 %v99, 7
    %v101 = vsub.s32 0, %v100
    %v102 = vrot.slane %v97, %v101
    %v104 = vld [vmem:[%s10] sm:$0xff]
    %v105 = vld [vmem:[%s10 + $0x8] sm:$0xff]
    %v106 = vld [vmem:[%s10 + $0x10] sm:$0xff]
    %v107 = vld [vmem:[%s10 + $0x18] sm:$0xff]
    %v108 = vld [vmem:[%s10 + $0x20] sm:$0xff]
    %v109 = vld [vmem:[%s10 + $0x28] sm:$0xff]
    %v110 = vld [vmem:[%s10 + $0x30] sm:$0xff]
    %v111 = vld [vmem:[%s10 + $0x38] sm:$0xff]
    %v112 = vld [vmem:[%s10 + $0x40] sm:$0xff]
    %v113 = vld [vmem:[#allocation2] sm:$0x1]
    %v115 = vlaneseq
    %v116 = vshrl.u32 %v115, 7
    %v117 = vsub.s32 0, %v116
    %v118 = vrot.slane %v113, %v117
    %v120 = vld [vmem:[#allocation3] sm:$0xff]
    %v121 = vld [vmem:[#allocation3 + $0x8] sm:$0xff]
    %v122 = vlaneseq
    %v123 = vshrl.u32 %v122, 7
    %v124 = vlaneseq
    %v125 = vand.u32 %v124, 127
    %v126 = vadd.s32 %v125, 1
    %vm127 = vcmp.eq.s32.totalorder %v123, %v126
    %v128 = vsel %vm127, 1, 0
    %v129 = vcvt.s32.f32 %v128
    %v130 = vld [vmem:[%s1] sm:$0xff]
    %v131 = vld [vmem:[%s1 + $0x8] sm:$0xff]
    %vm132 = vcmask 130048
    %v134 = vsel %vm132, %v120, 0
    %v137 = vsel %vm132, %v121, 0
    %139 = vmatprep.subr.mxu0 0.0
    %140 = vmatpush1.msra.mxu0 %v130
    %141 = vmatprep.subr.mxu0 0.0
    %142 = vmatpush1.msra.mxu0 %v131
    %143 = vmatprep.subr.mxu0 0.0
    %144 = vmatpush1.msra.mxu0 0.0
    %145 = vmatprep.subr.mxu0 0.0
    %146 = vmatpush1.msra.mxu0 0.0
    %147 = vmatprep.subr.mxu0 0.0
    %148 = vmatpush1.msra.mxu0 0.0
    %149 = vmatprep.subr.mxu0 0.0
    %150 = vmatpush1.msra.mxu0 0.0
    %151 = vmatprep.subr.mxu0 0.0
    %152 = vmatpush1.msra.mxu0 0.0
    %153 = vmatprep.subr.mxu0 0.0
    %154 = vmatpush1.msra.mxu0 0.0
    %155 = vmatprep.subr.mxu0 0.0
    %156 = vmatpush1.msra.mxu0 0.0
    %157 = vmatprep.subr.mxu0 0.0
    %158 = vmatpush1.msra.mxu0 0.0
    %159 = vmatprep.subr.mxu0 0.0
    %160 = vmatpush1.msra.mxu0 0.0
    %161 = vmatprep.subr.mxu0 0.0
    %162 = vmatpush1.msra.mxu0 0.0
    %163 = vmatprep.subr.mxu0 0.0
    %164 = vmatpush1.msra.mxu0 0.0
    %165 = vmatprep.subr.mxu0 0.0
    %166 = vmatpush1.msra.mxu0 0.0
    %167 = vmatprep.subr.mxu0 0.0
    %168 = vmatpush1.msra.mxu0 0.0
    %169 = vmatprep.subr.mxu0 0.0
    %170 = vmatpush1.msra.mxu0 0.0
    %171 = vmatprep.subr.mxu0 0.0
    %172 = vmatpush1.msra.mxu0 0.0
    %173 = vmatprep.subr.mxu0 0.0
    %174 = vmatpush1.msra.mxu0 0.0
    %175 = vmatprep.subr.mxu0 0.0
    %176 = vmatpush1.msra.mxu0 0.0
    %177 = vmatprep.subr.mxu0 0.0
    %178 = vmatpush1.msra.mxu0 0.0
    %179 = vmatprep.subr.mxu0 0.0
    %180 = vmatpush1.msra.mxu0 0.0
    %181 = vmatprep.subr.mxu0 0.0
    %182 = vmatpush1.msra.mxu0 0.0
    %183 = vmatprep.subr.mxu0 0.0
    %184 = vmatpush1.msra.mxu0 0.0
    %185 = vmatprep.subr.mxu0 0.0
    %186 = vmatpush1.msra.mxu0 0.0
    %187 = vmatprep.subr.mxu0 0.0
    %188 = vmatpush1.msra.mxu0 0.0
    %189 = vmatprep.subr.mxu0 0.0
    %190 = vmatpush1.msra.mxu0 0.0
    %191 = vmatprep.subr.mxu0 0.0
    %192 = vmatpush1.msra.mxu0 0.0
    %193 = vmatprep.subr.mxu0 0.0
    %194 = vmatpush1.msra.mxu0 0.0
    %195 = vmatprep.subr.mxu0 0.0
    %196 = vmatpush1.msra.mxu0 0.0
    %197 = vmatprep.subr.mxu0 0.0
    %198 = vmatpush1.msra.mxu0 0.0
    %199 = vmatprep.subr.mxu0 0.0
    %200 = vmatpush1.msra.mxu0 0.0
    %201 = vmatprep.subr.mxu0 0.0
    %202 = vmatpush1.msra.mxu0 0.0
    %203 = vmatprep.mubr.f32.mxu0 0.0
    %204 = vmatmul.mubr.f32.gmra.mrb[0].mxu0 %v134
    %v205 = vpop.f32.mrb[0].mxu0
    %v206 = vadd.f32 0.0, %v205
    %v207 = vpop.f32.mrb[0].mxu0
    %208 = vmatprep.mubr.f32.mxu0 0.0
    %209 = vmatmul.mubr.f32.gmra.mrb[0].mxu0 %v137
    %v210 = vpop.f32.mrb[0].mxu0
    %v211 = vadd.f32 0.0, %v210
    %v212 = vpop.f32.mrb[0].mxu0
    %213 = vdwg.mxu0
    %vm214 = vcmask 64512
    %v216 = vsel %vm214, %v206, 0
    %v219 = vsel %vm214, %v211, 0
    %221 = vmatprep.subr.mxu0 0.0
    %222 = vmatpush1.msra.mxu0 %v69
    %223 = vmatprep.subr.mxu0 0.0
    %224 = vmatpush1.msra.mxu0 0.0
    %225 = vmatprep.subr.mxu0 0.0
    %226 = vmatpush1.msra.mxu0 0.0
    %227 = vmatprep.subr.mxu0 0.0
    %228 = vmatpush1.msra.mxu0 0.0
    %229 = vmatprep.subr.mxu0 0.0
    %230 = vmatpush1.msra.mxu0 0.0
    %231 = vmatprep.subr.mxu0 0.0
    %232 = vmatpush1.msra.mxu0 0.0
    %233 = vmatprep.subr.mxu0 0.0
    %234 = vmatpush1.msra.mxu0 0.0
    %235 = vmatprep.subr.mxu0 0.0
    %236 = vmatpush1.msra.mxu0 0.0
    %237 = vmatprep.subr.mxu0 0.0
    %238 = vmatpush1.msra.mxu0 0.0
    %239 = vmatprep.subr.mxu0 0.0
    %240 = vmatpush1.msra.mxu0 0.0
    %241 = vmatprep.subr.mxu0 0.0
    %242 = vmatpush1.msra.mxu0 0.0
    %243 = vmatprep.subr.mxu0 0.0
    %244 = vmatpush1.msra.mxu0 0.0
    %245 = vmatprep.subr.mxu0 0.0
    %246 = vmatpush1.msra.mxu0 0.0
    %247 = vmatprep.subr.mxu0 0.0
    %248 = vmatpush1.msra.mxu0 0.0
    %249 = vmatprep.subr.mxu0 0.0
    %250 = vmatpush1.msra.mxu0 0.0
    %251 = vmatprep.subr.mxu0 0.0
    %252 = vmatpush1.msra.mxu0 0.0
    %253 = vmatprep.subr.mxu0 0.0
    %254 = vmatpush1.msra.mxu0 0.0
    %255 = vmatprep.subr.mxu0 0.0
    %256 = vmatpush1.msra.mxu0 0.0
    %257 = vmatprep.subr.mxu0 0.0
    %258 = vmatpush1.msra.mxu0 0.0
    %259 = vmatprep.subr.mxu0 0.0
    %260 = vmatpush1.msra.mxu0 0.0
    %261 = vmatprep.subr.mxu0 0.0
    %262 = vmatpush1.msra.mxu0 0.0
    %263 = vmatprep.subr.mxu0 0.0
    %264 = vmatpush1.msra.mxu0 0.0
    %265 = vmatprep.subr.mxu0 0.0
    %266 = vmatpush1.msra.mxu0 0.0
    %267 = vmatprep.subr.mxu0 0.0
    %268 = vmatpush1.msra.mxu0 0.0
    %269 = vmatprep.subr.mxu0 0.0
    %270 = vmatpush1.msra.mxu0 0.0
    %271 = vmatprep.subr.mxu0 0.0
    %272 = vmatpush1.msra.mxu0 0.0
    %273 = vmatprep.subr.mxu0 0.0
    %274 = vmatpush1.msra.mxu0 0.0
    %275 = vmatprep.subr.mxu0 0.0
    %276 = vmatpush1.msra.mxu0 0.0
    %277 = vmatprep.subr.mxu0 0.0
    %278 = vmatpush1.msra.mxu0 0.0
    %279 = vmatprep.subr.mxu0 0.0
    %280 = vmatpush1.msra.mxu0 0.0
    %281 = vmatprep.subr.mxu0 0.0
    %282 = vmatpush1.msra.mxu0 0.0
    %283 = vmatprep.subr.mxu0 0.0
    %284 = vmatpush1.msra.mxu0 0.0
    %285 = vmatprep.mubr.f32.mxu0 0.0
    %286 = vmatmul.mubr.f32.gmra.mrb[0].mxu0 %v216
    %v287 = vpop.f32.mrb[0].mxu0
    %v288 = vadd.f32 %v75, %v287
    %v289 = vpop.f32.mrb[0].mxu0
    %290 = vmatprep.mubr.f32.mxu0 0.0
    %291 = vmatmul.mubr.f32.gmra.mrb[0].mxu0 %v219
    %v292 = vpop.f32.mrb[0].mxu0
    %v293 = vadd.f32 %v75, %v292
    %v294 = vpop.f32.mrb[0].mxu0
    %295 = vdwg.mxu0
    %v296 = vmul.f32 %v288, 0.01
    %v297 = vmul.f32 %v293, 0.01
    %v298 = vmax.f32 %v288, %v296
    %v299 = vmax.f32 %v293, %v297
    %vm300 = vcmask 261120
    %v302 = vsel %vm300, %v298, 0
    %v305 = vsel %vm300, %v299, 0
    %307 = vmatprep.subr.mxu0 0.0
    %308 = vmatpush1.msra.mxu0 %v77
    %309 = vmatprep.subr.mxu0 0.0
    %310 = vmatpush1.msra.mxu0 %v78
    %311 = vmatprep.subr.mxu0 0.0
    %312 = vmatpush1.msra.mxu0 %v79
    %313 = vmatprep.subr.mxu0 0.0
    %314 = vmatpush1.msra.mxu0 %v80
    %315 = vmatprep.subr.mxu0 0.0
    %316 = vmatpush1.msra.mxu0 0.0
    %317 = vmatprep.subr.mxu0 0.0
    %318 = vmatpush1.msra.mxu0 0.0
    %319 = vmatprep.subr.mxu0 0.0
    %320 = vmatpush1.msra.mxu0 0.0
    %321 = vmatprep.subr.mxu0 0.0
    %322 = vmatpush1.msra.mxu0 0.0
    %323 = vmatprep.subr.mxu0 0.0
    %324 = vmatpush1.msra.mxu0 0.0
    %325 = vmatprep.subr.mxu0 0.0
    %326 = vmatpush1.msra.mxu0 0.0
    %327 = vmatprep.subr.mxu0 0.0
    %328 = vmatpush1.msra.mxu0 0.0
    %329 = vmatprep.subr.mxu0 0.0
    %330 = vmatpush1.msra.mxu0 0.0
    %331 = vmatprep.subr.mxu0 0.0
    %332 = vmatpush1.msra.mxu0 0.0
    %333 = vmatprep.subr.mxu0 0.0
    %334 = vmatpush1.msra.mxu0 0.0
    %335 = vmatprep.subr.mxu0 0.0
    %336 = vmatpush1.msra.mxu0 0.0
    %337 = vmatprep.subr.mxu0 0.0
    %338 = vmatpush1.msra.mxu0 0.0
    %339 = vmatprep.subr.mxu0 0.0
    %340 = vmatpush1.msra.mxu0 0.0
    %341 = vmatprep.subr.mxu0 0.0
    %342 = vmatpush1.msra.mxu0 0.0
    %343 = vmatprep.subr.mxu0 0.0
    %344 = vmatpush1.msra.mxu0 0.0
    %345 = vmatprep.subr.mxu0 0.0
    %346 = vmatpush1.msra.mxu0 0.0
    %347 = vmatprep.subr.mxu0 0.0
    %348 = vmatpush1.msra.mxu0 0.0
    %349 = vmatprep.subr.mxu0 0.0
    %350 = vmatpush1.msra.mxu0 0.0
    %351 = vmatprep.subr.mxu0 0.0
    %352 = vmatpush1.msra.mxu0 0.0
    %353 = vmatprep.subr.mxu0 0.0
    %354 = vmatpush1.msra.mxu0 0.0
    %355 = vmatprep.subr.mxu0 0.0
    %356 = vmatpush1.msra.mxu0 0.0
    %357 = vmatprep.subr.mxu0 0.0
    %358 = vmatpush1.msra.mxu0 0.0
    %359 = vmatprep.subr.mxu0 0.0
    %360 = vmatpush1.msra.mxu0 0.0
    %361 = vmatprep.subr.mxu0 0.0
    %362 = vmatpush1.msra.mxu0 0.0
    %363 = vmatprep.subr.mxu0 0.0
    %364 = vmatpush1.msra.mxu0 0.0
    %365 = vmatprep.subr.mxu0 0.0
    %366 = vmatpush1.msra.mxu0 0.0
    %367 = vmatprep.subr.mxu0 0.0
    %368 = vmatpush1.msra.mxu0 0.0
    %369 = vmatprep.subr.mxu0 0.0
    %370 = vmatpush1.msra.mxu0 0.0
    %371 = vmatprep.mubr.f32.mxu0 0.0
    %372 = vmatmul.mubr.f32.gmra.mrb[0].mxu0 %v302
    %v373 = vpop.f32.mrb[0].mxu0
    %v374 = vadd.f32 0.0, %v373
    %v375 = vpop.f32.mrb[0].mxu0
    %376 = vmatprep.mubr.f32.mxu0 0.0
    %377 = vmatmul.mubr.f32.gmra.mrb[0].mxu0 %v305
    %v378 = vpop.f32.mrb[0].mxu0
    %v379 = vadd.f32 0.0, %v378
    %v380 = vpop.f32.mrb[0].mxu0
    %381 = vdwg.mxu0
    %382 = vmatprep.subr.mxu0 0.0
    %383 = vmatpush1.msra.mxu0 %v374
    %384 = vmatprep.subr.mxu0 0.0
    %385 = vmatpush1.msra.mxu0 %v379
    %386 = vmatprep.subr.mxu0 0.0
    %387 = vmatpush1.msra.mxu0 0.0
    %388 = vmatprep.subr.mxu0 0.0
    %389 = vmatpush1.msra.mxu0 0.0
    %390 = vmatprep.subr.mxu0 0.0
    %391 = vmatpush1.msra.mxu0 0.0
    %392 = vmatprep.subr.mxu0 0.0
    %393 = vmatpush1.msra.mxu0 0.0
    %394 = vmatprep.subr.mxu0 0.0
    %395 = vmatpush1.msra.mxu0 0.0
    %396 = vmatprep.subr.mxu0 0.0
    %397 = vmatpush1.msra.mxu0 0.0
    %398 = vmatprep.subr.mxu0 0.0
    %399 = vmatpush1.msra.mxu0 0.0
    %400 = vmatprep.subr.mxu0 0.0
    %401 = vmatpush1.msra.mxu0 0.0
    %402 = vmatprep.subr.mxu0 0.0
    %403 = vmatpush1.msra.mxu0 0.0
    %404 = vmatprep.subr.mxu0 0.0
    %405 = vmatpush1.msra.mxu0 0.0
    %406 = vmatprep.subr.mxu0 0.0
    %407 = vmatpush1.msra.mxu0 0.0
    %408 = vmatprep.subr.mxu0 0.0
    %409 = vmatpush1.msra.mxu0 0.0
    %410 = vmatprep.subr.mxu0 0.0
    %411 = vmatpush1.msra.mxu0 0.0
    %412 = vmatprep.subr.mxu0 0.0
    %413 = vmatpush1.msra.mxu0 0.0
    %414 = vmatprep.subr.mxu0 0.0
    %415 = vmatpush1.msra.mxu0 0.0
    %416 = vmatprep.subr.mxu0 0.0
    %417 = vmatpush1.msra.mxu0 0.0
    %418 = vmatprep.subr.mxu0 0.0
    %419 = vmatpush1.msra.mxu0 0.0
    %420 = vmatprep.subr.mxu0 0.0
    %421 = vmatpush1.msra.mxu0 0.0
    %422 = vmatprep.subr.mxu0 0.0
    %423 = vmatpush1.msra.mxu0 0.0
    %424 = vmatprep.subr.mxu0 0.0
    %425 = vmatpush1.msra.mxu0 0.0
    %426 = vmatprep.subr.mxu0 0.0
    %427 = vmatpush1.msra.mxu0 0.0
    %428 = vmatprep.subr.mxu0 0.0
    %429 = vmatpush1.msra.mxu0 0.0
    %430 = vmatprep.subr.mxu0 0.0
    %431 = vmatpush1.msra.mxu0 0.0
    %432 = vmatprep.subr.mxu0 0.0
    %433 = vmatpush1.msra.mxu0 0.0
    %434 = vmatprep.subr.mxu0 0.0
    %435 = vmatpush1.msra.mxu0 0.0
    %436 = vmatprep.subr.mxu0 0.0
    %437 = vmatpush1.msra.mxu0 0.0
    %438 = vmatprep.subr.mxu0 0.0
    %439 = vmatpush1.msra.mxu0 0.0
    %440 = vmatprep.subr.mxu0 0.0
    %441 = vmatpush1.msra.mxu0 0.0
    %442 = vmatprep.subr.mxu0 0.0
    %443 = vmatpush1.msra.mxu0 0.0
    %444 = vmatprep.subr.mxu0 0.0
    %445 = vmatpush1.msra.mxu0 0.0
    %446 = vmatprep.mubr.f32.mxu0 0.0
    %447 = vmatmul.mubr.f32.gmra.mrb[0].mxu0 %v134
    %v448 = vpop.f32.mrb[0].mxu0
    %v449 = vadd.f32 %v86, %v448
    %v450 = vpop.f32.mrb[0].mxu0
    %451 = vmatprep.mubr.f32.mxu0 0.0
    %452 = vmatmul.mubr.f32.gmra.mrb[0].mxu0 %v137
    %v453 = vpop.f32.mrb[0].mxu0
    %v454 = vadd.f32 %v86, %v453
    %v455 = vpop.f32.mrb[0].mxu0
    %456 = vdwg.mxu0
    %v457 = vmul.f32 %v449, 0.01
    %v458 = vmul.f32 %v454, 0.01
    %v459 = vmax.f32 %v449, %v457
    %v460 = vmax.f32 %v454, %v458
    %461 = vmatprep.subr.mxu0 0.0
    %462 = vmatpush1.msra.mxu0 %v89
    %463 = vmatprep.subr.mxu0 0.0
    %464 = vmatpush1.msra.mxu0 %v90
    %465 = vmatprep.subr.mxu0 0.0
    %466 = vmatpush1.msra.mxu0 %v91
    %467 = vmatprep.subr.mxu0 0.0
    %468 = vmatpush1.msra.mxu0 %v92
    %469 = vmatprep.subr.mxu0 0.0
    %470 = vmatpush1.msra.mxu0 0.0
    %471 = vmatprep.subr.mxu0 0.0
    %472 = vmatpush1.msra.mxu0 0.0
    %473 = vmatprep.subr.mxu0 0.0
    %474 = vmatpush1.msra.mxu0 0.0
    %475 = vmatprep.subr.mxu0 0.0
    %476 = vmatpush1.msra.mxu0 0.0
    %477 = vmatprep.subr.mxu0 0.0
    %478 = vmatpush1.msra.mxu0 0.0
    %479 = vmatprep.subr.mxu0 0.0
    %480 = vmatpush1.msra.mxu0 0.0
    %481 = vmatprep.subr.mxu0 0.0
    %482 = vmatpush1.msra.mxu0 0.0
    %483 = vmatprep.subr.mxu0 0.0
    %484 = vmatpush1.msra.mxu0 0.0
    %485 = vmatprep.subr.mxu0 0.0
    %486 = vmatpush1.msra.mxu0 0.0
    %487 = vmatprep.subr.mxu0 0.0
    %488 = vmatpush1.msra.mxu0 0.0
    %489 = vmatprep.subr.mxu0 0.0
    %490 = vmatpush1.msra.mxu0 0.0
    %491 = vmatprep.subr.mxu0 0.0
    %492 = vmatpush1.msra.mxu0 0.0
    %493 = vmatprep.subr.mxu0 0.0
    %494 = vmatpush1.msra.mxu0 0.0
    %495 = vmatprep.subr.mxu0 0.0
    %496 = vmatpush1.msra.mxu0 0.0
    %497 = vmatprep.subr.mxu0 0.0
    %498 = vmatpush1.msra.mxu0 0.0
    %499 = vmatprep.subr.mxu0 0.0
    %500 = vmatpush1.msra.mxu0 0.0
    %501 = vmatprep.subr.mxu0 0.0
    %502 = vmatpush1.msra.mxu0 0.0
    %503 = vmatprep.subr.mxu0 0.0
    %504 = vmatpush1.msra.mxu0 0.0
    %505 = vmatprep.subr.mxu0 0.0
    %506 = vmatpush1.msra.mxu0 0.0
    %507 = vmatprep.subr.mxu0 0.0
    %508 = vmatpush1.msra.mxu0 0.0
    %509 = vmatprep.subr.mxu0 0.0
    %510 = vmatpush1.msra.mxu0 0.0
    %511 = vmatprep.subr.mxu0 0.0
    %512 = vmatpush1.msra.mxu0 0.0
    %513 = vmatprep.subr.mxu0 0.0
    %514 = vmatpush1.msra.mxu0 0.0
    %515 = vmatprep.subr.mxu0 0.0
    %516 = vmatpush1.msra.mxu0 0.0
    %517 = vmatprep.subr.mxu0 0.0
    %518 = vmatpush1.msra.mxu0 0.0
    %519 = vmatprep.subr.mxu0 0.0
    %520 = vmatpush1.msra.mxu0 0.0
    %521 = vmatprep.subr.mxu0 0.0
    %522 = vmatpush1.msra.mxu0 0.0
    %523 = vmatprep.subr.mxu0 0.0
    %524 = vmatpush1.msra.mxu0 0.0
    %525 = vmatprep.mubr.f32.mxu0 0.0
    %526 = vmatmul.mubr.f32.gmra.mrb[0].mxu0 %v302
    %v527 = vpop.f32.mrb[0].mxu0
    %v528 = vadd.f32 0.0, %v527
    %v529 = vpop.f32.mrb[0].mxu0
    %530 = vmatprep.mubr.f32.mxu0 0.0
    %531 = vmatmul.mubr.f32.gmra.mrb[0].mxu0 %v305
    %v532 = vpop.f32.mrb[0].mxu0
    %v533 = vadd.f32 0.0, %v532
    %v534 = vpop.f32.mrb[0].mxu0
    %535 = vdwg.mxu0
    %v537 = vsel %vm214, %v130, 0
    %v540 = vsel %vm214, %v131, 0
    %542 = vmatprep.subr.mxu0 0.0
    %543 = vmatpush1.msra.mxu0 %v88
    %544 = vmatprep.subr.mxu0 0.0
    %545 = vmatpush1.msra.mxu0 0.0
    %546 = vmatprep.subr.mxu0 0.0
    %547 = vmatpush1.msra.mxu0 0.0
    %548 = vmatprep.subr.mxu0 0.0
    %549 = vmatpush1.msra.mxu0 0.0
    %550 = vmatprep.subr.mxu0 0.0
    %551 = vmatpush1.msra.mxu0 0.0
    %552 = vmatprep.subr.mxu0 0.0
    %553 = vmatpush1.msra.mxu0 0.0
    %554 = vmatprep.subr.mxu0 0.0
    %555 = vmatpush1.msra.mxu0 0.0
    %556 = vmatprep.subr.mxu0 0.0
    %557 = vmatpush1.msra.mxu0 0.0
    %558 = vmatprep.subr.mxu0 0.0
    %559 = vmatpush1.msra.mxu0 0.0
    %560 = vmatprep.subr.mxu0 0.0
    %561 = vmatpush1.msra.mxu0 0.0
    %562 = vmatprep.subr.mxu0 0.0
    %563 = vmatpush1.msra.mxu0 0.0
    %564 = vmatprep.subr.mxu0 0.0
    %565 = vmatpush1.msra.mxu0 0.0
    %566 = vmatprep.subr.mxu0 0.0
    %567 = vmatpush1.msra.mxu0 0.0
    %568 = vmatprep.subr.mxu0 0.0
    %569 = vmatpush1.msra.mxu0 0.0
    %570 = vmatprep.subr.mxu0 0.0
    %571 = vmatpush1.msra.mxu0 0.0
    %572 = vmatprep.subr.mxu0 0.0
    %573 = vmatpush1.msra.mxu0 0.0
    %574 = vmatprep.subr.mxu0 0.0
    %575 = vmatpush1.msra.mxu0 0.0
    %576 = vmatprep.subr.mxu0 0.0
    %577 = vmatpush1.msra.mxu0 0.0
    %578 = vmatprep.subr.mxu0 0.0
    %579 = vmatpush1.msra.mxu0 0.0
    %580 = vmatprep.subr.mxu0 0.0
    %581 = vmatpush1.msra.mxu0 0.0
    %582 = vmatprep.subr.mxu0 0.0
    %583 = vmatpush1.msra.mxu0 0.0
    %584 = vmatprep.subr.mxu0 0.0
    %585 = vmatpush1.msra.mxu0 0.0
    %586 = vmatprep.subr.mxu0 0.0
    %587 = vmatpush1.msra.mxu0 0.0
    %588 = vmatprep.subr.mxu0 0.0
    %589 = vmatpush1.msra.mxu0 0.0
    %590 = vmatprep.subr.mxu0 0.0
    %591 = vmatpush1.msra.mxu0 0.0
    %592 = vmatprep.subr.mxu0 0.0
    %593 = vmatpush1.msra.mxu0 0.0
    %594 = vmatprep.subr.mxu0 0.0
    %595 = vmatpush1.msra.mxu0 0.0
    %596 = vmatprep.subr.mxu0 0.0
    %597 = vmatpush1.msra.mxu0 0.0
    %598 = vmatprep.subr.mxu0 0.0
    %599 = vmatpush1.msra.mxu0 0.0
    %600 = vmatprep.subr.mxu0 0.0
    %601 = vmatpush1.msra.mxu0 0.0
    %602 = vmatprep.subr.mxu0 0.0
    %603 = vmatpush1.msra.mxu0 0.0
    %604 = vmatprep.subr.mxu0 0.0
    %605 = vmatpush1.msra.mxu0 0.0
    %606 = vmatprep.mubr.f32.mxu0 0.0
    %607 = vmatmul.mubr.f32.gmra.mrb[0].mxu0 %v537
    %v608 = vpop.f32.mrb[0].mxu0
    %v609 = vadd.f32 %v528, %v608
    %v610 = vpop.f32.mrb[0].mxu0
    %611 = vmatprep.mubr.f32.mxu0 0.0
    %612 = vmatmul.mubr.f32.gmra.mrb[0].mxu0 %v540
    %v613 = vpop.f32.mrb[0].mxu0
    %v614 = vadd.f32 %v533, %v613
    %v615 = vpop.f32.mrb[0].mxu0
    %616 = vdwg.mxu0
    %v618 = vsel %vm300, %v459, 0
    %v621 = vsel %vm300, %v460, 0
    %623 = vmatprep.subr.mxu0 0.0
    %624 = vmatpush1.msra.mxu0 %v93
    %625 = vmatprep.subr.mxu0 0.0
    %626 = vmatpush1.msra.mxu0 %v94
    %627 = vmatprep.subr.mxu0 0.0
    %628 = vmatpush1.msra.mxu0 %v95
    %629 = vmatprep.subr.mxu0 0.0
    %630 = vmatpush1.msra.mxu0 %v96
    %631 = vmatprep.subr.mxu0 0.0
    %632 = vmatpush1.msra.mxu0 0.0
    %633 = vmatprep.subr.mxu0 0.0
    %634 = vmatpush1.msra.mxu0 0.0
    %635 = vmatprep.subr.mxu0 0.0
    %636 = vmatpush1.msra.mxu0 0.0
    %637 = vmatprep.subr.mxu0 0.0
    %638 = vmatpush1.msra.mxu0 0.0
    %639 = vmatprep.subr.mxu0 0.0
    %640 = vmatpush1.msra.mxu0 0.0
    %641 = vmatprep.subr.mxu0 0.0
    %642 = vmatpush1.msra.mxu0 0.0
    %643 = vmatprep.subr.mxu0 0.0
    %644 = vmatpush1.msra.mxu0 0.0
    %645 = vmatprep.subr.mxu0 0.0
    %646 = vmatpush1.msra.mxu0 0.0
    %647 = vmatprep.subr.mxu0 0.0
    %648 = vmatpush1.msra.mxu0 0.0
    %649 = vmatprep.subr.mxu0 0.0
    %650 = vmatpush1.msra.mxu0 0.0
    %651 = vmatprep.subr.mxu0 0.0
    %652 = vmatpush1.msra.mxu0 0.0
    %653 = vmatprep.subr.mxu0 0.0
    %654 = vmatpush1.msra.mxu0 0.0
    %655 = vmatprep.subr.mxu0 0.0
    %656 = vmatpush1.msra.mxu0 0.0
    %657 = vmatprep.subr.mxu0 0.0
    %658 = vmatpush1.msra.mxu0 0.0
    %659 = vmatprep.subr.mxu0 0.0
    %660 = vmatpush1.msra.mxu0 0.0
    %661 = vmatprep.subr.mxu0 0.0
    %662 = vmatpush1.msra.mxu0 0.0
    %663 = vmatprep.subr.mxu0 0.0
    %664 = vmatpush1.msra.mxu0 0.0
    %665 = vmatprep.subr.mxu0 0.0
    %666 = vmatpush1.msra.mxu0 0.0
    %667 = vmatprep.subr.mxu0 0.0
    %668 = vmatpush1.msra.mxu0 0.0
    %669 = vmatprep.subr.mxu0 0.0
    %670 = vmatpush1.msra.mxu0 0.0
    %671 = vmatprep.subr.mxu0 0.0
    %672 = vmatpush1.msra.mxu0 0.0
    %673 = vmatprep.subr.mxu0 0.0
    %674 = vmatpush1.msra.mxu0 0.0
    %675 = vmatprep.subr.mxu0 0.0
    %676 = vmatpush1.msra.mxu0 0.0
    %677 = vmatprep.subr.mxu0 0.0
    %678 = vmatpush1.msra.mxu0 0.0
    %679 = vmatprep.subr.mxu0 0.0
    %680 = vmatpush1.msra.mxu0 0.0
    %681 = vmatprep.subr.mxu0 0.0
    %682 = vmatpush1.msra.mxu0 0.0
    %683 = vmatprep.subr.mxu0 0.0
    %684 = vmatpush1.msra.mxu0 0.0
    %685 = vmatprep.subr.mxu0 0.0
    %686 = vmatpush1.msra.mxu0 0.0
    %687 = vmatprep.mubr.f32.mxu0 0.0
    %688 = vmatmul.mubr.f32.gmra.mrb[0].mxu0 %v618
    %v689 = vpop.f32.mrb[0].mxu0
    %v690 = vadd.f32 0.0, %v689
    %v691 = vpop.f32.mrb[0].mxu0
    %692 = vmatprep.mubr.f32.mxu0 0.0
    %693 = vmatmul.mubr.f32.gmra.mrb[0].mxu0 %v621
    %v694 = vpop.f32.mrb[0].mxu0
    %v695 = vadd.f32 0.0, %v694
    %v696 = vpop.f32.mrb[0].mxu0
    %697 = vdwg.mxu0
    %v698 = vadd.f32 %v609, %v690
    %v699 = vadd.f32 %v614, %v695
    %700 = vmatprep.subr.mxu0 0.0
    %701 = vmatpush1.msra.mxu0 %v698
    %702 = vmatprep.subr.mxu0 0.0
    %703 = vmatpush1.msra.mxu0 %v699
    %704 = vmatprep.subr.mxu0 0.0
    %705 = vmatpush1.msra.mxu0 0.0
    %706 = vmatprep.subr.mxu0 0.0
    %707 = vmatpush1.msra.mxu0 0.0
    %708 = vmatprep.subr.mxu0 0.0
    %709 = vmatpush1.msra.mxu0 0.0
    %710 = vmatprep.subr.mxu0 0.0
    %711 = vmatpush1.msra.mxu0 0.0
    %712 = vmatprep.subr.mxu0 0.0
    %713 = vmatpush1.msra.mxu0 0.0
    %714 = vmatprep.subr.mxu0 0.0
    %715 = vmatpush1.msra.mxu0 0.0
    %716 = vmatprep.subr.mxu0 0.0
    %717 = vmatpush1.msra.mxu0 0.0
    %718 = vmatprep.subr.mxu0 0.0
    %719 = vmatpush1.msra.mxu0 0.0
    %720 = vmatprep.subr.mxu0 0.0
    %721 = vmatpush1.msra.mxu0 0.0
    %722 = vmatprep.subr.mxu0 0.0
    %723 = vmatpush1.msra.mxu0 0.0
    %724 = vmatprep.subr.mxu0 0.0
    %725 = vmatpush1.msra.mxu0 0.0
    %726 = vmatprep.subr.mxu0 0.0
    %727 = vmatpush1.msra.mxu0 0.0
    %728 = vmatprep.subr.mxu0 0.0
    %729 = vmatpush1.msra.mxu0 0.0
    %730 = vmatprep.subr.mxu0 0.0
    %731 = vmatpush1.msra.mxu0 0.0
    %732 = vmatprep.subr.mxu0 0.0
    %733 = vmatpush1.msra.mxu0 0.0
    %734 = vmatprep.subr.mxu0 0.0
    %735 = vmatpush1.msra.mxu0 0.0
    %736 = vmatprep.subr.mxu0 0.0
    %737 = vmatpush1.msra.mxu0 0.0
    %738 = vmatprep.subr.mxu0 0.0
    %739 = vmatpush1.msra.mxu0 0.0
    %740 = vmatprep.subr.mxu0 0.0
    %741 = vmatpush1.msra.mxu0 0.0
    %742 = vmatprep.subr.mxu0 0.0
    %743 = vmatpush1.msra.mxu0 0.0
    %744 = vmatprep.subr.mxu0 0.0
    %745 = vmatpush1.msra.mxu0 0.0
    %746 = vmatprep.subr.mxu0 0.0
    %747 = vmatpush1.msra.mxu0 0.0
    %748 = vmatprep.subr.mxu0 0.0
    %749 = vmatpush1.msra.mxu0 0.0
    %750 = vmatprep.subr.mxu0 0.0
    %751 = vmatpush1.msra.mxu0 0.0
    %752 = vmatprep.subr.mxu0 0.0
    %753 = vmatpush1.msra.mxu0 0.0
    %754 = vmatprep.subr.mxu0 0.0
    %755 = vmatpush1.msra.mxu0 0.0
    %756 = vmatprep.subr.mxu0 0.0
    %757 = vmatpush1.msra.mxu0 0.0
    %758 = vmatprep.subr.mxu0 0.0
    %759 = vmatpush1.msra.mxu0 0.0
    %760 = vmatprep.subr.mxu0 0.0
    %761 = vmatpush1.msra.mxu0 0.0
    %762 = vmatprep.subr.mxu0 0.0
    %763 = vmatpush1.msra.mxu0 0.0
    %764 = vmatprep.mubr.f32.mxu0 0.0
    %765 = vmatmul.mubr.f32.gmra.mrb[0].mxu0 %v134
    %v766 = vpop.f32.mrb[0].mxu0
    %v767 = vadd.f32 %v102, %v766
    %v768 = vpop.f32.mrb[0].mxu0
    %769 = vmatprep.mubr.f32.mxu0 0.0
    %770 = vmatmul.mubr.f32.gmra.mrb[0].mxu0 %v137
    %v771 = vpop.f32.mrb[0].mxu0
    %v772 = vadd.f32 %v102, %v771
    %v773 = vpop.f32.mrb[0].mxu0
    %774 = vdwg.mxu0
    %v775 = vmul.f32 %v767, 0.01
    %v776 = vmul.f32 %v772, 0.01
    %v777 = vmax.f32 %v767, %v775
    %v778 = vmax.f32 %v772, %v776
    %vm779 = vcmask 588800
    %v781 = vsel %vm779, %v777, 0
    %v784 = vsel %vm779, %v778, 0
    %786 = vmatprep.subr.mxu0 0.0
    %787 = vmatpush1.msra.mxu0 %v104
    %788 = vmatprep.subr.mxu0 0.0
    %789 = vmatpush1.msra.mxu0 %v105
    %790 = vmatprep.subr.mxu0 0.0
    %791 = vmatpush1.msra.mxu0 %v106
    %792 = vmatprep.subr.mxu0 0.0
    %793 = vmatpush1.msra.mxu0 %v107
    %794 = vmatprep.subr.mxu0 0.0
    %795 = vmatpush1.msra.mxu0 %v108
    %796 = vmatprep.subr.mxu0 0.0
    %797 = vmatpush1.msra.mxu0 %v109
    %798 = vmatprep.subr.mxu0 0.0
    %799 = vmatpush1.msra.mxu0 %v110
    %800 = vmatprep.subr.mxu0 0.0
    %801 = vmatpush1.msra.mxu0 %v111
    %802 = vmatprep.subr.mxu0 0.0
    %803 = vmatpush1.msra.mxu0 %v112
    %804 = vmatprep.subr.mxu0 0.0
    %805 = vmatpush1.msra.mxu0 0.0
    %806 = vmatprep.subr.mxu0 0.0
    %807 = vmatpush1.msra.mxu0 0.0
    %808 = vmatprep.subr.mxu0 0.0
    %809 = vmatpush1.msra.mxu0 0.0
    %810 = vmatprep.subr.mxu0 0.0
    %811 = vmatpush1.msra.mxu0 0.0
    %812 = vmatprep.subr.mxu0 0.0
    %813 = vmatpush1.msra.mxu0 0.0
    %814 = vmatprep.subr.mxu0 0.0
    %815 = vmatpush1.msra.mxu0 0.0
    %816 = vmatprep.subr.mxu0 0.0
    %817 = vmatpush1.msra.mxu0 0.0
    %818 = vmatprep.subr.mxu0 0.0
    %819 = vmatpush1.msra.mxu0 0.0
    %820 = vmatprep.subr.mxu0 0.0
    %821 = vmatpush1.msra.mxu0 0.0
    %822 = vmatprep.subr.mxu0 0.0
    %823 = vmatpush1.msra.mxu0 0.0
    %824 = vmatprep.subr.mxu0 0.0
    %825 = vmatpush1.msra.mxu0 0.0
    %826 = vmatprep.subr.mxu0 0.0
    %827 = vmatpush1.msra.mxu0 0.0
    %828 = vmatprep.subr.mxu0 0.0
    %829 = vmatpush1.msra.mxu0 0.0
    %830 = vmatprep.subr.mxu0 0.0
    %831 = vmatpush1.msra.mxu0 0.0
    %832 = vmatprep.subr.mxu0 0.0
    %833 = vmatpush1.msra.mxu0 0.0
    %834 = vmatprep.subr.mxu0 0.0
    %835 = vmatpush1.msra.mxu0 0.0
    %836 = vmatprep.subr.mxu0 0.0
    %837 = vmatpush1.msra.mxu0 0.0
    %838 = vmatprep.subr.mxu0 0.0
    %839 = vmatpush1.msra.mxu0 0.0
    %840 = vmatprep.subr.mxu0 0.0
    %841 = vmatpush1.msra.mxu0 0.0
    %842 = vmatprep.subr.mxu0 0.0
    %843 = vmatpush1.msra.mxu0 0.0
    %844 = vmatprep.subr.mxu0 0.0
    %845 = vmatpush1.msra.mxu0 0.0
    %846 = vmatprep.subr.mxu0 0.0
    %847 = vmatpush1.msra.mxu0 0.0
    %848 = vmatprep.subr.mxu0 0.0
    %849 = vmatpush1.msra.mxu0 0.0
    %850 = vmatprep.mubr.f32.mxu0 0.0
    %851 = vmatmul.mubr.f32.gmra.mrb[0].mxu0 %v781
    %v852 = vpop.f32.mrb[0].mxu0
    %v853 = vadd.f32 0.0, %v852
    %v854 = vpop.f32.mrb[0].mxu0
    %855 = vmatprep.mubr.f32.mxu0 0.0
    %856 = vmatmul.mubr.f32.gmra.mrb[0].mxu0 %v784
    %v857 = vpop.f32.mrb[0].mxu0
    %v858 = vadd.f32 0.0, %v857
    %v859 = vpop.f32.mrb[0].mxu0
    %860 = vdwg.mxu0
    %861 = vmatprep.subr.mxu0 0.0
    %862 = vmatpush1.msra.mxu0 %v853
    %863 = vmatprep.subr.mxu0 0.0
    %864 = vmatpush1.msra.mxu0 %v858
    %865 = vmatprep.subr.mxu0 0.0
    %866 = vmatpush1.msra.mxu0 0.0
    %867 = vmatprep.subr.mxu0 0.0
    %868 = vmatpush1.msra.mxu0 0.0
    %869 = vmatprep.subr.mxu0 0.0
    %870 = vmatpush1.msra.mxu0 0.0
    %871 = vmatprep.subr.mxu0 0.0
    %872 = vmatpush1.msra.mxu0 0.0
    %873 = vmatprep.subr.mxu0 0.0
    %874 = vmatpush1.msra.mxu0 0.0
    %875 = vmatprep.subr.mxu0 0.0
    %876 = vmatpush1.msra.mxu0 0.0
    %877 = vmatprep.subr.mxu0 0.0
    %878 = vmatpush1.msra.mxu0 0.0
    %879 = vmatprep.subr.mxu0 0.0
    %880 = vmatpush1.msra.mxu0 0.0
    %881 = vmatprep.subr.mxu0 0.0
    %882 = vmatpush1.msra.mxu0 0.0
    %883 = vmatprep.subr.mxu0 0.0
    %884 = vmatpush1.msra.mxu0 0.0
    %885 = vmatprep.subr.mxu0 0.0
    %886 = vmatpush1.msra.mxu0 0.0
    %887 = vmatprep.subr.mxu0 0.0
    %888 = vmatpush1.msra.mxu0 0.0
    %889 = vmatprep.subr.mxu0 0.0
    %890 = vmatpush1.msra.mxu0 0.0
    %891 = vmatprep.subr.mxu0 0.0
    %892 = vmatpush1.msra.mxu0 0.0
    %893 = vmatprep.subr.mxu0 0.0
    %894 = vmatpush1.msra.mxu0 0.0
    %895 = vmatprep.subr.mxu0 0.0
    %896 = vmatpush1.msra.mxu0 0.0
    %897 = vmatprep.subr.mxu0 0.0
    %898 = vmatpush1.msra.mxu0 0.0
    %899 = vmatprep.subr.mxu0 0.0
    %900 = vmatpush1.msra.mxu0 0.0
    %901 = vmatprep.subr.mxu0 0.0
    %902 = vmatpush1.msra.mxu0 0.0
    %903 = vmatprep.subr.mxu0 0.0
    %904 = vmatpush1.msra.mxu0 0.0
    %905 = vmatprep.subr.mxu0 0.0
    %906 = vmatpush1.msra.mxu0 0.0
    %907 = vmatprep.subr.mxu0 0.0
    %908 = vmatpush1.msra.mxu0 0.0
    %909 = vmatprep.subr.mxu0 0.0
    %910 = vmatpush1.msra.mxu0 0.0
    %911 = vmatprep.subr.mxu0 0.0
    %912 = vmatpush1.msra.mxu0 0.0
    %913 = vmatprep.subr.mxu0 0.0
    %914 = vmatpush1.msra.mxu0 0.0
    %915 = vmatprep.subr.mxu0 0.0
    %916 = vmatpush1.msra.mxu0 0.0
    %917 = vmatprep.subr.mxu0 0.0
    %918 = vmatpush1.msra.mxu0 0.0
    %919 = vmatprep.subr.mxu0 0.0
    %920 = vmatpush1.msra.mxu0 0.0
    %921 = vmatprep.subr.mxu0 0.0
    %922 = vmatpush1.msra.mxu0 0.0
    %923 = vmatprep.subr.mxu0 0.0
    %924 = vmatpush1.msra.mxu0 0.0
    %925 = vmatprep.mubr.f32.mxu0 0.0
    %926 = vmatmul.mubr.f32.gmra.mrb[0].mxu0 %v134
    %v927 = vpop.f32.mrb[0].mxu0
    %v928 = vadd.f32 %v118, %v927
    %v929 = vpop.f32.mrb[0].mxu0
    %930 = vmatprep.mubr.f32.mxu0 0.0
    %931 = vmatmul.mubr.f32.gmra.mrb[0].mxu0 %v137
    %v932 = vpop.f32.mrb[0].mxu0
    %v933 = vadd.f32 %v118, %v932
    %v934 = vpop.f32.mrb[0].mxu0
    %935 = vdwg.mxu0
    %936 = vmatprep.subr.mxu0 0.0
    %937 = vmatpush1.msra.mxu0 %v129
    %938 = vmatprep.subr.mxu0 0.0
    %939 = vmatpush1.msra.mxu0 0.0
    %940 = vmatprep.subr.mxu0 0.0
    %941 = vmatpush1.msra.mxu0 0.0
    %942 = vmatprep.subr.mxu0 0.0
    %943 = vmatpush1.msra.mxu0 0.0
    %944 = vmatprep.subr.mxu0 0.0
    %945 = vmatpush1.msra.mxu0 0.0
    %946 = vmatprep.subr.mxu0 0.0
    %947 = vmatpush1.msra.mxu0 0.0
    %948 = vmatprep.subr.mxu0 0.0
    %949 = vmatpush1.msra.mxu0 0.0
    %950 = vmatprep.subr.mxu0 0.0
    %951 = vmatpush1.msra.mxu0 0.0
    %952 = vmatprep.subr.mxu0 0.0
    %953 = vmatpush1.msra.mxu0 0.0
    %954 = vmatprep.subr.mxu0 0.0
    %955 = vmatpush1.msra.mxu0 0.0
    %956 = vmatprep.subr.mxu0 0.0
    %957 = vmatpush1.msra.mxu0 0.0
    %958 = vmatprep.subr.mxu0 0.0
    %959 = vmatpush1.msra.mxu0 0.0
    %960 = vmatprep.subr.mxu0 0.0
    %961 = vmatpush1.msra.mxu0 0.0
    %962 = vmatprep.subr.mxu0 0.0
    %963 = vmatpush1.msra.mxu0 0.0
    %964 = vmatprep.subr.mxu0 0.0
    %965 = vmatpush1.msra.mxu0 0.0
    %966 = vmatprep.subr.mxu0 0.0
    %967 = vmatpush1.msra.mxu0 0.0
    %968 = vmatprep.subr.mxu0 0.0
    %969 = vmatpush1.msra.mxu0 0.0
    %970 = vmatprep.subr.mxu0 0.0
    %971 = vmatpush1.msra.mxu0 0.0
    %972 = vmatprep.subr.mxu0 0.0
    %973 = vmatpush1.msra.mxu0 0.0
    %974 = vmatprep.subr.mxu0 0.0
    %975 = vmatpush1.msra.mxu0 0.0
    %976 = vmatprep.subr.mxu0 0.0
    %977 = vmatpush1.msra.mxu0 0.0
    %978 = vmatprep.subr.mxu0 0.0
    %979 = vmatpush1.msra.mxu0 0.0
    %980 = vmatprep.subr.mxu0 0.0
    %981 = vmatpush1.msra.mxu0 0.0
    %982 = vmatprep.subr.mxu0 0.0
    %983 = vmatpush1.msra.mxu0 0.0
    %984 = vmatprep.subr.mxu0 0.0
    %985 = vmatpush1.msra.mxu0 0.0
    %986 = vmatprep.subr.mxu0 0.0
    %987 = vmatpush1.msra.mxu0 0.0
    %988 = vmatprep.subr.mxu0 0.0
    %989 = vmatpush1.msra.mxu0 0.0
    %990 = vmatprep.subr.mxu0 0.0
    %991 = vmatpush1.msra.mxu0 0.0
    %992 = vmatprep.subr.mxu0 0.0
    %993 = vmatpush1.msra.mxu0 0.0
    %994 = vmatprep.subr.mxu0 0.0
    %995 = vmatpush1.msra.mxu0 0.0
    %996 = vmatprep.subr.mxu0 0.0
    %997 = vmatpush1.msra.mxu0 0.0
    %998 = vmatprep.subr.mxu0 0.0
    %999 = vmatpush1.msra.mxu0 0.0
    %1000 = vmatprep.mubr.f32.mxu0 0.0
    %1001 = vmatmul.mubr.f32.gmra.mrb[0].mxu0 %v537
    %v1002 = vpop.f32.mrb[0].mxu0
    %v1003 = vadd.f32 0.0, %v1002
    %v1004 = vpop.f32.mrb[0].mxu0
    %1005 = vmatprep.mubr.f32.mxu0 0.0
    %1006 = vmatmul.mubr.f32.gmra.mrb[0].mxu0 %v540
    %v1007 = vpop.f32.mrb[0].mxu0
    %v1008 = vadd.f32 0.0, %v1007
    %v1009 = vpop.f32.mrb[0].mxu0
    %1010 = vdwg.mxu0
    %vm1011 = vcmp.eq.s32.totalorder %v125, 7
    %1013 = vset.pattern.permute.xlu0 0
    %1014 = vperm.xlu0 %1013, %v928
    %v1015 = vpop.permute.xlu0 %1014
    %1018 = vset.pattern.permute.xlu0 0
    %1019 = vperm.xlu0 %1018, %v933
    %v1020 = vpop.permute.xlu0 %1019
    %v1022 = vsel %vm1011, %v1015, %v1003
    %v1023 = vsel %vm1011, %v1020, %v1008
    %1024 = vmatprep.subr.mxu0 0.0
    %1025 = vmatpush1.msra.mxu0 %v1022
    %1026 = vmatprep.subr.mxu0 0.0
    %1027 = vmatpush1.msra.mxu0 %v1023
    %1028 = vmatprep.subr.mxu0 0.0
    %1029 = vmatpush1.msra.mxu0 0.0
    %1030 = vmatprep.subr.mxu0 0.0
    %1031 = vmatpush1.msra.mxu0 0.0
    %1032 = vmatprep.subr.mxu0 0.0
    %1033 = vmatpush1.msra.mxu0 0.0
    %1034 = vmatprep.subr.mxu0 0.0
    %1035 = vmatpush1.msra.mxu0 0.0
    %1036 = vmatprep.subr.mxu0 0.0
    %1037 = vmatpush1.msra.mxu0 0.0
    %1038 = vmatprep.subr.mxu0 0.0
    %1039 = vmatpush1.msra.mxu0 0.0
    %1040 = vmatprep.subr.mxu0 0.0
    %1041 = vmatpush1.msra.mxu0 0.0
    %1042 = vmatprep.subr.mxu0 0.0
    %1043 = vmatpush1.msra.mxu0 0.0
    %1044 = vmatprep.subr.mxu0 0.0
    %1045 = vmatpush1.msra.mxu0 0.0
    %1046 = vmatprep.subr.mxu0 0.0
    %1047 = vmatpush1.msra.mxu0 0.0
    %1048 = vmatprep.subr.mxu0 0.0
    %1049 = vmatpush1.msra.mxu0 0.0
    %1050 = vmatprep.subr.mxu0 0.0
    %1051 = vmatpush1.msra.mxu0 0.0
    %1052 = vmatprep.subr.mxu0 0.0
    %1053 = vmatpush1.msra.mxu0 0.0
    %1054 = vmatprep.subr.mxu0 0.0
    %1055 = vmatpush1.msra.mxu0 0.0
    %1056 = vmatprep.subr.mxu0 0.0
    %1057 = vmatpush1.msra.mxu0 0.0
    %1058 = vmatprep.subr.mxu0 0.0
    %1059 = vmatpush1.msra.mxu0 0.0
    %1060 = vmatprep.subr.mxu0 0.0
    %1061 = vmatpush1.msra.mxu0 0.0
    %1062 = vmatprep.subr.mxu0 0.0
    %1063 = vmatpush1.msra.mxu0 0.0
    %1064 = vmatprep.subr.mxu0 0.0
    %1065 = vmatpush1.msra.mxu0 0.0
    %1066 = vmatprep.subr.mxu0 0.0
    %1067 = vmatpush1.msra.mxu0 0.0
    %1068 = vmatprep.subr.mxu0 0.0
    %1069 = vmatpush1.msra.mxu0 0.0
    %1070 = vmatprep.subr.mxu0 0.0
    %1071 = vmatpush1.msra.mxu0 0.0
    %1072 = vmatprep.subr.mxu0 0.0
    %1073 = vmatpush1.msra.mxu0 0.0
    %1074 = vmatprep.subr.mxu0 0.0
    %1075 = vmatpush1.msra.mxu0 0.0
    %1076 = vmatprep.subr.mxu0 0.0
    %1077 = vmatpush1.msra.mxu0 0.0
    %1078 = vmatprep.subr.mxu0 0.0
    %1079 = vmatpush1.msra.mxu0 0.0
    %1080 = vmatprep.subr.mxu0 0.0
    %1081 = vmatpush1.msra.mxu0 0.0
    %1082 = vmatprep.subr.mxu0 0.0
    %1083 = vmatpush1.msra.mxu0 0.0
    %1084 = vmatprep.subr.mxu0 0.0
    %1085 = vmatpush1.msra.mxu0 0.0
    %1086 = vmatprep.subr.mxu0 0.0
    %1087 = vmatpush1.msra.mxu0 0.0
    %1088 = vmatprep.mubr.f32.mxu0 0.0
    %1089 = vmatmul.mubr.f32.gmra.mrb[0].mxu0 %v134
    %v1090 = vpop.f32.mrb[0].mxu0
    %v1091 = vadd.f32 0.0, %v1090
    %v1092 = vpop.f32.mrb[0].mxu0
    %1093 = vmatprep.mubr.f32.mxu0 0.0
    %1094 = vmatmul.mubr.f32.gmra.mrb[0].mxu0 %v137
    %v1095 = vpop.f32.mrb[0].mxu0
    %v1096 = vadd.f32 0.0, %v1095
    %v1097 = vpop.f32.mrb[0].mxu0
    %1098 = vdwg.mxu0
    %v1100 = vsel %vm214, %v1091, 0
    %v1103 = vsel %vm214, %v1096, 0
    %1105 = vmatprep.subr.mxu0 0.0
    %1106 = vmatpush1.msra.mxu0 %v69
    %1107 = vmatprep.subr.mxu0 0.0
    %1108 = vmatpush1.msra.mxu0 0.0
    %1109 = vmatprep.subr.mxu0 0.0
    %1110 = vmatpush1.msra.mxu0 0.0
    %1111 = vmatprep.subr.mxu0 0.0
    %1112 = vmatpush1.msra.mxu0 0.0
    %1113 = vmatprep.subr.mxu0 0.0
    %1114 = vmatpush1.msra.mxu0 0.0
    %1115 = vmatprep.subr.mxu0 0.0
    %1116 = vmatpush1.msra.mxu0 0.0
    %1117 = vmatprep.subr.mxu0 0.0
    %1118 = vmatpush1.msra.mxu0 0.0
    %1119 = vmatprep.subr.mxu0 0.0
    %1120 = vmatpush1.msra.mxu0 0.0
    %1121 = vmatprep.subr.mxu0 0.0
    %1122 = vmatpush1.msra.mxu0 0.0
    %1123 = vmatprep.subr.mxu0 0.0
    %1124 = vmatpush1.msra.mxu0 0.0
    %1125 = vmatprep.subr.mxu0 0.0
    %1126 = vmatpush1.msra.mxu0 0.0
    %1127 = vmatprep.subr.mxu0 0.0
    %1128 = vmatpush1.msra.mxu0 0.0
    %1129 = vmatprep.subr.mxu0 0.0
    %1130 = vmatpush1.msra.mxu0 0.0
    %1131 = vmatprep.subr.mxu0 0.0
    %1132 = vmatpush1.msra.mxu0 0.0
    %1133 = vmatprep.subr.mxu0 0.0
    %1134 = vmatpush1.msra.mxu0 0.0
    %1135 = vmatprep.subr.mxu0 0.0
    %1136 = vmatpush1.msra.mxu0 0.0
    %1137 = vmatprep.subr.mxu0 0.0
    %1138 = vmatpush1.msra.mxu0 0.0
    %1139 = vmatprep.subr.mxu0 0.0
    %1140 = vmatpush1.msra.mxu0 0.0
    %1141 = vmatprep.subr.mxu0 0.0
    %1142 = vmatpush1.msra.mxu0 0.0
    %1143 = vmatprep.subr.mxu0 0.0
    %1144 = vmatpush1.msra.mxu0 0.0
    %1145 = vmatprep.subr.mxu0 0.0
    %1146 = vmatpush1.msra.mxu0 0.0
    %1147 = vmatprep.subr.mxu0 0.0
    %1148 = vmatpush1.msra.mxu0 0.0
    %1149 = vmatprep.subr.mxu0 0.0
    %1150 = vmatpush1.msra.mxu0 0.0
    %1151 = vmatprep.subr.mxu0 0.0
    %1152 = vmatpush1.msra.mxu0 0.0
    %1153 = vmatprep.subr.mxu0 0.0
    %1154 = vmatpush1.msra.mxu0 0.0
    %1155 = vmatprep.subr.mxu0 0.0
    %1156 = vmatpush1.msra.mxu0 0.0
    %1157 = vmatprep.subr.mxu0 0.0
    %1158 = vmatpush1.msra.mxu0 0.0
    %1159 = vmatprep.subr.mxu0 0.0
    %1160 = vmatpush1.msra.mxu0 0.0
    %1161 = vmatprep.subr.mxu0 0.0
    %1162 = vmatpush1.msra.mxu0 0.0
    %1163 = vmatprep.subr.mxu0 0.0
    %1164 = vmatpush1.msra.mxu0 0.0
    %1165 = vmatprep.subr.mxu0 0.0
    %1166 = vmatpush1.msra.mxu0 0.0
    %1167 = vmatprep.subr.mxu0 0.0
    %1168 = vmatpush1.msra.mxu0 0.0
    %1169 = vmatprep.mubr.f32.mxu0 0.0
    %1170 = vmatmul.mubr.f32.gmra.mrb[0].mxu0 %v1100
    %v1171 = vpop.f32.mrb[0].mxu0
    %v1172 = vadd.f32 %v75, %v1171
    %v1173 = vpop.f32.mrb[0].mxu0
    %1174 = vmatprep.mubr.f32.mxu0 0.0
    %1175 = vmatmul.mubr.f32.gmra.mrb[0].mxu0 %v1103
    %v1176 = vpop.f32.mrb[0].mxu0
    %v1177 = vadd.f32 %v75, %v1176
    %v1178 = vpop.f32.mrb[0].mxu0
    %1179 = vdwg.mxu0
    %v1180 = vmul.f32 %v1172, 0.01
    %v1181 = vmul.f32 %v1177, 0.01
    %v1182 = vmax.f32 %v1172, %v1180
    %v1183 = vmax.f32 %v1177, %v1181
    %v1185 = vsel %vm300, %v1182, 0
    %v1188 = vsel %vm300, %v1183, 0
    %1190 = vmatprep.subr.mxu0 0.0
    %1191 = vmatpush1.msra.mxu0 %v77
    %1192 = vmatprep.subr.mxu0 0.0
    %1193 = vmatpush1.msra.mxu0 %v78
    %1194 = vmatprep.subr.mxu0 0.0
    %1195 = vmatpush1.msra.mxu0 %v79
    %1196 = vmatprep.subr.mxu0 0.0
    %1197 = vmatpush1.msra.mxu0 %v80
    %1198 = vmatprep.subr.mxu0 0.0
    %1199 = vmatpush1.msra.mxu0 0.0
    %1200 = vmatprep.subr.mxu0 0.0
    %1201 = vmatpush1.msra.mxu0 0.0
    %1202 = vmatprep.subr.mxu0 0.0
    %1203 = vmatpush1.msra.mxu0 0.0
    %1204 = vmatprep.subr.mxu0 0.0
    %1205 = vmatpush1.msra.mxu0 0.0
    %1206 = vmatprep.subr.mxu0 0.0
    %1207 = vmatpush1.msra.mxu0 0.0
    %1208 = vmatprep.subr.mxu0 0.0
    %1209 = vmatpush1.msra.mxu0 0.0
    %1210 = vmatprep.subr.mxu0 0.0
    %1211 = vmatpush1.msra.mxu0 0.0
    %1212 = vmatprep.subr.mxu0 0.0
    %1213 = vmatpush1.msra.mxu0 0.0
    %1214 = vmatprep.subr.mxu0 0.0
    %1215 = vmatpush1.msra.mxu0 0.0
    %1216 = vmatprep.subr.mxu0 0.0
    %1217 = vmatpush1.msra.mxu0 0.0
    %1218 = vmatprep.subr.mxu0 0.0
    %1219 = vmatpush1.msra.mxu0 0.0
    %1220 = vmatprep.subr.mxu0 0.0
    %1221 = vmatpush1.msra.mxu0 0.0
    %1222 = vmatprep.subr.mxu0 0.0
    %1223 = vmatpush1.msra.mxu0 0.0
    %1224 = vmatprep.subr.mxu0 0.0
    %1225 = vmatpush1.msra.mxu0 0.0
    %1226 = vmatprep.subr.mxu0 0.0
    %1227 = vmatpush1.msra.mxu0 0.0
    %1228 = vmatprep.subr.mxu0 0.0
    %1229 = vmatpush1.msra.mxu0 0.0
    %1230 = vmatprep.subr.mxu0 0.0
    %1231 = vmatpush1.msra.mxu0 0.0
    %1232 = vmatprep.subr.mxu0 0.0
    %1233 = vmatpush1.msra.mxu0 0.0
    %1234 = vmatprep.subr.mxu0 0.0
    %1235 = vmatpush1.msra.mxu0 0.0
    %1236 = vmatprep.subr.mxu0 0.0
    %1237 = vmatpush1.msra.mxu0 0.0
    %1238 = vmatprep.subr.mxu0 0.0
    %1239 = vmatpush1.msra.mxu0 0.0
    %1240 = vmatprep.subr.mxu0 0.0
    %1241 = vmatpush1.msra.mxu0 0.0
    %1242 = vmatprep.subr.mxu0 0.0
    %1243 = vmatpush1.msra.mxu0 0.0
    %1244 = vmatprep.subr.mxu0 0.0
    %1245 = vmatpush1.msra.mxu0 0.0
    %1246 = vmatprep.subr.mxu0 0.0
    %1247 = vmatpush1.msra.mxu0 0.0
    %1248 = vmatprep.subr.mxu0 0.0
    %1249 = vmatpush1.msra.mxu0 0.0
    %1250 = vmatprep.subr.mxu0 0.0
    %1251 = vmatpush1.msra.mxu0 0.0
    %1252 = vmatprep.subr.mxu0 0.0
    %1253 = vmatpush1.msra.mxu0 0.0
    %1254 = vmatprep.mubr.f32.mxu0 0.0
    %1255 = vmatmul.mubr.f32.gmra.mrb[0].mxu0 %v1185
    %v1256 = vpop.f32.mrb[0].mxu0
    %v1257 = vadd.f32 0.0, %v1256
    %v1258 = vpop.f32.mrb[0].mxu0
    %1259 = vmatprep.mubr.f32.mxu0 0.0
    %1260 = vmatmul.mubr.f32.gmra.mrb[0].mxu0 %v1188
    %v1261 = vpop.f32.mrb[0].mxu0
    %v1262 = vadd.f32 0.0, %v1261
    %v1263 = vpop.f32.mrb[0].mxu0
    %1264 = vdwg.mxu0
    %1265 = vmatprep.subr.mxu0 0.0
    %1266 = vmatpush1.msra.mxu0 %v1257
    %1267 = vmatprep.subr.mxu0 0.0
    %1268 = vmatpush1.msra.mxu0 %v1262
    %1269 = vmatprep.subr.mxu0 0.0
    %1270 = vmatpush1.msra.mxu0 0.0
    %1271 = vmatprep.subr.mxu0 0.0
    %1272 = vmatpush1.msra.mxu0 0.0
    %1273 = vmatprep.subr.mxu0 0.0
    %1274 = vmatpush1.msra.mxu0 0.0
    %1275 = vmatprep.subr.mxu0 0.0
    %1276 = vmatpush1.msra.mxu0 0.0
    %1277 = vmatprep.subr.mxu0 0.0
    %1278 = vmatpush1.msra.mxu0 0.0
    %1279 = vmatprep.subr.mxu0 0.0
    %1280 = vmatpush1.msra.mxu0 0.0
    %1281 = vmatprep.subr.mxu0 0.0
    %1282 = vmatpush1.msra.mxu0 0.0
    %1283 = vmatprep.subr.mxu0 0.0
    %1284 = vmatpush1.msra.mxu0 0.0
    %1285 = vmatprep.subr.mxu0 0.0
    %1286 = vmatpush1.msra.mxu0 0.0
    %1287 = vmatprep.subr.mxu0 0.0
    %1288 = vmatpush1.msra.mxu0 0.0
    %1289 = vmatprep.subr.mxu0 0.0
    %1290 = vmatpush1.msra.mxu0 0.0
    %1291 = vmatprep.subr.mxu0 0.0
    %1292 = vmatpush1.msra.mxu0 0.0
    %1293 = vmatprep.subr.mxu0 0.0
    %1294 = vmatpush1.msra.mxu0 0.0
    %1295 = vmatprep.subr.mxu0 0.0
    %1296 = vmatpush1.msra.mxu0 0.0
    %1297 = vmatprep.subr.mxu0 0.0
    %1298 = vmatpush1.msra.mxu0 0.0
    %1299 = vmatprep.subr.mxu0 0.0
    %1300 = vmatpush1.msra.mxu0 0.0
    %1301 = vmatprep.subr.mxu0 0.0
    %1302 = vmatpush1.msra.mxu0 0.0
    %1303 = vmatprep.subr.mxu0 0.0
    %1304 = vmatpush1.msra.mxu0 0.0
    %1305 = vmatprep.subr.mxu0 0.0
    %1306 = vmatpush1.msra.mxu0 0.0
    %1307 = vmatprep.subr.mxu0 0.0
    %1308 = vmatpush1.msra.mxu0 0.0
    %1309 = vmatprep.subr.mxu0 0.0
    %1310 = vmatpush1.msra.mxu0 0.0
    %1311 = vmatprep.subr.mxu0 0.0
    %1312 = vmatpush1.msra.mxu0 0.0
    %1313 = vmatprep.subr.mxu0 0.0
    %1314 = vmatpush1.msra.mxu0 0.0
    %1315 = vmatprep.subr.mxu0 0.0
    %1316 = vmatpush1.msra.mxu0 0.0
    %1317 = vmatprep.subr.mxu0 0.0
    %1318 = vmatpush1.msra.mxu0 0.0
    %1319 = vmatprep.subr.mxu0 0.0
    %1320 = vmatpush1.msra.mxu0 0.0
    %1321 = vmatprep.subr.mxu0 0.0
    %1322 = vmatpush1.msra.mxu0 0.0
    %1323 = vmatprep.subr.mxu0 0.0
    %1324 = vmatpush1.msra.mxu0 0.0
    %1325 = vmatprep.subr.mxu0 0.0
    %1326 = vmatpush1.msra.mxu0 0.0
    %1327 = vmatprep.subr.mxu0 0.0
    %1328 = vmatpush1.msra.mxu0 0.0
    %1329 = vmatprep.mubr.f32.mxu0 0.0
    %1330 = vmatmul.mubr.f32.gmra.mrb[0].mxu0 %v134
    %v1331 = vpop.f32.mrb[0].mxu0
    %v1332 = vadd.f32 %v86, %v1331
    %v1333 = vpop.f32.mrb[0].mxu0
    %1334 = vmatprep.mubr.f32.mxu0 0.0
    %1335 = vmatmul.mubr.f32.gmra.mrb[0].mxu0 %v137
    %v1336 = vpop.f32.mrb[0].mxu0
    %v1337 = vadd.f32 %v86, %v1336
    %v1338 = vpop.f32.mrb[0].mxu0
    %1339 = vdwg.mxu0
    %v1340 = vmul.f32 %v1332, 0.01
    %v1341 = vmul.f32 %v1337, 0.01
    %v1342 = vmax.f32 %v1332, %v1340
    %v1343 = vmax.f32 %v1337, %v1341
    %1344 = vmatprep.subr.mxu0 0.0
    %1345 = vmatpush1.msra.mxu0 %v89
    %1346 = vmatprep.subr.mxu0 0.0
    %1347 = vmatpush1.msra.mxu0 %v90
    %1348 = vmatprep.subr.mxu0 0.0
    %1349 = vmatpush1.msra.mxu0 %v91
    %1350 = vmatprep.subr.mxu0 0.0
    %1351 = vmatpush1.msra.mxu0 %v92
    %1352 = vmatprep.subr.mxu0 0.0
    %1353 = vmatpush1.msra.mxu0 0.0
    %1354 = vmatprep.subr.mxu0 0.0
    %1355 = vmatpush1.msra.mxu0 0.0
    %1356 = vmatprep.subr.mxu0 0.0
    %1357 = vmatpush1.msra.mxu0 0.0
    %1358 = vmatprep.subr.mxu0 0.0
    %1359 = vmatpush1.msra.mxu0 0.0
    %1360 = vmatprep.subr.mxu0 0.0
    %1361 = vmatpush1.msra.mxu0 0.0
    %1362 = vmatprep.subr.mxu0 0.0
    %1363 = vmatpush1.msra.mxu0 0.0
    %1364 = vmatprep.subr.mxu0 0.0
    %1365 = vmatpush1.msra.mxu0 0.0
    %1366 = vmatprep.subr.mxu0 0.0
    %1367 = vmatpush1.msra.mxu0 0.0
    %1368 = vmatprep.subr.mxu0 0.0
    %1369 = vmatpush1.msra.mxu0 0.0
    %1370 = vmatprep.subr.mxu0 0.0
    %1371 = vmatpush1.msra.mxu0 0.0
    %1372 = vmatprep.subr.mxu0 0.0
    %1373 = vmatpush1.msra.mxu0 0.0
    %1374 = vmatprep.subr.mxu0 0.0
    %1375 = vmatpush1.msra.mxu0 0.0
    %1376 = vmatprep.subr.mxu0 0.0
    %1377 = vmatpush1.msra.mxu0 0.0
    %1378 = vmatprep.subr.mxu0 0.0
    %1379 = vmatpush1.msra.mxu0 0.0
    %1380 = vmatprep.subr.mxu0 0.0
    %1381 = vmatpush1.msra.mxu0 0.0
    %1382 = vmatprep.subr.mxu0 0.0
    %1383 = vmatpush1.msra.mxu0 0.0
    %1384 = vmatprep.subr.mxu0 0.0
    %1385 = vmatpush1.msra.mxu0 0.0
    %1386 = vmatprep.subr.mxu0 0.0
    %1387 = vmatpush1.msra.mxu0 0.0
    %1388 = vmatprep.subr.mxu0 0.0
    %1389 = vmatpush1.msra.mxu0 0.0
    %1390 = vmatprep.subr.mxu0 0.0
    %1391 = vmatpush1.msra.mxu0 0.0
    %1392 = vmatprep.subr.mxu0 0.0
    %1393 = vmatpush1.msra.mxu0 0.0
    %1394 = vmatprep.subr.mxu0 0.0
    %1395 = vmatpush1.msra.mxu0 0.0
    %1396 = vmatprep.subr.mxu0 0.0
    %1397 = vmatpush1.msra.mxu0 0.0
    %1398 = vmatprep.subr.mxu0 0.0
    %1399 = vmatpush1.msra.mxu0 0.0
    %1400 = vmatprep.subr.mxu0 0.0
    %1401 = vmatpush1.msra.mxu0 0.0
    %1402 = vmatprep.subr.mxu0 0.0
    %1403 = vmatpush1.msra.mxu0 0.0
    %1404 = vmatprep.subr.mxu0 0.0
    %1405 = vmatpush1.msra.mxu0 0.0
    %1406 = vmatprep.subr.mxu0 0.0
    %1407 = vmatpush1.msra.mxu0 0.0
    %1408 = vmatprep.mubr.f32.mxu0 0.0
    %1409 = vmatmul.mubr.f32.gmra.mrb[0].mxu0 %v1185
    %v1410 = vpop.f32.mrb[0].mxu0
    %v1411 = vadd.f32 0.0, %v1410
    %v1412 = vpop.f32.mrb[0].mxu0
    %1413 = vmatprep.mubr.f32.mxu0 0.0
    %1414 = vmatmul.mubr.f32.gmra.mrb[0].mxu0 %v1188
    %v1415 = vpop.f32.mrb[0].mxu0
    %v1416 = vadd.f32 0.0, %v1415
    %v1417 = vpop.f32.mrb[0].mxu0
    %1418 = vdwg.mxu0
    %v1420 = vsel %vm214, %v1022, 0
    %v1423 = vsel %vm214, %v1023, 0
    %1425 = vmatprep.subr.mxu0 0.0
    %1426 = vmatpush1.msra.mxu0 %v88
    %1427 = vmatprep.subr.mxu0 0.0
    %1428 = vmatpush1.msra.mxu0 0.0
    %1429 = vmatprep.subr.mxu0 0.0
    %1430 = vmatpush1.msra.mxu0 0.0
    %1431 = vmatprep.subr.mxu0 0.0
    %1432 = vmatpush1.msra.mxu0 0.0
    %1433 = vmatprep.subr.mxu0 0.0
    %1434 = vmatpush1.msra.mxu0 0.0
    %1435 = vmatprep.subr.mxu0 0.0
    %1436 = vmatpush1.msra.mxu0 0.0
    %1437 = vmatprep.subr.mxu0 0.0
    %1438 = vmatpush1.msra.mxu0 0.0
    %1439 = vmatprep.subr.mxu0 0.0
    %1440 = vmatpush1.msra.mxu0 0.0
    %1441 = vmatprep.subr.mxu0 0.0
    %1442 = vmatpush1.msra.mxu0 0.0
    %1443 = vmatprep.subr.mxu0 0.0
    %1444 = vmatpush1.msra.mxu0 0.0
    %1445 = vmatprep.subr.mxu0 0.0
    %1446 = vmatpush1.msra.mxu0 0.0
    %1447 = vmatprep.subr.mxu0 0.0
    %1448 = vmatpush1.msra.mxu0 0.0
    %1449 = vmatprep.subr.mxu0 0.0
    %1450 = vmatpush1.msra.mxu0 0.0
    %1451 = vmatprep.subr.mxu0 0.0
    %1452 = vmatpush1.msra.mxu0 0.0
    %1453 = vmatprep.subr.mxu0 0.0
    %1454 = vmatpush1.msra.mxu0 0.0
    %1455 = vmatprep.subr.mxu0 0.0
    %1456 = vmatpush1.msra.mxu0 0.0
    %1457 = vmatprep.subr.mxu0 0.0
    %1458 = vmatpush1.msra.mxu0 0.0
    %1459 = vmatprep.subr.mxu0 0.0
    %1460 = vmatpush1.msra.mxu0 0.0
    %1461 = vmatprep.subr.mxu0 0.0
    %1462 = vmatpush1.msra.mxu0 0.0
    %1463 = vmatprep.subr.mxu0 0.0
    %1464 = vmatpush1.msra.mxu0 0.0
    %1465 = vmatprep.subr.mxu0 0.0
    %1466 = vmatpush1.msra.mxu0 0.0
    %1467 = vmatprep.subr.mxu0 0.0
    %1468 = vmatpush1.msra.mxu0 0.0
    %1469 = vmatprep.subr.mxu0 0.0
    %1470 = vmatpush1.msra.mxu0 0.0
    %1471 = vmatprep.subr.mxu0 0.0
    %1472 = vmatpush1.msra.mxu0 0.0
    %1473 = vmatprep.subr.mxu0 0.0
    %1474 = vmatpush1.msra.mxu0 0.0
    %1475 = vmatprep.subr.mxu0 0.0
    %1476 = vmatpush1.msra.mxu0 0.0
    %1477 = vmatprep.subr.mxu0 0.0
    %1478 = vmatpush1.msra.mxu0 0.0
    %1479 = vmatprep.subr.mxu0 0.0
    %1480 = vmatpush1.msra.mxu0 0.0
    %1481 = vmatprep.subr.mxu0 0.0
    %1482 = vmatpush1.msra.mxu0 0.0
    %1483 = vmatprep.subr.mxu0 0.0
    %1484 = vmatpush1.msra.mxu0 0.0
    %1485 = vmatprep.subr.mxu0 0.0
    %1486 = vmatpush1.msra.mxu0 0.0
    %1487 = vmatprep.subr.mxu0 0.0
    %1488 = vmatpush1.msra.mxu0 0.0
    %1489 = vmatprep.mubr.f32.mxu0 0.0
    %1490 = vmatmul.mubr.f32.gmra.mrb[0].mxu0 %v1420
    %v1491 = vpop.f32.mrb[0].mxu0
    %v1492 = vadd.f32 %v1411, %v1491
    %v1493 = vpop.f32.mrb[0].mxu0
    %1494 = vmatprep.mubr.f32.mxu0 0.0
    %1495 = vmatmul.mubr.f32.gmra.mrb[0].mxu0 %v1423
    %v1496 = vpop.f32.mrb[0].mxu0
    %v1497 = vadd.f32 %v1416, %v1496
    %v1498 = vpop.f32.mrb[0].mxu0
    %1499 = vdwg.mxu0
    %v1501 = vsel %vm300, %v1342, 0
    %v1504 = vsel %vm300, %v1343, 0
    %1506 = vmatprep.subr.mxu0 0.0
    %1507 = vmatpush1.msra.mxu0 %v93
    %1508 = vmatprep.subr.mxu0 0.0
    %1509 = vmatpush1.msra.mxu0 %v94
    %1510 = vmatprep.subr.mxu0 0.0
    %1511 = vmatpush1.msra.mxu0 %v95
    %1512 = vmatprep.subr.mxu0 0.0
    %1513 = vmatpush1.msra.mxu0 %v96
    %1514 = vmatprep.subr.mxu0 0.0
    %1515 = vmatpush1.msra.mxu0 0.0
    %1516 = vmatprep.subr.mxu0 0.0
    %1517 = vmatpush1.msra.mxu0 0.0
    %1518 = vmatprep.subr.mxu0 0.0
    %1519 = vmatpush1.msra.mxu0 0.0
    %1520 = vmatprep.subr.mxu0 0.0
    %1521 = vmatpush1.msra.mxu0 0.0
    %1522 = vmatprep.subr.mxu0 0.0
    %1523 = vmatpush1.msra.mxu0 0.0
    %1524 = vmatprep.subr.mxu0 0.0
    %1525 = vmatpush1.msra.mxu0 0.0
    %1526 = vmatprep.subr.mxu0 0.0
    %1527 = vmatpush1.msra.mxu0 0.0
    %1528 = vmatprep.subr.mxu0 0.0
    %1529 = vmatpush1.msra.mxu0 0.0
    %1530 = vmatprep.subr.mxu0 0.0
    %1531 = vmatpush1.msra.mxu0 0.0
    %1532 = vmatprep.subr.mxu0 0.0
    %1533 = vmatpush1.msra.mxu0 0.0
    %1534 = vmatprep.subr.mxu0 0.0
    %1535 = vmatpush1.msra.mxu0 0.0
    %1536 = vmatprep.subr.mxu0 0.0
    %1537 = vmatpush1.msra.mxu0 0.0
    %1538 = vmatprep.subr.mxu0 0.0
    %1539 = vmatpush1.msra.mxu0 0.0
    %1540 = vmatprep.subr.mxu0 0.0
    %1541 = vmatpush1.msra.mxu0 0.0
    %1542 = vmatprep.subr.mxu0 0.0
    %1543 = vmatpush1.msra.mxu0 0.0
    %1544 = vmatprep.subr.mxu0 0.0
    %1545 = vmatpush1.msra.mxu0 0.0
    %1546 = vmatprep.subr.mxu0 0.0
    %1547 = vmatpush1.msra.mxu0 0.0
    %1548 = vmatprep.subr.mxu0 0.0
    %1549 = vmatpush1.msra.mxu0 0.0
    %1550 = vmatprep.subr.mxu0 0.0
    %1551 = vmatpush1.msra.mxu0 0.0
    %1552 = vmatprep.subr.mxu0 0.0
    %1553 = vmatpush1.msra.mxu0 0.0
    %1554 = vmatprep.subr.mxu0 0.0
    %1555 = vmatpush1.msra.mxu0 0.0
    %1556 = vmatprep.subr.mxu0 0.0
    %1557 = vmatpush1.msra.mxu0 0.0
    %1558 = vmatprep.subr.mxu0 0.0
    %1559 = vmatpush1.msra.mxu0 0.0
    %1560 = vmatprep.subr.mxu0 0.0
    %1561 = vmatpush1.msra.mxu0 0.0
    %1562 = vmatprep.subr.mxu0 0.0
    %1563 = vmatpush1.msra.mxu0 0.0
    %1564 = vmatprep.subr.mxu0 0.0
    %1565 = vmatpush1.msra.mxu0 0.0
    %1566 = vmatprep.subr.mxu0 0.0
    %1567 = vmatpush1.msra.mxu0 0.0
    %1568 = vmatprep.subr.mxu0 0.0
    %1569 = vmatpush1.msra.mxu0 0.0
    %1570 = vmatprep.mubr.f32.mxu0 0.0
    %1571 = vmatmul.mubr.f32.gmra.mrb[0].mxu0 %v1501
    %v1572 = vpop.f32.mrb[0].mxu0
    %v1573 = vadd.f32 0.0, %v1572
    %v1574 = vpop.f32.mrb[0].mxu0
    %1575 = vmatprep.mubr.f32.mxu0 0.0
    %1576 = vmatmul.mubr.f32.gmra.mrb[0].mxu0 %v1504
    %v1577 = vpop.f32.mrb[0].mxu0
    %v1578 = vadd.f32 0.0, %v1577
    %v1579 = vpop.f32.mrb[0].mxu0
    %1580 = vdwg.mxu0
    %v1581 = vadd.f32 %v1492, %v1573
    %v1582 = vadd.f32 %v1497, %v1578
    %1583 = vmatprep.subr.mxu0 0.0
    %1584 = vmatpush1.msra.mxu0 %v1581
    %1585 = vmatprep.subr.mxu0 0.0
    %1586 = vmatpush1.msra.mxu0 %v1582
    %1587 = vmatprep.subr.mxu0 0.0
    %1588 = vmatpush1.msra.mxu0 0.0
    %1589 = vmatprep.subr.mxu0 0.0
    %1590 = vmatpush1.msra.mxu0 0.0
    %1591 = vmatprep.subr.mxu0 0.0
    %1592 = vmatpush1.msra.mxu0 0.0
    %1593 = vmatprep.subr.mxu0 0.0
    %1594 = vmatpush1.msra.mxu0 0.0
    %1595 = vmatprep.subr.mxu0 0.0
    %1596 = vmatpush1.msra.mxu0 0.0
    %1597 = vmatprep.subr.mxu0 0.0
    %1598 = vmatpush1.msra.mxu0 0.0
    %1599 = vmatprep.subr.mxu0 0.0
    %1600 = vmatpush1.msra.mxu0 0.0
    %1601 = vmatprep.subr.mxu0 0.0
    %1602 = vmatpush1.msra.mxu0 0.0
    %1603 = vmatprep.subr.mxu0 0.0
    %1604 = vmatpush1.msra.mxu0 0.0
    %1605 = vmatprep.subr.mxu0 0.0
    %1606 = vmatpush1.msra.mxu0 0.0
    %1607 = vmatprep.subr.mxu0 0.0
    %1608 = vmatpush1.msra.mxu0 0.0
    %1609 = vmatprep.subr.mxu0 0.0
    %1610 = vmatpush1.msra.mxu0 0.0
    %1611 = vmatprep.subr.mxu0 0.0
    %1612 = vmatpush1.msra.mxu0 0.0
    %1613 = vmatprep.subr.mxu0 0.0
    %1614 = vmatpush1.msra.mxu0 0.0
    %1615 = vmatprep.subr.mxu0 0.0
    %1616 = vmatpush1.msra.mxu0 0.0
    %1617 = vmatprep.subr.mxu0 0.0
    %1618 = vmatpush1.msra.mxu0 0.0
    %1619 = vmatprep.subr.mxu0 0.0
    %1620 = vmatpush1.msra.mxu0 0.0
    %1621 = vmatprep.subr.mxu0 0.0
    %1622 = vmatpush1.msra.mxu0 0.0
    %1623 = vmatprep.subr.mxu0 0.0
    %1624 = vmatpush1.msra.mxu0 0.0
    %1625 = vmatprep.subr.mxu0 0.0
    %1626 = vmatpush1.msra.mxu0 0.0
    %1627 = vmatprep.subr.mxu0 0.0
    %1628 = vmatpush1.msra.mxu0 0.0
    %1629 = vmatprep.subr.mxu0 0.0
    %1630 = vmatpush1.msra.mxu0 0.0
    %1631 = vmatprep.subr.mxu0 0.0
    %1632 = vmatpush1.msra.mxu0 0.0
    %1633 = vmatprep.subr.mxu0 0.0
    %1634 = vmatpush1.msra.mxu0 0.0
    %1635 = vmatprep.subr.mxu0 0.0
    %1636 = vmatpush1.msra.mxu0 0.0
    %1637 = vmatprep.subr.mxu0 0.0
    %1638 = vmatpush1.msra.mxu0 0.0
    %1639 = vmatprep.subr.mxu0 0.0
    %1640 = vmatpush1.msra.mxu0 0.0
    %1641 = vmatprep.subr.mxu0 0.0
    %1642 = vmatpush1.msra.mxu0 0.0
    %1643 = vmatprep.subr.mxu0 0.0
    %1644 = vmatpush1.msra.mxu0 0.0
    %1645 = vmatprep.subr.mxu0 0.0
    %1646 = vmatpush1.msra.mxu0 0.0
    %1647 = vmatprep.mubr.f32.mxu0 0.0
    %1648 = vmatmul.mubr.f32.gmra.mrb[0].mxu0 %v134
    %v1649 = vpop.f32.mrb[0].mxu0
    %v1650 = vadd.f32 %v102, %v1649
    %v1651 = vpop.f32.mrb[0].mxu0
    %1652 = vmatprep.mubr.f32.mxu0 0.0
    %1653 = vmatmul.mubr.f32.gmra.mrb[0].mxu0 %v137
    %v1654 = vpop.f32.mrb[0].mxu0
    %v1655 = vadd.f32 %v102, %v1654
    %v1656 = vpop.f32.mrb[0].mxu0
    %1657 = vdwg.mxu0
    %v1658 = vmul.f32 %v1650, 0.01
    %v1659 = vmul.f32 %v1655, 0.01
    %v1660 = vmax.f32 %v1650, %v1658
    %v1661 = vmax.f32 %v1655, %v1659
    %v1663 = vsel %vm779, %v1660, 0
    %v1666 = vsel %vm779, %v1661, 0
    %1668 = vmatprep.subr.mxu0 0.0
    %1669 = vmatpush1.msra.mxu0 %v104
    %1670 = vmatprep.subr.mxu0 0.0
    %1671 = vmatpush1.msra.mxu0 %v105
    %1672 = vmatprep.subr.mxu0 0.0
    %1673 = vmatpush1.msra.mxu0 %v106
    %1674 = vmatprep.subr.mxu0 0.0
    %1675 = vmatpush1.msra.mxu0 %v107
    %1676 = vmatprep.subr.mxu0 0.0
    %1677 = vmatpush1.msra.mxu0 %v108
    %1678 = vmatprep.subr.mxu0 0.0
    %1679 = vmatpush1.msra.mxu0 %v109
    %1680 = vmatprep.subr.mxu0 0.0
    %1681 = vmatpush1.msra.mxu0 %v110
    %1682 = vmatprep.subr.mxu0 0.0
    %1683 = vmatpush1.msra.mxu0 %v111
    %1684 = vmatprep.subr.mxu0 0.0
    %1685 = vmatpush1.msra.mxu0 %v112
    %1686 = vmatprep.subr.mxu0 0.0
    %1687 = vmatpush1.msra.mxu0 0.0
    %1688 = vmatprep.subr.mxu0 0.0
    %1689 = vmatpush1.msra.mxu0 0.0
    %1690 = vmatprep.subr.mxu0 0.0
    %1691 = vmatpush1.msra.mxu0 0.0
    %1692 = vmatprep.subr.mxu0 0.0
    %1693 = vmatpush1.msra.mxu0 0.0
    %1694 = vmatprep.subr.mxu0 0.0
    %1695 = vmatpush1.msra.mxu0 0.0
    %1696 = vmatprep.subr.mxu0 0.0
    %1697 = vmatpush1.msra.mxu0 0.0
    %1698 = vmatprep.subr.mxu0 0.0
    %1699 = vmatpush1.msra.mxu0 0.0
    %1700 = vmatprep.subr.mxu0 0.0
    %1701 = vmatpush1.msra.mxu0 0.0
    %1702 = vmatprep.subr.mxu0 0.0
    %1703 = vmatpush1.msra.mxu0 0.0
    %1704 = vmatprep.subr.mxu0 0.0
    %1705 = vmatpush1.msra.mxu0 0.0
    %1706 = vmatprep.subr.mxu0 0.0
    %1707 = vmatpush1.msra.mxu0 0.0
    %1708 = vmatprep.subr.mxu0 0.0
    %1709 = vmatpush1.msra.mxu0 0.0
    %1710 = vmatprep.subr.mxu0 0.0
    %1711 = vmatpush1.msra.mxu0 0.0
    %1712 = vmatprep.subr.mxu0 0.0
    %1713 = vmatpush1.msra.mxu0 0.0
    %1714 = vmatprep.subr.mxu0 0.0
    %1715 = vmatpush1.msra.mxu0 0.0
    %1716 = vmatprep.subr.mxu0 0.0
    %1717 = vmatpush1.msra.mxu0 0.0
    %1718 = vmatprep.subr.mxu0 0.0
    %1719 = vmatpush1.msra.mxu0 0.0
    %1720 = vmatprep.subr.mxu0 0.0
    %1721 = vmatpush1.msra.mxu0 0.0
    %1722 = vmatprep.subr.mxu0 0.0
    %1723 = vmatpush1.msra.mxu0 0.0
    %1724 = vmatprep.subr.mxu0 0.0
    %1725 = vmatpush1.msra.mxu0 0.0
    %1726 = vmatprep.subr.mxu0 0.0
    %1727 = vmatpush1.msra.mxu0 0.0
    %1728 = vmatprep.subr.mxu0 0.0
    %1729 = vmatpush1.msra.mxu0 0.0
    %1730 = vmatprep.subr.mxu0 0.0
    %1731 = vmatpush1.msra.mxu0 0.0
    %1732 = vmatprep.mubr.f32.mxu0 0.0
    %1733 = vmatmul.mubr.f32.gmra.mrb[0].mxu0 %v1663
    %v1734 = vpop.f32.mrb[0].mxu0
    %v1735 = vadd.f32 0.0, %v1734
    %v1736 = vpop.f32.mrb[0].mxu0
    %1737 = vmatprep.mubr.f32.mxu0 0.0
    %1738 = vmatmul.mubr.f32.gmra.mrb[0].mxu0 %v1666
    %v1739 = vpop.f32.mrb[0].mxu0
    %v1740 = vadd.f32 0.0, %v1739
    %v1741 = vpop.f32.mrb[0].mxu0
    %1742 = vdwg.mxu0
    %1743 = vmatprep.subr.mxu0 0.0
    %1744 = vmatpush1.msra.mxu0 %v1735
    %1745 = vmatprep.subr.mxu0 0.0
    %1746 = vmatpush1.msra.mxu0 %v1740
    %1747 = vmatprep.subr.mxu0 0.0
    %1748 = vmatpush1.msra.mxu0 0.0
    %1749 = vmatprep.subr.mxu0 0.0
    %1750 = vmatpush1.msra.mxu0 0.0
    %1751 = vmatprep.subr.mxu0 0.0
    %1752 = vmatpush1.msra.mxu0 0.0
    %1753 = vmatprep.subr.mxu0 0.0
    %1754 = vmatpush1.msra.mxu0 0.0
    %1755 = vmatprep.subr.mxu0 0.0
    %1756 = vmatpush1.msra.mxu0 0.0
    %1757 = vmatprep.subr.mxu0 0.0
    %1758 = vmatpush1.msra.mxu0 0.0
    %1759 = vmatprep.subr.mxu0 0.0
    %1760 = vmatpush1.msra.mxu0 0.0
    %1761 = vmatprep.subr.mxu0 0.0
    %1762 = vmatpush1.msra.mxu0 0.0
    %1763 = vmatprep.subr.mxu0 0.0
    %1764 = vmatpush1.msra.mxu0 0.0
    %1765 = vmatprep.subr.mxu0 0.0
    %1766 = vmatpush1.msra.mxu0 0.0
    %1767 = vmatprep.subr.mxu0 0.0
    %1768 = vmatpush1.msra.mxu0 0.0
    %1769 = vmatprep.subr.mxu0 0.0
    %1770 = vmatpush1.msra.mxu0 0.0
    %1771 = vmatprep.subr.mxu0 0.0
    %1772 = vmatpush1.msra.mxu0 0.0
    %1773 = vmatprep.subr.mxu0 0.0
    %1774 = vmatpush1.msra.mxu0 0.0
    %1775 = vmatprep.subr.mxu0 0.0
    %1776 = vmatpush1.msra.mxu0 0.0
    %1777 = vmatprep.subr.mxu0 0.0
    %1778 = vmatpush1.msra.mxu0 0.0
    %1779 = vmatprep.subr.mxu0 0.0
    %1780 = vmatpush1.msra.mxu0 0.0
    %1781 = vmatprep.subr.mxu0 0.0
    %1782 = vmatpush1.msra.mxu0 0.0
    %1783 = vmatprep.subr.mxu0 0.0
    %1784 = vmatpush1.msra.mxu0 0.0
    %1785 = vmatprep.subr.mxu0 0.0
    %1786 = vmatpush1.msra.mxu0 0.0
    %1787 = vmatprep.subr.mxu0 0.0
    %1788 = vmatpush1.msra.mxu0 0.0
    %1789 = vmatprep.subr.mxu0 0.0
    %1790 = vmatpush1.msra.mxu0 0.0
    %1791 = vmatprep.subr.mxu0 0.0
    %1792 = vmatpush1.msra.mxu0 0.0
    %1793 = vmatprep.subr.mxu0 0.0
    %1794 = vmatpush1.msra.mxu0 0.0
    %1795 = vmatprep.subr.mxu0 0.0
    %1796 = vmatpush1.msra.mxu0 0.0
    %1797 = vmatprep.subr.mxu0 0.0
    %1798 = vmatpush1.msra.mxu0 0.0
    %1799 = vmatprep.subr.mxu0 0.0
    %1800 = vmatpush1.msra.mxu0 0.0
    %1801 = vmatprep.subr.mxu0 0.0
    %1802 = vmatpush1.msra.mxu0 0.0
    %1803 = vmatprep.subr.mxu0 0.0
    %1804 = vmatpush1.msra.mxu0 0.0
    %1805 = vmatprep.subr.mxu0 0.0
    %1806 = vmatpush1.msra.mxu0 0.0
    %1807 = vmatprep.mubr.f32.mxu0 0.0
    %1808 = vmatmul.mubr.f32.gmra.mrb[0].mxu0 %v134
    %v1809 = vpop.f32.mrb[0].mxu0
    %v1810 = vadd.f32 %v118, %v1809
    %v1811 = vpop.f32.mrb[0].mxu0
    %1812 = vmatprep.mubr.f32.mxu0 0.0
    %1813 = vmatmul.mubr.f32.gmra.mrb[0].mxu0 %v137
    %v1814 = vpop.f32.mrb[0].mxu0
    %v1815 = vadd.f32 %v118, %v1814
    %v1816 = vpop.f32.mrb[0].mxu0
    %1817 = vdwg.mxu0
    %1818 = vmatprep.subr.mxu0 0.0
    %1819 = vmatpush1.msra.mxu0 %v129
    %1820 = vmatprep.subr.mxu0 0.0
    %1821 = vmatpush1.msra.mxu0 0.0
    %1822 = vmatprep.subr.mxu0 0.0
    %1823 = vmatpush1.msra.mxu0 0.0
    %1824 = vmatprep.subr.mxu0 0.0
    %1825 = vmatpush1.msra.mxu0 0.0
    %1826 = vmatprep.subr.mxu0 0.0
    %1827 = vmatpush1.msra.mxu0 0.0
    %1828 = vmatprep.subr.mxu0 0.0
    %1829 = vmatpush1.msra.mxu0 0.0
    %1830 = vmatprep.subr.mxu0 0.0
    %1831 = vmatpush1.msra.mxu0 0.0
    %1832 = vmatprep.subr.mxu0 0.0
    %1833 = vmatpush1.msra.mxu0 0.0
    %1834 = vmatprep.subr.mxu0 0.0
    %1835 = vmatpush1.msra.mxu0 0.0
    %1836 = vmatprep.subr.mxu0 0.0
    %1837 = vmatpush1.msra.mxu0 0.0
    %1838 = vmatprep.subr.mxu0 0.0
    %1839 = vmatpush1.msra.mxu0 0.0
    %1840 = vmatprep.subr.mxu0 0.0
    %1841 = vmatpush1.msra.mxu0 0.0
    %1842 = vmatprep.subr.mxu0 0.0
    %1843 = vmatpush1.msra.mxu0 0.0
    %1844 = vmatprep.subr.mxu0 0.0
    %1845 = vmatpush1.msra.mxu0 0.0
    %1846 = vmatprep.subr.mxu0 0.0
    %1847 = vmatpush1.msra.mxu0 0.0
    %1848 = vmatprep.subr.mxu0 0.0
    %1849 = vmatpush1.msra.mxu0 0.0
    %1850 = vmatprep.subr.mxu0 0.0
    %1851 = vmatpush1.msra.mxu0 0.0
    %1852 = vmatprep.subr.mxu0 0.0
    %1853 = vmatpush1.msra.mxu0 0.0
    %1854 = vmatprep.subr.mxu0 0.0
    %1855 = vmatpush1.msra.mxu0 0.0
    %1856 = vmatprep.subr.mxu0 0.0
    %1857 = vmatpush1.msra.mxu0 0.0
    %1858 = vmatprep.subr.mxu0 0.0
    %1859 = vmatpush1.msra.mxu0 0.0
    %1860 = vmatprep.subr.mxu0 0.0
    %1861 = vmatpush1.msra.mxu0 0.0
    %1862 = vmatprep.subr.mxu0 0.0
    %1863 = vmatpush1.msra.mxu0 0.0
    %1864 = vmatprep.subr.mxu0 0.0
    %1865 = vmatpush1.msra.mxu0 0.0
    %1866 = vmatprep.subr.mxu0 0.0
    %1867 = vmatpush1.msra.mxu0 0.0
    %1868 = vmatprep.subr.mxu0 0.0
    %1869 = vmatpush1.msra.mxu0 0.0
    %1870 = vmatprep.subr.mxu0 0.0
    %1871 = vmatpush1.msra.mxu0 0.0
    %1872 = vmatprep.subr.mxu0 0.0
    %1873 = vmatpush1.msra.mxu0 0.0
    %1874 = vmatprep.subr.mxu0 0.0
    %1875 = vmatpush1.msra.mxu0 0.0
    %1876 = vmatprep.subr.mxu0 0.0
    %1877 = vmatpush1.msra.mxu0 0.0
    %1878 = vmatprep.subr.mxu0 0.0
    %1879 = vmatpush1.msra.mxu0 0.0
    %1880 = vmatprep.subr.mxu0 0.0
    %1881 = vmatpush1.msra.mxu0 0.0
    %1882 = vmatprep.mubr.f32.mxu0 0.0
    %1883 = vmatmul.mubr.f32.gmra.mrb[0].mxu0 %v1420
    %v1884 = vpop.f32.mrb[0].mxu0
    %v1885 = vadd.f32 0.0, %v1884
    %v1886 = vpop.f32.mrb[0].mxu0
    %1887 = vmatprep.mubr.f32.mxu0 0.0
    %1888 = vmatmul.mubr.f32.gmra.mrb[0].mxu0 %v1423
    %v1889 = vpop.f32.mrb[0].mxu0
    %v1890 = vadd.f32 0.0, %v1889
    %v1891 = vpop.f32.mrb[0].mxu0
    %1892 = vdwg.mxu0
    %1894 = vset.pattern.permute.xlu0 0
    %1895 = vperm.xlu0 %1894, %v1810
    %v1896 = vpop.permute.xlu0 %1895
    %1899 = vset.pattern.permute.xlu0 0
    %1900 = vperm.xlu0 %1899, %v1815
    %v1901 = vpop.permute.xlu0 %1900
    %v1903 = vsel %vm1011, %v1896, %v1885
    %v1904 = vsel %vm1011, %v1901, %v1890
    %1905 = vmatprep.subr.mxu0 0.0
    %1906 = vmatpush1.msra.mxu0 %v1903
    %1907 = vmatprep.subr.mxu0 0.0
    %1908 = vmatpush1.msra.mxu0 %v1904
    %1909 = vmatprep.subr.mxu0 0.0
    %1910 = vmatpush1.msra.mxu0 0.0
    %1911 = vmatprep.subr.mxu0 0.0
    %1912 = vmatpush1.msra.mxu0 0.0
    %1913 = vmatprep.subr.mxu0 0.0
    %1914 = vmatpush1.msra.mxu0 0.0
    %1915 = vmatprep.subr.mxu0 0.0
    %1916 = vmatpush1.msra.mxu0 0.0
    %1917 = vmatprep.subr.mxu0 0.0
    %1918 = vmatpush1.msra.mxu0 0.0
    %1919 = vmatprep.subr.mxu0 0.0
    %1920 = vmatpush1.msra.mxu0 0.0
    %1921 = vmatprep.subr.mxu0 0.0
    %1922 = vmatpush1.msra.mxu0 0.0
    %1923 = vmatprep.subr.mxu0 0.0
    %1924 = vmatpush1.msra.mxu0 0.0
    %1925 = vmatprep.subr.mxu0 0.0
    %1926 = vmatpush1.msra.mxu0 0.0
    %1927 = vmatprep.subr.mxu0 0.0
    %1928 = vmatpush1.msra.mxu0 0.0
    %1929 = vmatprep.subr.mxu0 0.0
    %1930 = vmatpush1.msra.mxu0 0.0
    %1931 = vmatprep.subr.mxu0 0.0
    %1932 = vmatpush1.msra.mxu0 0.0
    %1933 = vmatprep.subr.mxu0 0.0
    %1934 = vmatpush1.msra.mxu0 0.0
    %1935 = vmatprep.subr.mxu0 0.0
    %1936 = vmatpush1.msra.mxu0 0.0
    %1937 = vmatprep.subr.mxu0 0.0
    %1938 = vmatpush1.msra.mxu0 0.0
    %1939 = vmatprep.subr.mxu0 0.0
    %1940 = vmatpush1.msra.mxu0 0.0
    %1941 = vmatprep.subr.mxu0 0.0
    %1942 = vmatpush1.msra.mxu0 0.0
    %1943 = vmatprep.subr.mxu0 0.0
    %1944 = vmatpush1.msra.mxu0 0.0
    %1945 = vmatprep.subr.mxu0 0.0
    %1946 = vmatpush1.msra.mxu0 0.0
    %1947 = vmatprep.subr.mxu0 0.0
    %1948 = vmatpush1.msra.mxu0 0.0
    %1949 = vmatprep.subr.mxu0 0.0
    %1950 = vmatpush1.msra.mxu0 0.0
    %1951 = vmatprep.subr.mxu0 0.0
    %1952 = vmatpush1.msra.mxu0 0.0
    %1953 = vmatprep.subr.mxu0 0.0
    %1954 = vmatpush1.msra.mxu0 0.0
    %1955 = vmatprep.subr.mxu0 0.0
    %1956 = vmatpush1.msra.mxu0 0.0
    %1957 = vmatprep.subr.mxu0 0.0
    %1958 = vmatpush1.msra.mxu0 0.0
    %1959 = vmatprep.subr.mxu0 0.0
    %1960 = vmatpush1.msra.mxu0 0.0
    %1961 = vmatprep.subr.mxu0 0.0
    %1962 = vmatpush1.msra.mxu0 0.0
    %1963 = vmatprep.subr.mxu0 0.0
    %1964 = vmatpush1.msra.mxu0 0.0
    %1965 = vmatprep.subr.mxu0 0.0
    %1966 = vmatpush1.msra.mxu0 0.0
    %1967 = vmatprep.subr.mxu0 0.0
    %1968 = vmatpush1.msra.mxu0 0.0
    %1969 = vmatprep.mubr.f32.mxu0 0.0
    %1970 = vmatmul.mubr.f32.gmra.mrb[0].mxu0 %v134
    %v1971 = vpop.f32.mrb[0].mxu0
    %v1972 = vadd.f32 0.0, %v1971
    %v1973 = vpop.f32.mrb[0].mxu0
    %1974 = vmatprep.mubr.f32.mxu0 0.0
    %1975 = vmatmul.mubr.f32.gmra.mrb[0].mxu0 %v137
    %v1976 = vpop.f32.mrb[0].mxu0
    %v1977 = vadd.f32 0.0, %v1976
    %v1978 = vpop.f32.mrb[0].mxu0
    %1979 = vdwg.mxu0
    %v1981 = vsel %vm214, %v1972, 0
    %v1984 = vsel %vm214, %v1977, 0
    %1986 = vmatprep.subr.mxu0 0.0
    %1987 = vmatpush1.msra.mxu0 %v69
    %1988 = vmatprep.subr.mxu0 0.0
    %1989 = vmatpush1.msra.mxu0 0.0
    %1990 = vmatprep.subr.mxu0 0.0
    %1991 = vmatpush1.msra.mxu0 0.0
    %1992 = vmatprep.subr.mxu0 0.0
    %1993 = vmatpush1.msra.mxu0 0.0
    %1994 = vmatprep.subr.mxu0 0.0
    %1995 = vmatpush1.msra.mxu0 0.0
    %1996 = vmatprep.subr.mxu0 0.0
    %1997 = vmatpush1.msra.mxu0 0.0
    %1998 = vmatprep.subr.mxu0 0.0
    %1999 = vmatpush1.msra.mxu0 0.0
    %2000 = vmatprep.subr.mxu0 0.0
    %2001 = vmatpush1.msra.mxu0 0.0
    %2002 = vmatprep.subr.mxu0 0.0
    %2003 = vmatpush1.msra.mxu0 0.0
    %2004 = vmatprep.subr.mxu0 0.0
    %2005 = vmatpush1.msra.mxu0 0.0
    %2006 = vmatprep.subr.mxu0 0.0
    %2007 = vmatpush1.msra.mxu0 0.0
    %2008 = vmatprep.subr.mxu0 0.0
    %2009 = vmatpush1.msra.mxu0 0.0
    %2010 = vmatprep.subr.mxu0 0.0
    %2011 = vmatpush1.msra.mxu0 0.0
    %2012 = vmatprep.subr.mxu0 0.0
    %2013 = vmatpush1.msra.mxu0 0.0
    %2014 = vmatprep.subr.mxu0 0.0
    %2015 = vmatpush1.msra.mxu0 0.0
    %2016 = vmatprep.subr.mxu0 0.0
    %2017 = vmatpush1.msra.mxu0 0.0
    %2018 = vmatprep.subr.mxu0 0.0
    %2019 = vmatpush1.msra.mxu0 0.0
    %2020 = vmatprep.subr.mxu0 0.0
    %2021 = vmatpush1.msra.mxu0 0.0
    %2022 = vmatprep.subr.mxu0 0.0
    %2023 = vmatpush1.msra.mxu0 0.0
    %2024 = vmatprep.subr.mxu0 0.0
    %2025 = vmatpush1.msra.mxu0 0.0
    %2026 = vmatprep.subr.mxu0 0.0
    %2027 = vmatpush1.msra.mxu0 0.0
    %2028 = vmatprep.subr.mxu0 0.0
    %2029 = vmatpush1.msra.mxu0 0.0
    %2030 = vmatprep.subr.mxu0 0.0
    %2031 = vmatpush1.msra.mxu0 0.0
    %2032 = vmatprep.subr.mxu0 0.0
    %2033 = vmatpush1.msra.mxu0 0.0
    %2034 = vmatprep.subr.mxu0 0.0
    %2035 = vmatpush1.msra.mxu0 0.0
    %2036 = vmatprep.subr.mxu0 0.0
    %2037 = vmatpush1.msra.mxu0 0.0
    %2038 = vmatprep.subr.mxu0 0.0
    %2039 = vmatpush1.msra.mxu0 0.0
    %2040 = vmatprep.subr.mxu0 0.0
    %2041 = vmatpush1.msra.mxu0 0.0
    %2042 = vmatprep.subr.mxu0 0.0
    %2043 = vmatpush1.msra.mxu0 0.0
    %2044 = vmatprep.subr.mxu0 0.0
    %2045 = vmatpush1.msra.mxu0 0.0
    %2046 = vmatprep.subr.mxu0 0.0
    %2047 = vmatpush1.msra.mxu0 0.0
    %2048 = vmatprep.subr.mxu0 0.0
    %2049 = vmatpush1.msra.mxu0 0.0
    %2050 = vmatprep.mubr.f32.mxu0 0.0
    %2051 = vmatmul.mubr.f32.gmra.mrb[0].mxu0 %v1981
    %v2052 = vpop.f32.mrb[0].mxu0
    %v2053 = vadd.f32 %v75, %v2052
    %v2054 = vpop.f32.mrb[0].mxu0
    %2055 = vmatprep.mubr.f32.mxu0 0.0
    %2056 = vmatmul.mubr.f32.gmra.mrb[0].mxu0 %v1984
    %v2057 = vpop.f32.mrb[0].mxu0
    %v2058 = vadd.f32 %v75, %v2057
    %v2059 = vpop.f32.mrb[0].mxu0
    %2060 = vdwg.mxu0
    %v2061 = vmul.f32 %v2053, 0.01
    %v2062 = vmul.f32 %v2058, 0.01
    %v2063 = vmax.f32 %v2053, %v2061
    %v2064 = vmax.f32 %v2058, %v2062
    %v2066 = vsel %vm300, %v2063, 0
    %v2069 = vsel %vm300, %v2064, 0
    %2071 = vmatprep.subr.mxu0 0.0
    %2072 = vmatpush1.msra.mxu0 %v77
    %2073 = vmatprep.subr.mxu0 0.0
    %2074 = vmatpush1.msra.mxu0 %v78
    %2075 = vmatprep.subr.mxu0 0.0
    %2076 = vmatpush1.msra.mxu0 %v79
    %2077 = vmatprep.subr.mxu0 0.0
    %2078 = vmatpush1.msra.mxu0 %v80
    %2079 = vmatprep.subr.mxu0 0.0
    %2080 = vmatpush1.msra.mxu0 0.0
    %2081 = vmatprep.subr.mxu0 0.0
    %2082 = vmatpush1.msra.mxu0 0.0
    %2083 = vmatprep.subr.mxu0 0.0
    %2084 = vmatpush1.msra.mxu0 0.0
    %2085 = vmatprep.subr.mxu0 0.0
    %2086 = vmatpush1.msra.mxu0 0.0
    %2087 = vmatprep.subr.mxu0 0.0
    %2088 = vmatpush1.msra.mxu0 0.0
    %2089 = vmatprep.subr.mxu0 0.0
    %2090 = vmatpush1.msra.mxu0 0.0
    %2091 = vmatprep.subr.mxu0 0.0
    %2092 = vmatpush1.msra.mxu0 0.0
    %2093 = vmatprep.subr.mxu0 0.0
    %2094 = vmatpush1.msra.mxu0 0.0
    %2095 = vmatprep.subr.mxu0 0.0
    %2096 = vmatpush1.msra.mxu0 0.0
    %2097 = vmatprep.subr.mxu0 0.0
    %2098 = vmatpush1.msra.mxu0 0.0
    %2099 = vmatprep.subr.mxu0 0.0
    %2100 = vmatpush1.msra.mxu0 0.0
    %2101 = vmatprep.subr.mxu0 0.0
    %2102 = vmatpush1.msra.mxu0 0.0
    %2103 = vmatprep.subr.mxu0 0.0
    %2104 = vmatpush1.msra.mxu0 0.0
    %2105 = vmatprep.subr.mxu0 0.0
    %2106 = vmatpush1.msra.mxu0 0.0
    %2107 = vmatprep.subr.mxu0 0.0
    %2108 = vmatpush1.msra.mxu0 0.0
    %2109 = vmatprep.subr.mxu0 0.0
    %2110 = vmatpush1.msra.mxu0 0.0
    %2111 = vmatprep.subr.mxu0 0.0
    %2112 = vmatpush1.msra.mxu0 0.0
    %2113 = vmatprep.subr.mxu0 0.0
    %2114 = vmatpush1.msra.mxu0 0.0
    %2115 = vmatprep.subr.mxu0 0.0
    %2116 = vmatpush1.msra.mxu0 0.0
    %2117 = vmatprep.subr.mxu0 0.0
    %2118 = vmatpush1.msra.mxu0 0.0
    %2119 = vmatprep.subr.mxu0 0.0
    %2120 = vmatpush1.msra.mxu0 0.0
    %2121 = vmatprep.subr.mxu0 0.0
    %2122 = vmatpush1.msra.mxu0 0.0
    %2123 = vmatprep.subr.mxu0 0.0
    %2124 = vmatpush1.msra.mxu0 0.0
    %2125 = vmatprep.subr.mxu0 0.0
    %2126 = vmatpush1.msra.mxu0 0.0
    %2127 = vmatprep.subr.mxu0 0.0
    %2128 = vmatpush1.msra.mxu0 0.0
    %2129 = vmatprep.subr.mxu0 0.0
    %2130 = vmatpush1.msra.mxu0 0.0
    %2131 = vmatprep.subr.mxu0 0.0
    %2132 = vmatpush1.msra.mxu0 0.0
    %2133 = vmatprep.subr.mxu0 0.0
    %2134 = vmatpush1.msra.mxu0 0.0
    %2135 = vmatprep.mubr.f32.mxu0 0.0
    %2136 = vmatmul.mubr.f32.gmra.mrb[0].mxu0 %v2066
    %v2137 = vpop.f32.mrb[0].mxu0
    %v2138 = vadd.f32 0.0, %v2137
    %v2139 = vpop.f32.mrb[0].mxu0
    %2140 = vmatprep.mubr.f32.mxu0 0.0
    %2141 = vmatmul.mubr.f32.gmra.mrb[0].mxu0 %v2069
    %v2142 = vpop.f32.mrb[0].mxu0
    %v2143 = vadd.f32 0.0, %v2142
    %v2144 = vpop.f32.mrb[0].mxu0
    %2145 = vdwg.mxu0
    %2146 = vmatprep.subr.mxu0 0.0
    %2147 = vmatpush1.msra.mxu0 %v2138
    %2148 = vmatprep.subr.mxu0 0.0
    %2149 = vmatpush1.msra.mxu0 %v2143
    %2150 = vmatprep.subr.mxu0 0.0
    %2151 = vmatpush1.msra.mxu0 0.0
    %2152 = vmatprep.subr.mxu0 0.0
    %2153 = vmatpush1.msra.mxu0 0.0
    %2154 = vmatprep.subr.mxu0 0.0
    %2155 = vmatpush1.msra.mxu0 0.0
    %2156 = vmatprep.subr.mxu0 0.0
    %2157 = vmatpush1.msra.mxu0 0.0
    %2158 = vmatprep.subr.mxu0 0.0
    %2159 = vmatpush1.msra.mxu0 0.0
    %2160 = vmatprep.subr.mxu0 0.0
    %2161 = vmatpush1.msra.mxu0 0.0
    %2162 = vmatprep.subr.mxu0 0.0
    %2163 = vmatpush1.msra.mxu0 0.0
    %2164 = vmatprep.subr.mxu0 0.0
    %2165 = vmatpush1.msra.mxu0 0.0
    %2166 = vmatprep.subr.mxu0 0.0
    %2167 = vmatpush1.msra.mxu0 0.0
    %2168 = vmatprep.subr.mxu0 0.0
    %2169 = vmatpush1.msra.mxu0 0.0
    %2170 = vmatprep.subr.mxu0 0.0
    %2171 = vmatpush1.msra.mxu0 0.0
    %2172 = vmatprep.subr.mxu0 0.0
    %2173 = vmatpush1.msra.mxu0 0.0
    %2174 = vmatprep.subr.mxu0 0.0
    %2175 = vmatpush1.msra.mxu0 0.0
    %2176 = vmatprep.subr.mxu0 0.0
    %2177 = vmatpush1.msra.mxu0 0.0
    %2178 = vmatprep.subr.mxu0 0.0
    %2179 = vmatpush1.msra.mxu0 0.0
    %2180 = vmatprep.subr.mxu0 0.0
    %2181 = vmatpush1.msra.mxu0 0.0
    %2182 = vmatprep.subr.mxu0 0.0
    %2183 = vmatpush1.msra.mxu0 0.0
    %2184 = vmatprep.subr.mxu0 0.0
    %2185 = vmatpush1.msra.mxu0 0.0
    %2186 = vmatprep.subr.mxu0 0.0
    %2187 = vmatpush1.msra.mxu0 0.0
    %2188 = vmatprep.subr.mxu0 0.0
    %2189 = vmatpush1.msra.mxu0 0.0
    %2190 = vmatprep.subr.mxu0 0.0
    %2191 = vmatpush1.msra.mxu0 0.0
    %2192 = vmatprep.subr.mxu0 0.0
    %2193 = vmatpush1.msra.mxu0 0.0
    %2194 = vmatprep.subr.mxu0 0.0
    %2195 = vmatpush1.msra.mxu0 0.0
    %2196 = vmatprep.subr.mxu0 0.0
    %2197 = vmatpush1.msra.mxu0 0.0
    %2198 = vmatprep.subr.mxu0 0.0
    %2199 = vmatpush1.msra.mxu0 0.0
    %2200 = vmatprep.subr.mxu0 0.0
    %2201 = vmatpush1.msra.mxu0 0.0
    %2202 = vmatprep.subr.mxu0 0.0
    %2203 = vmatpush1.msra.mxu0 0.0
    %2204 = vmatprep.subr.mxu0 0.0
    %2205 = vmatpush1.msra.mxu0 0.0
    %2206 = vmatprep.subr.mxu0 0.0
    %2207 = vmatpush1.msra.mxu0 0.0
    %2208 = vmatprep.subr.mxu0 0.0
    %2209 = vmatpush1.msra.mxu0 0.0
    %2210 = vmatprep.mubr.f32.mxu0 0.0
    %2211 = vmatmul.mubr.f32.gmra.mrb[0].mxu0 %v134
    %v2212 = vpop.f32.mrb[0].mxu0
    %v2213 = vadd.f32 %v86, %v2212
    %v2214 = vpop.f32.mrb[0].mxu0
    %2215 = vmatprep.mubr.f32.mxu0 0.0
    %2216 = vmatmul.mubr.f32.gmra.mrb[0].mxu0 %v137
    %v2217 = vpop.f32.mrb[0].mxu0
    %v2218 = vadd.f32 %v86, %v2217
    %v2219 = vpop.f32.mrb[0].mxu0
    %2220 = vdwg.mxu0
    %v2221 = vmul.f32 %v2213, 0.01
    %v2222 = vmul.f32 %v2218, 0.01
    %v2223 = vmax.f32 %v2213, %v2221
    %v2224 = vmax.f32 %v2218, %v2222
    %2225 = vmatprep.subr.mxu0 0.0
    %2226 = vmatpush1.msra.mxu0 %v89
    %2227 = vmatprep.subr.mxu0 0.0
    %2228 = vmatpush1.msra.mxu0 %v90
    %2229 = vmatprep.subr.mxu0 0.0
    %2230 = vmatpush1.msra.mxu0 %v91
    %2231 = vmatprep.subr.mxu0 0.0
    %2232 = vmatpush1.msra.mxu0 %v92
    %2233 = vmatprep.subr.mxu0 0.0
    %2234 = vmatpush1.msra.mxu0 0.0
    %2235 = vmatprep.subr.mxu0 0.0
    %2236 = vmatpush1.msra.mxu0 0.0
    %2237 = vmatprep.subr.mxu0 0.0
    %2238 = vmatpush1.msra.mxu0 0.0
    %2239 = vmatprep.subr.mxu0 0.0
    %2240 = vmatpush1.msra.mxu0 0.0
    %2241 = vmatprep.subr.mxu0 0.0
    %2242 = vmatpush1.msra.mxu0 0.0
    %2243 = vmatprep.subr.mxu0 0.0
    %2244 = vmatpush1.msra.mxu0 0.0
    %2245 = vmatprep.subr.mxu0 0.0
    %2246 = vmatpush1.msra.mxu0 0.0
    %2247 = vmatprep.subr.mxu0 0.0
    %2248 = vmatpush1.msra.mxu0 0.0
    %2249 = vmatprep.subr.mxu0 0.0
    %2250 = vmatpush1.msra.mxu0 0.0
    %2251 = vmatprep.subr.mxu0 0.0
    %2252 = vmatpush1.msra.mxu0 0.0
    %2253 = vmatprep.subr.mxu0 0.0
    %2254 = vmatpush1.msra.mxu0 0.0
    %2255 = vmatprep.subr.mxu0 0.0
    %2256 = vmatpush1.msra.mxu0 0.0
    %2257 = vmatprep.subr.mxu0 0.0
    %2258 = vmatpush1.msra.mxu0 0.0
    %2259 = vmatprep.subr.mxu0 0.0
    %2260 = vmatpush1.msra.mxu0 0.0
    %2261 = vmatprep.subr.mxu0 0.0
    %2262 = vmatpush1.msra.mxu0 0.0
    %2263 = vmatprep.subr.mxu0 0.0
    %2264 = vmatpush1.msra.mxu0 0.0
    %2265 = vmatprep.subr.mxu0 0.0
    %2266 = vmatpush1.msra.mxu0 0.0
    %2267 = vmatprep.subr.mxu0 0.0
    %2268 = vmatpush1.msra.mxu0 0.0
    %2269 = vmatprep.subr.mxu0 0.0
    %2270 = vmatpush1.msra.mxu0 0.0
    %2271 = vmatprep.subr.mxu0 0.0
    %2272 = vmatpush1.msra.mxu0 0.0
    %2273 = vmatprep.subr.mxu0 0.0
    %2274 = vmatpush1.msra.mxu0 0.0
    %2275 = vmatprep.subr.mxu0 0.0
    %2276 = vmatpush1.msra.mxu0 0.0
    %2277 = vmatprep.subr.mxu0 0.0
    %2278 = vmatpush1.msra.mxu0 0.0
    %2279 = vmatprep.subr.mxu0 0.0
    %2280 = vmatpush1.msra.mxu0 0.0
    %2281 = vmatprep.subr.mxu0 0.0
    %2282 = vmatpush1.msra.mxu0 0.0
    %2283 = vmatprep.subr.mxu0 0.0
    %2284 = vmatpush1.msra.mxu0 0.0
    %2285 = vmatprep.subr.mxu0 0.0
    %2286 = vmatpush1.msra.mxu0 0.0
    %2287 = vmatprep.subr.mxu0 0.0
    %2288 = vmatpush1.msra.mxu0 0.0
    %2289 = vmatprep.mubr.f32.mxu0 0.0
    %2290 = vmatmul.mubr.f32.gmra.mrb[0].mxu0 %v2066
    %v2291 = vpop.f32.mrb[0].mxu0
    %v2292 = vadd.f32 0.0, %v2291
    %v2293 = vpop.f32.mrb[0].mxu0
    %2294 = vmatprep.mubr.f32.mxu0 0.0
    %2295 = vmatmul.mubr.f32.gmra.mrb[0].mxu0 %v2069
    %v2296 = vpop.f32.mrb[0].mxu0
    %v2297 = vadd.f32 0.0, %v2296
    %v2298 = vpop.f32.mrb[0].mxu0
    %2299 = vdwg.mxu0
    %v2301 = vsel %vm214, %v1903, 0
    %v2304 = vsel %vm214, %v1904, 0
    %2306 = vmatprep.subr.mxu0 0.0
    %2307 = vmatpush1.msra.mxu0 %v88
    %2308 = vmatprep.subr.mxu0 0.0
    %2309 = vmatpush1.msra.mxu0 0.0
    %2310 = vmatprep.subr.mxu0 0.0
    %2311 = vmatpush1.msra.mxu0 0.0
    %2312 = vmatprep.subr.mxu0 0.0
    %2313 = vmatpush1.msra.mxu0 0.0
    %2314 = vmatprep.subr.mxu0 0.0
    %2315 = vmatpush1.msra.mxu0 0.0
    %2316 = vmatprep.subr.mxu0 0.0
    %2317 = vmatpush1.msra.mxu0 0.0
    %2318 = vmatprep.subr.mxu0 0.0
    %2319 = vmatpush1.msra.mxu0 0.0
    %2320 = vmatprep.subr.mxu0 0.0
    %2321 = vmatpush1.msra.mxu0 0.0
    %2322 = vmatprep.subr.mxu0 0.0
    %2323 = vmatpush1.msra.mxu0 0.0
    %2324 = vmatprep.subr.mxu0 0.0
    %2325 = vmatpush1.msra.mxu0 0.0
    %2326 = vmatprep.subr.mxu0 0.0
    %2327 = vmatpush1.msra.mxu0 0.0
    %2328 = vmatprep.subr.mxu0 0.0
    %2329 = vmatpush1.msra.mxu0 0.0
    %2330 = vmatprep.subr.mxu0 0.0
    %2331 = vmatpush1.msra.mxu0 0.0
    %2332 = vmatprep.subr.mxu0 0.0
    %2333 = vmatpush1.msra.mxu0 0.0
    %2334 = vmatprep.subr.mxu0 0.0
    %2335 = vmatpush1.msra.mxu0 0.0
    %2336 = vmatprep.subr.mxu0 0.0
    %2337 = vmatpush1.msra.mxu0 0.0
    %2338 = vmatprep.subr.mxu0 0.0
    %2339 = vmatpush1.msra.mxu0 0.0
    %2340 = vmatprep.subr.mxu0 0.0
    %2341 = vmatpush1.msra.mxu0 0.0
    %2342 = vmatprep.subr.mxu0 0.0
    %2343 = vmatpush1.msra.mxu0 0.0
    %2344 = vmatprep.subr.mxu0 0.0
    %2345 = vmatpush1.msra.mxu0 0.0
    %2346 = vmatprep.subr.mxu0 0.0
    %2347 = vmatpush1.msra.mxu0 0.0
    %2348 = vmatprep.subr.mxu0 0.0
    %2349 = vmatpush1.msra.mxu0 0.0
    %2350 = vmatprep.subr.mxu0 0.0
    %2351 = vmatpush1.msra.mxu0 0.0
    %2352 = vmatprep.subr.mxu0 0.0
    %2353 = vmatpush1.msra.mxu0 0.0
    %2354 = vmatprep.subr.mxu0 0.0
    %2355 = vmatpush1.msra.mxu0 0.0
    %2356 = vmatprep.subr.mxu0 0.0
    %2357 = vmatpush1.msra.mxu0 0.0
    %2358 = vmatprep.subr.mxu0 0.0
    %2359 = vmatpush1.msra.mxu0 0.0
    %2360 = vmatprep.subr.mxu0 0.0
    %2361 = vmatpush1.msra.mxu0 0.0
    %2362 = vmatprep.subr.mxu0 0.0
    %2363 = vmatpush1.msra.mxu0 0.0
    %2364 = vmatprep.subr.mxu0 0.0
    %2365 = vmatpush1.msra.mxu0 0.0
    %2366 = vmatprep.subr.mxu0 0.0
    %2367 = vmatpush1.msra.mxu0 0.0
    %2368 = vmatprep.subr.mxu0 0.0
    %2369 = vmatpush1.msra.mxu0 0.0
    %2370 = vmatprep.mubr.f32.mxu0 0.0
    %2371 = vmatmul.mubr.f32.gmra.mrb[0].mxu0 %v2301
    %v2372 = vpop.f32.mrb[0].mxu0
    %v2373 = vadd.f32 %v2292, %v2372
    %v2374 = vpop.f32.mrb[0].mxu0
    %2375 = vmatprep.mubr.f32.mxu0 0.0
    %2376 = vmatmul.mubr.f32.gmra.mrb[0].mxu0 %v2304
    %v2377 = vpop.f32.mrb[0].mxu0
    %v2378 = vadd.f32 %v2297, %v2377
    %v2379 = vpop.f32.mrb[0].mxu0
    %2380 = vdwg.mxu0
    %v2382 = vsel %vm300, %v2223, 0
    %v2385 = vsel %vm300, %v2224, 0
    %2387 = vmatprep.subr.mxu0 0.0
    %2388 = vmatpush1.msra.mxu0 %v93
    %2389 = vmatprep.subr.mxu0 0.0
    %2390 = vmatpush1.msra.mxu0 %v94
    %2391 = vmatprep.subr.mxu0 0.0
    %2392 = vmatpush1.msra.mxu0 %v95
    %2393 = vmatprep.subr.mxu0 0.0
    %2394 = vmatpush1.msra.mxu0 %v96
    %2395 = vmatprep.subr.mxu0 0.0
    %2396 = vmatpush1.msra.mxu0 0.0
    %2397 = vmatprep.subr.mxu0 0.0
    %2398 = vmatpush1.msra.mxu0 0.0
    %2399 = vmatprep.subr.mxu0 0.0
    %2400 = vmatpush1.msra.mxu0 0.0
    %2401 = vmatprep.subr.mxu0 0.0
    %2402 = vmatpush1.msra.mxu0 0.0
    %2403 = vmatprep.subr.mxu0 0.0
    %2404 = vmatpush1.msra.mxu0 0.0
    %2405 = vmatprep.subr.mxu0 0.0
    %2406 = vmatpush1.msra.mxu0 0.0
    %2407 = vmatprep.subr.mxu0 0.0
    %2408 = vmatpush1.msra.mxu0 0.0
    %2409 = vmatprep.subr.mxu0 0.0
    %2410 = vmatpush1.msra.mxu0 0.0
    %2411 = vmatprep.subr.mxu0 0.0
    %2412 = vmatpush1.msra.mxu0 0.0
    %2413 = vmatprep.subr.mxu0 0.0
    %2414 = vmatpush1.msra.mxu0 0.0
    %2415 = vmatprep.subr.mxu0 0.0
    %2416 = vmatpush1.msra.mxu0 0.0
    %2417 = vmatprep.subr.mxu0 0.0
    %2418 = vmatpush1.msra.mxu0 0.0
    %2419 = vmatprep.subr.mxu0 0.0
    %2420 = vmatpush1.msra.mxu0 0.0
    %2421 = vmatprep.subr.mxu0 0.0
    %2422 = vmatpush1.msra.mxu0 0.0
    %2423 = vmatprep.subr.mxu0 0.0
    %2424 = vmatpush1.msra.mxu0 0.0
    %2425 = vmatprep.subr.mxu0 0.0
    %2426 = vmatpush1.msra.mxu0 0.0
    %2427 = vmatprep.subr.mxu0 0.0
    %2428 = vmatpush1.msra.mxu0 0.0
    %2429 = vmatprep.subr.mxu0 0.0
    %2430 = vmatpush1.msra.mxu0 0.0
    %2431 = vmatprep.subr.mxu0 0.0
    %2432 = vmatpush1.msra.mxu0 0.0
    %2433 = vmatprep.subr.mxu0 0.0
    %2434 = vmatpush1.msra.mxu0 0.0
    %2435 = vmatprep.subr.mxu0 0.0
    %2436 = vmatpush1.msra.mxu0 0.0
    %2437 = vmatprep.subr.mxu0 0.0
    %2438 = vmatpush1.msra.mxu0 0.0
    %2439 = vmatprep.subr.mxu0 0.0
    %2440 = vmatpush1.msra.mxu0 0.0
    %2441 = vmatprep.subr.mxu0 0.0
    %2442 = vmatpush1.msra.mxu0 0.0
    %2443 = vmatprep.subr.mxu0 0.0
    %2444 = vmatpush1.msra.mxu0 0.0
    %2445 = vmatprep.subr.mxu0 0.0
    %2446 = vmatpush1.msra.mxu0 0.0
    %2447 = vmatprep.subr.mxu0 0.0
    %2448 = vmatpush1.msra.mxu0 0.0
    %2449 = vmatprep.subr.mxu0 0.0
    %2450 = vmatpush1.msra.mxu0 0.0
    %2451 = vmatprep.mubr.f32.mxu0 0.0
    %2452 = vmatmul.mubr.f32.gmra.mrb[0].mxu0 %v2382
    %v2453 = vpop.f32.mrb[0].mxu0
    %v2454 = vadd.f32 0.0, %v2453
    %v2455 = vpop.f32.mrb[0].mxu0
    %2456 = vmatprep.mubr.f32.mxu0 0.0
    %2457 = vmatmul.mubr.f32.gmra.mrb[0].mxu0 %v2385
    %v2458 = vpop.f32.mrb[0].mxu0
    %v2459 = vadd.f32 0.0, %v2458
    %v2460 = vpop.f32.mrb[0].mxu0
    %2461 = vdwg.mxu0
    %v2462 = vadd.f32 %v2373, %v2454
    %v2463 = vadd.f32 %v2378, %v2459
    %2464 = vmatprep.subr.mxu0 0.0
    %2465 = vmatpush1.msra.mxu0 %v2462
    %2466 = vmatprep.subr.mxu0 0.0
    %2467 = vmatpush1.msra.mxu0 %v2463
    %2468 = vmatprep.subr.mxu0 0.0
    %2469 = vmatpush1.msra.mxu0 0.0
    %2470 = vmatprep.subr.mxu0 0.0
    %2471 = vmatpush1.msra.mxu0 0.0
    %2472 = vmatprep.subr.mxu0 0.0
    %2473 = vmatpush1.msra.mxu0 0.0
    %2474 = vmatprep.subr.mxu0 0.0
    %2475 = vmatpush1.msra.mxu0 0.0
    %2476 = vmatprep.subr.mxu0 0.0
    %2477 = vmatpush1.msra.mxu0 0.0
    %2478 = vmatprep.subr.mxu0 0.0
    %2479 = vmatpush1.msra.mxu0 0.0
    %2480 = vmatprep.subr.mxu0 0.0
    %2481 = vmatpush1.msra.mxu0 0.0
    %2482 = vmatprep.subr.mxu0 0.0
    %2483 = vmatpush1.msra.mxu0 0.0
    %2484 = vmatprep.subr.mxu0 0.0
    %2485 = vmatpush1.msra.mxu0 0.0
    %2486 = vmatprep.subr.mxu0 0.0
    %2487 = vmatpush1.msra.mxu0 0.0
    %2488 = vmatprep.subr.mxu0 0.0
    %2489 = vmatpush1.msra.mxu0 0.0
    %2490 = vmatprep.subr.mxu0 0.0
    %2491 = vmatpush1.msra.mxu0 0.0
    %2492 = vmatprep.subr.mxu0 0.0
    %2493 = vmatpush1.msra.mxu0 0.0
    %2494 = vmatprep.subr.mxu0 0.0
    %2495 = vmatpush1.msra.mxu0 0.0
    %2496 = vmatprep.subr.mxu0 0.0
    %2497 = vmatpush1.msra.mxu0 0.0
    %2498 = vmatprep.subr.mxu0 0.0
    %2499 = vmatpush1.msra.mxu0 0.0
    %2500 = vmatprep.subr.mxu0 0.0
    %2501 = vmatpush1.msra.mxu0 0.0
    %2502 = vmatprep.subr.mxu0 0.0
    %2503 = vmatpush1.msra.mxu0 0.0
    %2504 = vmatprep.subr.mxu0 0.0
    %2505 = vmatpush1.msra.mxu0 0.0
    %2506 = vmatprep.subr.mxu0 0.0
    %2507 = vmatpush1.msra.mxu0 0.0
    %2508 = vmatprep.subr.mxu0 0.0
    %2509 = vmatpush1.msra.mxu0 0.0
    %2510 = vmatprep.subr.mxu0 0.0
    %2511 = vmatpush1.msra.mxu0 0.0
    %2512 = vmatprep.subr.mxu0 0.0
    %2513 = vmatpush1.msra.mxu0 0.0
    %2514 = vmatprep.subr.mxu0 0.0
    %2515 = vmatpush1.msra.mxu0 0.0
    %2516 = vmatprep.subr.mxu0 0.0
    %2517 = vmatpush1.msra.mxu0 0.0
    %2518 = vmatprep.subr.mxu0 0.0
    %2519 = vmatpush1.msra.mxu0 0.0
    %2520 = vmatprep.subr.mxu0 0.0
    %2521 = vmatpush1.msra.mxu0 0.0
    %2522 = vmatprep.subr.mxu0 0.0
    %2523 = vmatpush1.msra.mxu0 0.0
    %2524 = vmatprep.subr.mxu0 0.0
    %2525 = vmatpush1.msra.mxu0 0.0
    %2526 = vmatprep.subr.mxu0 0.0
    %2527 = vmatpush1.msra.mxu0 0.0
    %2528 = vmatprep.mubr.f32.mxu0 0.0
    %2529 = vmatmul.mubr.f32.gmra.mrb[0].mxu0 %v134
    %v2530 = vpop.f32.mrb[0].mxu0
    %v2531 = vadd.f32 %v102, %v2530
    %v2532 = vpop.f32.mrb[0].mxu0
    %2533 = vmatprep.mubr.f32.mxu0 0.0
    %2534 = vmatmul.mubr.f32.gmra.mrb[0].mxu0 %v137
    %v2535 = vpop.f32.mrb[0].mxu0
    %v2536 = vadd.f32 %v102, %v2535
    %v2537 = vpop.f32.mrb[0].mxu0
    %2538 = vdwg.mxu0
    %v2539 = vmul.f32 %v2531, 0.01
    %v2540 = vmul.f32 %v2536, 0.01
    %v2541 = vmax.f32 %v2531, %v2539
    %v2542 = vmax.f32 %v2536, %v2540
    %v2544 = vsel %vm779, %v2541, 0
    %v2547 = vsel %vm779, %v2542, 0
    %2549 = vmatprep.subr.mxu0 0.0
    %2550 = vmatpush1.msra.mxu0 %v104
    %2551 = vmatprep.subr.mxu0 0.0
    %2552 = vmatpush1.msra.mxu0 %v105
    %2553 = vmatprep.subr.mxu0 0.0
    %2554 = vmatpush1.msra.mxu0 %v106
    %2555 = vmatprep.subr.mxu0 0.0
    %2556 = vmatpush1.msra.mxu0 %v107
    %2557 = vmatprep.subr.mxu0 0.0
    %2558 = vmatpush1.msra.mxu0 %v108
    %2559 = vmatprep.subr.mxu0 0.0
    %2560 = vmatpush1.msra.mxu0 %v109
    %2561 = vmatprep.subr.mxu0 0.0
    %2562 = vmatpush1.msra.mxu0 %v110
    %2563 = vmatprep.subr.mxu0 0.0
    %2564 = vmatpush1.msra.mxu0 %v111
    %2565 = vmatprep.subr.mxu0 0.0
    %2566 = vmatpush1.msra.mxu0 %v112
    %2567 = vmatprep.subr.mxu0 0.0
    %2568 = vmatpush1.msra.mxu0 0.0
    %2569 = vmatprep.subr.mxu0 0.0
    %2570 = vmatpush1.msra.mxu0 0.0
    %2571 = vmatprep.subr.mxu0 0.0
    %2572 = vmatpush1.msra.mxu0 0.0
    %2573 = vmatprep.subr.mxu0 0.0
    %2574 = vmatpush1.msra.mxu0 0.0
    %2575 = vmatprep.subr.mxu0 0.0
    %2576 = vmatpush1.msra.mxu0 0.0
    %2577 = vmatprep.subr.mxu0 0.0
    %2578 = vmatpush1.msra.mxu0 0.0
    %2579 = vmatprep.subr.mxu0 0.0
    %2580 = vmatpush1.msra.mxu0 0.0
    %2581 = vmatprep.subr.mxu0 0.0
    %2582 = vmatpush1.msra.mxu0 0.0
    %2583 = vmatprep.subr.mxu0 0.0
    %2584 = vmatpush1.msra.mxu0 0.0
    %2585 = vmatprep.subr.mxu0 0.0
    %2586 = vmatpush1.msra.mxu0 0.0
    %2587 = vmatprep.subr.mxu0 0.0
    %2588 = vmatpush1.msra.mxu0 0.0
    %2589 = vmatprep.subr.mxu0 0.0
    %2590 = vmatpush1.msra.mxu0 0.0
    %2591 = vmatprep.subr.mxu0 0.0
    %2592 = vmatpush1.msra.mxu0 0.0
    %2593 = vmatprep.subr.mxu0 0.0
    %2594 = vmatpush1.msra.mxu0 0.0
    %2595 = vmatprep.subr.mxu0 0.0
    %2596 = vmatpush1.msra.mxu0 0.0
    %2597 = vmatprep.subr.mxu0 0.0
    %2598 = vmatpush1.msra.mxu0 0.0
    %2599 = vmatprep.subr.mxu0 0.0
    %2600 = vmatpush1.msra.mxu0 0.0
    %2601 = vmatprep.subr.mxu0 0.0
    %2602 = vmatpush1.msra.mxu0 0.0
    %2603 = vmatprep.subr.mxu0 0.0
    %2604 = vmatpush1.msra.mxu0 0.0
    %2605 = vmatprep.subr.mxu0 0.0
    %2606 = vmatpush1.msra.mxu0 0.0
    %2607 = vmatprep.subr.mxu0 0.0
    %2608 = vmatpush1.msra.mxu0 0.0
    %2609 = vmatprep.subr.mxu0 0.0
    %2610 = vmatpush1.msra.mxu0 0.0
    %2611 = vmatprep.subr.mxu0 0.0
    %2612 = vmatpush1.msra.mxu0 0.0
    %2613 = vmatprep.mubr.f32.mxu0 0.0
    %2614 = vmatmul.mubr.f32.gmra.mrb[0].mxu0 %v2544
    %v2615 = vpop.f32.mrb[0].mxu0
    %v2616 = vadd.f32 0.0, %v2615
    %v2617 = vpop.f32.mrb[0].mxu0
    %2618 = vmatprep.mubr.f32.mxu0 0.0
    %2619 = vmatmul.mubr.f32.gmra.mrb[0].mxu0 %v2547
    %v2620 = vpop.f32.mrb[0].mxu0
    %v2621 = vadd.f32 0.0, %v2620
    %v2622 = vpop.f32.mrb[0].mxu0
    %2623 = vdwg.mxu0
    %2624 = vmatprep.subr.mxu0 0.0
    %2625 = vmatpush1.msra.mxu0 %v2616
    %2626 = vmatprep.subr.mxu0 0.0
    %2627 = vmatpush1.msra.mxu0 %v2621
    %2628 = vmatprep.subr.mxu0 0.0
    %2629 = vmatpush1.msra.mxu0 0.0
    %2630 = vmatprep.subr.mxu0 0.0
    %2631 = vmatpush1.msra.mxu0 0.0
    %2632 = vmatprep.subr.mxu0 0.0
    %2633 = vmatpush1.msra.mxu0 0.0
    %2634 = vmatprep.subr.mxu0 0.0
    %2635 = vmatpush1.msra.mxu0 0.0
    %2636 = vmatprep.subr.mxu0 0.0
    %2637 = vmatpush1.msra.mxu0 0.0
    %2638 = vmatprep.subr.mxu0 0.0
    %2639 = vmatpush1.msra.mxu0 0.0
    %2640 = vmatprep.subr.mxu0 0.0
    %2641 = vmatpush1.msra.mxu0 0.0
    %2642 = vmatprep.subr.mxu0 0.0
    %2643 = vmatpush1.msra.mxu0 0.0
    %2644 = vmatprep.subr.mxu0 0.0
    %2645 = vmatpush1.msra.mxu0 0.0
    %2646 = vmatprep.subr.mxu0 0.0
    %2647 = vmatpush1.msra.mxu0 0.0
    %2648 = vmatprep.subr.mxu0 0.0
    %2649 = vmatpush1.msra.mxu0 0.0
    %2650 = vmatprep.subr.mxu0 0.0
    %2651 = vmatpush1.msra.mxu0 0.0
    %2652 = vmatprep.subr.mxu0 0.0
    %2653 = vmatpush1.msra.mxu0 0.0
    %2654 = vmatprep.subr.mxu0 0.0
    %2655 = vmatpush1.msra.mxu0 0.0
    %2656 = vmatprep.subr.mxu0 0.0
    %2657 = vmatpush1.msra.mxu0 0.0
    %2658 = vmatprep.subr.mxu0 0.0
    %2659 = vmatpush1.msra.mxu0 0.0
    %2660 = vmatprep.subr.mxu0 0.0
    %2661 = vmatpush1.msra.mxu0 0.0
    %2662 = vmatprep.subr.mxu0 0.0
    %2663 = vmatpush1.msra.mxu0 0.0
    %2664 = vmatprep.subr.mxu0 0.0
    %2665 = vmatpush1.msra.mxu0 0.0
    %2666 = vmatprep.subr.mxu0 0.0
    %2667 = vmatpush1.msra.mxu0 0.0
    %2668 = vmatprep.subr.mxu0 0.0
    %2669 = vmatpush1.msra.mxu0 0.0
    %2670 = vmatprep.subr.mxu0 0.0
    %2671 = vmatpush1.msra.mxu0 0.0
    %2672 = vmatprep.subr.mxu0 0.0
    %2673 = vmatpush1.msra.mxu0 0.0
    %2674 = vmatprep.subr.mxu0 0.0
    %2675 = vmatpush1.msra.mxu0 0.0
    %2676 = vmatprep.subr.mxu0 0.0
    %2677 = vmatpush1.msra.mxu0 0.0
    %2678 = vmatprep.subr.mxu0 0.0
    %2679 = vmatpush1.msra.mxu0 0.0
    %2680 = vmatprep.subr.mxu0 0.0
    %2681 = vmatpush1.msra.mxu0 0.0
    %2682 = vmatprep.subr.mxu0 0.0
    %2683 = vmatpush1.msra.mxu0 0.0
    %2684 = vmatprep.subr.mxu0 0.0
    %2685 = vmatpush1.msra.mxu0 0.0
    %2686 = vmatprep.subr.mxu0 0.0
    %2687 = vmatpush1.msra.mxu0 0.0
    %2688 = vmatprep.mubr.f32.mxu0 0.0
    %2689 = vmatmul.mubr.f32.gmra.mrb[0].mxu0 %v134
    %v2690 = vpop.f32.mrb[0].mxu0
    %v2691 = vadd.f32 %v118, %v2690
    %v2692 = vpop.f32.mrb[0].mxu0
    %2693 = vmatprep.mubr.f32.mxu0 0.0
    %2694 = vmatmul.mubr.f32.gmra.mrb[0].mxu0 %v137
    %v2695 = vpop.f32.mrb[0].mxu0
    %v2696 = vadd.f32 %v118, %v2695
    %v2697 = vpop.f32.mrb[0].mxu0
    %2698 = vdwg.mxu0
    %2699 = vmatprep.subr.mxu0 0.0
    %2700 = vmatpush1.msra.mxu0 %v129
    %2701 = vmatprep.subr.mxu0 0.0
    %2702 = vmatpush1.msra.mxu0 0.0
    %2703 = vmatprep.subr.mxu0 0.0
    %2704 = vmatpush1.msra.mxu0 0.0
    %2705 = vmatprep.subr.mxu0 0.0
    %2706 = vmatpush1.msra.mxu0 0.0
    %2707 = vmatprep.subr.mxu0 0.0
    %2708 = vmatpush1.msra.mxu0 0.0
    %2709 = vmatprep.subr.mxu0 0.0
    %2710 = vmatpush1.msra.mxu0 0.0
    %2711 = vmatprep.subr.mxu0 0.0
    %2712 = vmatpush1.msra.mxu0 0.0
    %2713 = vmatprep.subr.mxu0 0.0
    %2714 = vmatpush1.msra.mxu0 0.0
    %2715 = vmatprep.subr.mxu0 0.0
    %2716 = vmatpush1.msra.mxu0 0.0
    %2717 = vmatprep.subr.mxu0 0.0
    %2718 = vmatpush1.msra.mxu0 0.0
    %2719 = vmatprep.subr.mxu0 0.0
    %2720 = vmatpush1.msra.mxu0 0.0
    %2721 = vmatprep.subr.mxu0 0.0
    %2722 = vmatpush1.msra.mxu0 0.0
    %2723 = vmatprep.subr.mxu0 0.0
    %2724 = vmatpush1.msra.mxu0 0.0
    %2725 = vmatprep.subr.mxu0 0.0
    %2726 = vmatpush1.msra.mxu0 0.0
    %2727 = vmatprep.subr.mxu0 0.0
    %2728 = vmatpush1.msra.mxu0 0.0
    %2729 = vmatprep.subr.mxu0 0.0
    %2730 = vmatpush1.msra.mxu0 0.0
    %2731 = vmatprep.subr.mxu0 0.0
    %2732 = vmatpush1.msra.mxu0 0.0
    %2733 = vmatprep.subr.mxu0 0.0
    %2734 = vmatpush1.msra.mxu0 0.0
    %2735 = vmatprep.subr.mxu0 0.0
    %2736 = vmatpush1.msra.mxu0 0.0
    %2737 = vmatprep.subr.mxu0 0.0
    %2738 = vmatpush1.msra.mxu0 0.0
    %2739 = vmatprep.subr.mxu0 0.0
    %2740 = vmatpush1.msra.mxu0 0.0
    %2741 = vmatprep.subr.mxu0 0.0
    %2742 = vmatpush1.msra.mxu0 0.0
    %2743 = vmatprep.subr.mxu0 0.0
    %2744 = vmatpush1.msra.mxu0 0.0
    %2745 = vmatprep.subr.mxu0 0.0
    %2746 = vmatpush1.msra.mxu0 0.0
    %2747 = vmatprep.subr.mxu0 0.0
    %2748 = vmatpush1.msra.mxu0 0.0
    %2749 = vmatprep.subr.mxu0 0.0
    %2750 = vmatpush1.msra.mxu0 0.0
    %2751 = vmatprep.subr.mxu0 0.0
    %2752 = vmatpush1.msra.mxu0 0.0
    %2753 = vmatprep.subr.mxu0 0.0
    %2754 = vmatpush1.msra.mxu0 0.0
    %2755 = vmatprep.subr.mxu0 0.0
    %2756 = vmatpush1.msra.mxu0 0.0
    %2757 = vmatprep.subr.mxu0 0.0
    %2758 = vmatpush1.msra.mxu0 0.0
    %2759 = vmatprep.subr.mxu0 0.0
    %2760 = vmatpush1.msra.mxu0 0.0
    %2761 = vmatprep.subr.mxu0 0.0
    %2762 = vmatpush1.msra.mxu0 0.0
    %2763 = vmatprep.mubr.f32.mxu0 0.0
    %2764 = vmatmul.mubr.f32.gmra.mrb[0].mxu0 %v2301
    %v2765 = vpop.f32.mrb[0].mxu0
    %v2766 = vadd.f32 0.0, %v2765
    %v2767 = vpop.f32.mrb[0].mxu0
    %2768 = vmatprep.mubr.f32.mxu0 0.0
    %2769 = vmatmul.mubr.f32.gmra.mrb[0].mxu0 %v2304
    %v2770 = vpop.f32.mrb[0].mxu0
    %v2771 = vadd.f32 0.0, %v2770
    %v2772 = vpop.f32.mrb[0].mxu0
    %2773 = vdwg.mxu0
    %2775 = vset.pattern.permute.xlu0 0
    %2776 = vperm.xlu0 %2775, %v2691
    %v2777 = vpop.permute.xlu0 %2776
    %2780 = vset.pattern.permute.xlu0 0
    %2781 = vperm.xlu0 %2780, %v2696
    %v2782 = vpop.permute.xlu0 %2781
    %v2784 = vsel %vm1011, %v2777, %v2766
    %v2785 = vsel %vm1011, %v2782, %v2771
    %2786 = vmatprep.subr.mxu0 0.0
    %2787 = vmatpush1.msra.mxu0 %v2784
    %2788 = vmatprep.subr.mxu0 0.0
    %2789 = vmatpush1.msra.mxu0 %v2785
    %2790 = vmatprep.subr.mxu0 0.0
    %2791 = vmatpush1.msra.mxu0 0.0
    %2792 = vmatprep.subr.mxu0 0.0
    %2793 = vmatpush1.msra.mxu0 0.0
    %2794 = vmatprep.subr.mxu0 0.0
    %2795 = vmatpush1.msra.mxu0 0.0
    %2796 = vmatprep.subr.mxu0 0.0
    %2797 = vmatpush1.msra.mxu0 0.0
    %2798 = vmatprep.subr.mxu0 0.0
    %2799 = vmatpush1.msra.mxu0 0.0
    %2800 = vmatprep.subr.mxu0 0.0
    %2801 = vmatpush1.msra.mxu0 0.0
    %2802 = vmatprep.subr.mxu0 0.0
    %2803 = vmatpush1.msra.mxu0 0.0
    %2804 = vmatprep.subr.mxu0 0.0
    %2805 = vmatpush1.msra.mxu0 0.0
    %2806 = vmatprep.subr.mxu0 0.0
    %2807 = vmatpush1.msra.mxu0 0.0
    %2808 = vmatprep.subr.mxu0 0.0
    %2809 = vmatpush1.msra.mxu0 0.0
    %2810 = vmatprep.subr.mxu0 0.0
    %2811 = vmatpush1.msra.mxu0 0.0
    %2812 = vmatprep.subr.mxu0 0.0
    %2813 = vmatpush1.msra.mxu0 0.0
    %2814 = vmatprep.subr.mxu0 0.0
    %2815 = vmatpush1.msra.mxu0 0.0
    %2816 = vmatprep.subr.mxu0 0.0
    %2817 = vmatpush1.msra.mxu0 0.0
    %2818 = vmatprep.subr.mxu0 0.0
    %2819 = vmatpush1.msra.mxu0 0.0
    %2820 = vmatprep.subr.mxu0 0.0
    %2821 = vmatpush1.msra.mxu0 0.0
    %2822 = vmatprep.subr.mxu0 0.0
    %2823 = vmatpush1.msra.mxu0 0.0
    %2824 = vmatprep.subr.mxu0 0.0
    %2825 = vmatpush1.msra.mxu0 0.0
    %2826 = vmatprep.subr.mxu0 0.0
    %2827 = vmatpush1.msra.mxu0 0.0
    %2828 = vmatprep.subr.mxu0 0.0
    %2829 = vmatpush1.msra.mxu0 0.0
    %2830 = vmatprep.subr.mxu0 0.0
    %2831 = vmatpush1.msra.mxu0 0.0
    %2832 = vmatprep.subr.mxu0 0.0
    %2833 = vmatpush1.msra.mxu0 0.0
    %2834 = vmatprep.subr.mxu0 0.0
    %2835 = vmatpush1.msra.mxu0 0.0
    %2836 = vmatprep.subr.mxu0 0.0
    %2837 = vmatpush1.msra.mxu0 0.0
    %2838 = vmatprep.subr.mxu0 0.0
    %2839 = vmatpush1.msra.mxu0 0.0
    %2840 = vmatprep.subr.mxu0 0.0
    %2841 = vmatpush1.msra.mxu0 0.0
    %2842 = vmatprep.subr.mxu0 0.0
    %2843 = vmatpush1.msra.mxu0 0.0
    %2844 = vmatprep.subr.mxu0 0.0
    %2845 = vmatpush1.msra.mxu0 0.0
    %2846 = vmatprep.subr.mxu0 0.0
    %2847 = vmatpush1.msra.mxu0 0.0
    %2848 = vmatprep.subr.mxu0 0.0
    %2849 = vmatpush1.msra.mxu0 0.0
    %2850 = vmatprep.mubr.f32.mxu0 0.0
    %2851 = vmatmul.mubr.f32.gmra.mrb[0].mxu0 %v134
    %v2852 = vpop.f32.mrb[0].mxu0
    %v2853 = vadd.f32 0.0, %v2852
    %v2854 = vpop.f32.mrb[0].mxu0
    %2855 = vmatprep.mubr.f32.mxu0 0.0
    %2856 = vmatmul.mubr.f32.gmra.mrb[0].mxu0 %v137
    %v2857 = vpop.f32.mrb[0].mxu0
    %v2858 = vadd.f32 0.0, %v2857
    %v2859 = vpop.f32.mrb[0].mxu0
    %2860 = vdwg.mxu0
    %v2862 = vsel %vm214, %v2853, 0
    %v2865 = vsel %vm214, %v2858, 0
    %2867 = vmatprep.subr.mxu0 0.0
    %2868 = vmatpush1.msra.mxu0 %v69
    %2869 = vmatprep.subr.mxu0 0.0
    %2870 = vmatpush1.msra.mxu0 0.0
    %2871 = vmatprep.subr.mxu0 0.0
    %2872 = vmatpush1.msra.mxu0 0.0
    %2873 = vmatprep.subr.mxu0 0.0
    %2874 = vmatpush1.msra.mxu0 0.0
    %2875 = vmatprep.subr.mxu0 0.0
    %2876 = vmatpush1.msra.mxu0 0.0
    %2877 = vmatprep.subr.mxu0 0.0
    %2878 = vmatpush1.msra.mxu0 0.0
    %2879 = vmatprep.subr.mxu0 0.0
    %2880 = vmatpush1.msra.mxu0 0.0
    %2881 = vmatprep.subr.mxu0 0.0
    %2882 = vmatpush1.msra.mxu0 0.0
    %2883 = vmatprep.subr.mxu0 0.0
    %2884 = vmatpush1.msra.mxu0 0.0
    %2885 = vmatprep.subr.mxu0 0.0
    %2886 = vmatpush1.msra.mxu0 0.0
    %2887 = vmatprep.subr.mxu0 0.0
    %2888 = vmatpush1.msra.mxu0 0.0
    %2889 = vmatprep.subr.mxu0 0.0
    %2890 = vmatpush1.msra.mxu0 0.0
    %2891 = vmatprep.subr.mxu0 0.0
    %2892 = vmatpush1.msra.mxu0 0.0
    %2893 = vmatprep.subr.mxu0 0.0
    %2894 = vmatpush1.msra.mxu0 0.0
    %2895 = vmatprep.subr.mxu0 0.0
    %2896 = vmatpush1.msra.mxu0 0.0
    %2897 = vmatprep.subr.mxu0 0.0
    %2898 = vmatpush1.msra.mxu0 0.0
    %2899 = vmatprep.subr.mxu0 0.0
    %2900 = vmatpush1.msra.mxu0 0.0
    %2901 = vmatprep.subr.mxu0 0.0
    %2902 = vmatpush1.msra.mxu0 0.0
    %2903 = vmatprep.subr.mxu0 0.0
    %2904 = vmatpush1.msra.mxu0 0.0
    %2905 = vmatprep.subr.mxu0 0.0
    %2906 = vmatpush1.msra.mxu0 0.0
    %2907 = vmatprep.subr.mxu0 0.0
    %2908 = vmatpush1.msra.mxu0 0.0
    %2909 = vmatprep.subr.mxu0 0.0
    %2910 = vmatpush1.msra.mxu0 0.0
    %2911 = vmatprep.subr.mxu0 0.0
    %2912 = vmatpush1.msra.mxu0 0.0
    %2913 = vmatprep.subr.mxu0 0.0
    %2914 = vmatpush1.msra.mxu0 0.0
    %2915 = vmatprep.subr.mxu0 0.0
    %2916 = vmatpush1.msra.mxu0 0.0
    %2917 = vmatprep.subr.mxu0 0.0
    %2918 = vmatpush1.msra.mxu0 0.0
    %2919 = vmatprep.subr.mxu0 0.0
    %2920 = vmatpush1.msra.mxu0 0.0
    %2921 = vmatprep.subr.mxu0 0.0
    %2922 = vmatpush1.msra.mxu0 0.0
    %2923 = vmatprep.subr.mxu0 0.0
    %2924 = vmatpush1.msra.mxu0 0.0
    %2925 = vmatprep.subr.mxu0 0.0
    %2926 = vmatpush1.msra.mxu0 0.0
    %2927 = vmatprep.subr.mxu0 0.0
    %2928 = vmatpush1.msra.mxu0 0.0
    %2929 = vmatprep.subr.mxu0 0.0
    %2930 = vmatpush1.msra.mxu0 0.0
    %2931 = vmatprep.mubr.f32.mxu0 0.0
    %2932 = vmatmul.mubr.f32.gmra.mrb[0].mxu0 %v2862
    %v2933 = vpop.f32.mrb[0].mxu0
    %v2934 = vadd.f32 %v75, %v2933
    %v2935 = vpop.f32.mrb[0].mxu0
    %2936 = vmatprep.mubr.f32.mxu0 0.0
    %2937 = vmatmul.mubr.f32.gmra.mrb[0].mxu0 %v2865
    %v2938 = vpop.f32.mrb[0].mxu0
    %v2939 = vadd.f32 %v75, %v2938
    %v2940 = vpop.f32.mrb[0].mxu0
    %2941 = vdwg.mxu0
    %v2942 = vmul.f32 %v2934, 0.01
    %v2943 = vmul.f32 %v2939, 0.01
    %v2944 = vmax.f32 %v2934, %v2942
    %v2945 = vmax.f32 %v2939, %v2943
    %v2947 = vsel %vm300, %v2944, 0
    %v2950 = vsel %vm300, %v2945, 0
    %2952 = vmatprep.subr.mxu0 0.0
    %2953 = vmatpush1.msra.mxu0 %v77
    %2954 = vmatprep.subr.mxu0 0.0
    %2955 = vmatpush1.msra.mxu0 %v78
    %2956 = vmatprep.subr.mxu0 0.0
    %2957 = vmatpush1.msra.mxu0 %v79
    %2958 = vmatprep.subr.mxu0 0.0
    %2959 = vmatpush1.msra.mxu0 %v80
    %2960 = vmatprep.subr.mxu0 0.0
    %2961 = vmatpush1.msra.mxu0 0.0
    %2962 = vmatprep.subr.mxu0 0.0
    %2963 = vmatpush1.msra.mxu0 0.0
    %2964 = vmatprep.subr.mxu0 0.0
    %2965 = vmatpush1.msra.mxu0 0.0
    %2966 = vmatprep.subr.mxu0 0.0
    %2967 = vmatpush1.msra.mxu0 0.0
    %2968 = vmatprep.subr.mxu0 0.0
    %2969 = vmatpush1.msra.mxu0 0.0
    %2970 = vmatprep.subr.mxu0 0.0
    %2971 = vmatpush1.msra.mxu0 0.0
    %2972 = vmatprep.subr.mxu0 0.0
    %2973 = vmatpush1.msra.mxu0 0.0
    %2974 = vmatprep.subr.mxu0 0.0
    %2975 = vmatpush1.msra.mxu0 0.0
    %2976 = vmatprep.subr.mxu0 0.0
    %2977 = vmatpush1.msra.mxu0 0.0
    %2978 = vmatprep.subr.mxu0 0.0
    %2979 = vmatpush1.msra.mxu0 0.0
    %2980 = vmatprep.subr.mxu0 0.0
    %2981 = vmatpush1.msra.mxu0 0.0
    %2982 = vmatprep.subr.mxu0 0.0
    %2983 = vmatpush1.msra.mxu0 0.0
    %2984 = vmatprep.subr.mxu0 0.0
    %2985 = vmatpush1.msra.mxu0 0.0
    %2986 = vmatprep.subr.mxu0 0.0
    %2987 = vmatpush1.msra.mxu0 0.0
    %2988 = vmatprep.subr.mxu0 0.0
    %2989 = vmatpush1.msra.mxu0 0.0
    %2990 = vmatprep.subr.mxu0 0.0
    %2991 = vmatpush1.msra.mxu0 0.0
    %2992 = vmatprep.subr.mxu0 0.0
    %2993 = vmatpush1.msra.mxu0 0.0
    %2994 = vmatprep.subr.mxu0 0.0
    %2995 = vmatpush1.msra.mxu0 0.0
    %2996 = vmatprep.subr.mxu0 0.0
    %2997 = vmatpush1.msra.mxu0 0.0
    %2998 = vmatprep.subr.mxu0 0.0
    %2999 = vmatpush1.msra.mxu0 0.0
    %3000 = vmatprep.subr.mxu0 0.0
    %3001 = vmatpush1.msra.mxu0 0.0
    %3002 = vmatprep.subr.mxu0 0.0
    %3003 = vmatpush1.msra.mxu0 0.0
    %3004 = vmatprep.subr.mxu0 0.0
    %3005 = vmatpush1.msra.mxu0 0.0
    %3006 = vmatprep.subr.mxu0 0.0
    %3007 = vmatpush1.msra.mxu0 0.0
    %3008 = vmatprep.subr.mxu0 0.0
    %3009 = vmatpush1.msra.mxu0 0.0
    %3010 = vmatprep.subr.mxu0 0.0
    %3011 = vmatpush1.msra.mxu0 0.0
    %3012 = vmatprep.subr.mxu0 0.0
    %3013 = vmatpush1.msra.mxu0 0.0
    %3014 = vmatprep.subr.mxu0 0.0
    %3015 = vmatpush1.msra.mxu0 0.0
    %3016 = vmatprep.mubr.f32.mxu0 0.0
    %3017 = vmatmul.mubr.f32.gmra.mrb[0].mxu0 %v2947
    %v3018 = vpop.f32.mrb[0].mxu0
    %v3019 = vadd.f32 0.0, %v3018
    %v3020 = vpop.f32.mrb[0].mxu0
    %3021 = vmatprep.mubr.f32.mxu0 0.0
    %3022 = vmatmul.mubr.f32.gmra.mrb[0].mxu0 %v2950
    %v3023 = vpop.f32.mrb[0].mxu0
    %v3024 = vadd.f32 0.0, %v3023
    %v3025 = vpop.f32.mrb[0].mxu0
    %3026 = vdwg.mxu0
    %3027 = vmatprep.subr.mxu0 0.0
    %3028 = vmatpush1.msra.mxu0 %v3019
    %3029 = vmatprep.subr.mxu0 0.0
    %3030 = vmatpush1.msra.mxu0 %v3024
    %3031 = vmatprep.subr.mxu0 0.0
    %3032 = vmatpush1.msra.mxu0 0.0
    %3033 = vmatprep.subr.mxu0 0.0
    %3034 = vmatpush1.msra.mxu0 0.0
    %3035 = vmatprep.subr.mxu0 0.0
    %3036 = vmatpush1.msra.mxu0 0.0
    %3037 = vmatprep.subr.mxu0 0.0
    %3038 = vmatpush1.msra.mxu0 0.0
    %3039 = vmatprep.subr.mxu0 0.0
    %3040 = vmatpush1.msra.mxu0 0.0
    %3041 = vmatprep.subr.mxu0 0.0
    %3042 = vmatpush1.msra.mxu0 0.0
    %3043 = vmatprep.subr.mxu0 0.0
    %3044 = vmatpush1.msra.mxu0 0.0
    %3045 = vmatprep.subr.mxu0 0.0
    %3046 = vmatpush1.msra.mxu0 0.0
    %3047 = vmatprep.subr.mxu0 0.0
    %3048 = vmatpush1.msra.mxu0 0.0
    %3049 = vmatprep.subr.mxu0 0.0
    %3050 = vmatpush1.msra.mxu0 0.0
    %3051 = vmatprep.subr.mxu0 0.0
    %3052 = vmatpush1.msra.mxu0 0.0
    %3053 = vmatprep.subr.mxu0 0.0
    %3054 = vmatpush1.msra.mxu0 0.0
    %3055 = vmatprep.subr.mxu0 0.0
    %3056 = vmatpush1.msra.mxu0 0.0
    %3057 = vmatprep.subr.mxu0 0.0
    %3058 = vmatpush1.msra.mxu0 0.0
    %3059 = vmatprep.subr.mxu0 0.0
    %3060 = vmatpush1.msra.mxu0 0.0
    %3061 = vmatprep.subr.mxu0 0.0
    %3062 = vmatpush1.msra.mxu0 0.0
    %3063 = vmatprep.subr.mxu0 0.0
    %3064 = vmatpush1.msra.mxu0 0.0
    %3065 = vmatprep.subr.mxu0 0.0
    %3066 = vmatpush1.msra.mxu0 0.0
    %3067 = vmatprep.subr.mxu0 0.0
    %3068 = vmatpush1.msra.mxu0 0.0
    %3069 = vmatprep.subr.mxu0 0.0
    %3070 = vmatpush1.msra.mxu0 0.0
    %3071 = vmatprep.subr.mxu0 0.0
    %3072 = vmatpush1.msra.mxu0 0.0
    %3073 = vmatprep.subr.mxu0 0.0
    %3074 = vmatpush1.msra.mxu0 0.0
    %3075 = vmatprep.subr.mxu0 0.0
    %3076 = vmatpush1.msra.mxu0 0.0
    %3077 = vmatprep.subr.mxu0 0.0
    %3078 = vmatpush1.msra.mxu0 0.0
    %3079 = vmatprep.subr.mxu0 0.0
    %3080 = vmatpush1.msra.mxu0 0.0
    %3081 = vmatprep.subr.mxu0 0.0
    %3082 = vmatpush1.msra.mxu0 0.0
    %3083 = vmatprep.subr.mxu0 0.0
    %3084 = vmatpush1.msra.mxu0 0.0
    %3085 = vmatprep.subr.mxu0 0.0
    %3086 = vmatpush1.msra.mxu0 0.0
    %3087 = vmatprep.subr.mxu0 0.0
    %3088 = vmatpush1.msra.mxu0 0.0
    %3089 = vmatprep.subr.mxu0 0.0
    %3090 = vmatpush1.msra.mxu0 0.0
    %3091 = vmatprep.mubr.f32.mxu0 0.0
    %3092 = vmatmul.mubr.f32.gmra.mrb[0].mxu0 %v134
    %v3093 = vpop.f32.mrb[0].mxu0
    %v3094 = vadd.f32 %v86, %v3093
    %v3095 = vpop.f32.mrb[0].mxu0
    %3096 = vmatprep.mubr.f32.mxu0 0.0
    %3097 = vmatmul.mubr.f32.gmra.mrb[0].mxu0 %v137
    %v3098 = vpop.f32.mrb[0].mxu0
    %v3099 = vadd.f32 %v86, %v3098
    %v3100 = vpop.f32.mrb[0].mxu0
    %3101 = vdwg.mxu0
    %v3102 = vmul.f32 %v3094, 0.01
    %v3103 = vmul.f32 %v3099, 0.01
    %v3104 = vmax.f32 %v3094, %v3102
    %v3105 = vmax.f32 %v3099, %v3103
    %3106 = vmatprep.subr.mxu0 0.0
    %3107 = vmatpush1.msra.mxu0 %v89
    %3108 = vmatprep.subr.mxu0 0.0
    %3109 = vmatpush1.msra.mxu0 %v90
    %3110 = vmatprep.subr.mxu0 0.0
    %3111 = vmatpush1.msra.mxu0 %v91
    %3112 = vmatprep.subr.mxu0 0.0
    %3113 = vmatpush1.msra.mxu0 %v92
    %3114 = vmatprep.subr.mxu0 0.0
    %3115 = vmatpush1.msra.mxu0 0.0
    %3116 = vmatprep.subr.mxu0 0.0
    %3117 = vmatpush1.msra.mxu0 0.0
    %3118 = vmatprep.subr.mxu0 0.0
    %3119 = vmatpush1.msra.mxu0 0.0
    %3120 = vmatprep.subr.mxu0 0.0
    %3121 = vmatpush1.msra.mxu0 0.0
    %3122 = vmatprep.subr.mxu0 0.0
    %3123 = vmatpush1.msra.mxu0 0.0
    %3124 = vmatprep.subr.mxu0 0.0
    %3125 = vmatpush1.msra.mxu0 0.0
    %3126 = vmatprep.subr.mxu0 0.0
    %3127 = vmatpush1.msra.mxu0 0.0
    %3128 = vmatprep.subr.mxu0 0.0
    %3129 = vmatpush1.msra.mxu0 0.0
    %3130 = vmatprep.subr.mxu0 0.0
    %3131 = vmatpush1.msra.mxu0 0.0
    %3132 = vmatprep.subr.mxu0 0.0
    %3133 = vmatpush1.msra.mxu0 0.0
    %3134 = vmatprep.subr.mxu0 0.0
    %3135 = vmatpush1.msra.mxu0 0.0
    %3136 = vmatprep.subr.mxu0 0.0
    %3137 = vmatpush1.msra.mxu0 0.0
    %3138 = vmatprep.subr.mxu0 0.0
    %3139 = vmatpush1.msra.mxu0 0.0
    %3140 = vmatprep.subr.mxu0 0.0
    %3141 = vmatpush1.msra.mxu0 0.0
    %3142 = vmatprep.subr.mxu0 0.0
    %3143 = vmatpush1.msra.mxu0 0.0
    %3144 = vmatprep.subr.mxu0 0.0
    %3145 = vmatpush1.msra.mxu0 0.0
    %3146 = vmatprep.subr.mxu0 0.0
    %3147 = vmatpush1.msra.mxu0 0.0
    %3148 = vmatprep.subr.mxu0 0.0
    %3149 = vmatpush1.msra.mxu0 0.0
    %3150 = vmatprep.subr.mxu0 0.0
    %3151 = vmatpush1.msra.mxu0 0.0
    %3152 = vmatprep.subr.mxu0 0.0
    %3153 = vmatpush1.msra.mxu0 0.0
    %3154 = vmatprep.subr.mxu0 0.0
    %3155 = vmatpush1.msra.mxu0 0.0
    %3156 = vmatprep.subr.mxu0 0.0
    %3157 = vmatpush1.msra.mxu0 0.0
    %3158 = vmatprep.subr.mxu0 0.0
    %3159 = vmatpush1.msra.mxu0 0.0
    %3160 = vmatprep.subr.mxu0 0.0
    %3161 = vmatpush1.msra.mxu0 0.0
    %3162 = vmatprep.subr.mxu0 0.0
    %3163 = vmatpush1.msra.mxu0 0.0
    %3164 = vmatprep.subr.mxu0 0.0
    %3165 = vmatpush1.msra.mxu0 0.0
    %3166 = vmatprep.subr.mxu0 0.0
    %3167 = vmatpush1.msra.mxu0 0.0
    %3168 = vmatprep.subr.mxu0 0.0
    %3169 = vmatpush1.msra.mxu0 0.0
    %3170 = vmatprep.mubr.f32.mxu0 0.0
    %3171 = vmatmul.mubr.f32.gmra.mrb[0].mxu0 %v2947
    %v3172 = vpop.f32.mrb[0].mxu0
    %v3173 = vadd.f32 0.0, %v3172
    %v3174 = vpop.f32.mrb[0].mxu0
    %3175 = vmatprep.mubr.f32.mxu0 0.0
    %3176 = vmatmul.mubr.f32.gmra.mrb[0].mxu0 %v2950
    %v3177 = vpop.f32.mrb[0].mxu0
    %v3178 = vadd.f32 0.0, %v3177
    %v3179 = vpop.f32.mrb[0].mxu0
    %3180 = vdwg.mxu0
    %v3182 = vsel %vm214, %v2784, 0
    %v3185 = vsel %vm214, %v2785, 0
    %3187 = vmatprep.subr.mxu0 0.0
    %3188 = vmatpush1.msra.mxu0 %v88
    %3189 = vmatprep.subr.mxu0 0.0
    %3190 = vmatpush1.msra.mxu0 0.0
    %3191 = vmatprep.subr.mxu0 0.0
    %3192 = vmatpush1.msra.mxu0 0.0
    %3193 = vmatprep.subr.mxu0 0.0
    %3194 = vmatpush1.msra.mxu0 0.0
    %3195 = vmatprep.subr.mxu0 0.0
    %3196 = vmatpush1.msra.mxu0 0.0
    %3197 = vmatprep.subr.mxu0 0.0
    %3198 = vmatpush1.msra.mxu0 0.0
    %3199 = vmatprep.subr.mxu0 0.0
    %3200 = vmatpush1.msra.mxu0 0.0
    %3201 = vmatprep.subr.mxu0 0.0
    %3202 = vmatpush1.msra.mxu0 0.0
    %3203 = vmatprep.subr.mxu0 0.0
    %3204 = vmatpush1.msra.mxu0 0.0
    %3205 = vmatprep.subr.mxu0 0.0
    %3206 = vmatpush1.msra.mxu0 0.0
    %3207 = vmatprep.subr.mxu0 0.0
    %3208 = vmatpush1.msra.mxu0 0.0
    %3209 = vmatprep.subr.mxu0 0.0
    %3210 = vmatpush1.msra.mxu0 0.0
    %3211 = vmatprep.subr.mxu0 0.0
    %3212 = vmatpush1.msra.mxu0 0.0
    %3213 = vmatprep.subr.mxu0 0.0
    %3214 = vmatpush1.msra.mxu0 0.0
    %3215 = vmatprep.subr.mxu0 0.0
    %3216 = vmatpush1.msra.mxu0 0.0
    %3217 = vmatprep.subr.mxu0 0.0
    %3218 = vmatpush1.msra.mxu0 0.0
    %3219 = vmatprep.subr.mxu0 0.0
    %3220 = vmatpush1.msra.mxu0 0.0
    %3221 = vmatprep.subr.mxu0 0.0
    %3222 = vmatpush1.msra.mxu0 0.0
    %3223 = vmatprep.subr.mxu0 0.0
    %3224 = vmatpush1.msra.mxu0 0.0
    %3225 = vmatprep.subr.mxu0 0.0
    %3226 = vmatpush1.msra.mxu0 0.0
    %3227 = vmatprep.subr.mxu0 0.0
    %3228 = vmatpush1.msra.mxu0 0.0
    %3229 = vmatprep.subr.mxu0 0.0
    %3230 = vmatpush1.msra.mxu0 0.0
    %3231 = vmatprep.subr.mxu0 0.0
    %3232 = vmatpush1.msra.mxu0 0.0
    %3233 = vmatprep.subr.mxu0 0.0
    %3234 = vmatpush1.msra.mxu0 0.0
    %3235 = vmatprep.subr.mxu0 0.0
    %3236 = vmatpush1.msra.mxu0 0.0
    %3237 = vmatprep.subr.mxu0 0.0
    %3238 = vmatpush1.msra.mxu0 0.0
    %3239 = vmatprep.subr.mxu0 0.0
    %3240 = vmatpush1.msra.mxu0 0.0
    %3241 = vmatprep.subr.mxu0 0.0
    %3242 = vmatpush1.msra.mxu0 0.0
    %3243 = vmatprep.subr.mxu0 0.0
    %3244 = vmatpush1.msra.mxu0 0.0
    %3245 = vmatprep.subr.mxu0 0.0
    %3246 = vmatpush1.msra.mxu0 0.0
    %3247 = vmatprep.subr.mxu0 0.0
    %3248 = vmatpush1.msra.mxu0 0.0
    %3249 = vmatprep.subr.mxu0 0.0
    %3250 = vmatpush1.msra.mxu0 0.0
    %3251 = vmatprep.mubr.f32.mxu0 0.0
    %3252 = vmatmul.mubr.f32.gmra.mrb[0].mxu0 %v3182
    %v3253 = vpop.f32.mrb[0].mxu0
    %v3254 = vadd.f32 %v3173, %v3253
    %v3255 = vpop.f32.mrb[0].mxu0
    %3256 = vmatprep.mubr.f32.mxu0 0.0
    %3257 = vmatmul.mubr.f32.gmra.mrb[0].mxu0 %v3185
    %v3258 = vpop.f32.mrb[0].mxu0
    %v3259 = vadd.f32 %v3178, %v3258
    %v3260 = vpop.f32.mrb[0].mxu0
    %3261 = vdwg.mxu0
    %v3263 = vsel %vm300, %v3104, 0
    %v3266 = vsel %vm300, %v3105, 0
    %3268 = vmatprep.subr.mxu0 0.0
    %3269 = vmatpush1.msra.mxu0 %v93
    %3270 = vmatprep.subr.mxu0 0.0
    %3271 = vmatpush1.msra.mxu0 %v94
    %3272 = vmatprep.subr.mxu0 0.0
    %3273 = vmatpush1.msra.mxu0 %v95
    %3274 = vmatprep.subr.mxu0 0.0
    %3275 = vmatpush1.msra.mxu0 %v96
    %3276 = vmatprep.subr.mxu0 0.0
    %3277 = vmatpush1.msra.mxu0 0.0
    %3278 = vmatprep.subr.mxu0 0.0
    %3279 = vmatpush1.msra.mxu0 0.0
    %3280 = vmatprep.subr.mxu0 0.0
    %3281 = vmatpush1.msra.mxu0 0.0
    %3282 = vmatprep.subr.mxu0 0.0
    %3283 = vmatpush1.msra.mxu0 0.0
    %3284 = vmatprep.subr.mxu0 0.0
    %3285 = vmatpush1.msra.mxu0 0.0
    %3286 = vmatprep.subr.mxu0 0.0
    %3287 = vmatpush1.msra.mxu0 0.0
    %3288 = vmatprep.subr.mxu0 0.0
    %3289 = vmatpush1.msra.mxu0 0.0
    %3290 = vmatprep.subr.mxu0 0.0
    %3291 = vmatpush1.msra.mxu0 0.0
    %3292 = vmatprep.subr.mxu0 0.0
    %3293 = vmatpush1.msra.mxu0 0.0
    %3294 = vmatprep.subr.mxu0 0.0
    %3295 = vmatpush1.msra.mxu0 0.0
    %3296 = vmatprep.subr.mxu0 0.0
    %3297 = vmatpush1.msra.mxu0 0.0
    %3298 = vmatprep.subr.mxu0 0.0
    %3299 = vmatpush1.msra.mxu0 0.0
    %3300 = vmatprep.subr.mxu0 0.0
    %3301 = vmatpush1.msra.mxu0 0.0
    %3302 = vmatprep.subr.mxu0 0.0
    %3303 = vmatpush1.msra.mxu0 0.0
    %3304 = vmatprep.subr.mxu0 0.0
    %3305 = vmatpush1.msra.mxu0 0.0
    %3306 = vmatprep.subr.mxu0 0.0
    %3307 = vmatpush1.msra.mxu0 0.0
    %3308 = vmatprep.subr.mxu0 0.0
    %3309 = vmatpush1.msra.mxu0 0.0
    %3310 = vmatprep.subr.mxu0 0.0
    %3311 = vmatpush1.msra.mxu0 0.0
    %3312 = vmatprep.subr.mxu0 0.0
    %3313 = vmatpush1.msra.mxu0 0.0
    %3314 = vmatprep.subr.mxu0 0.0
    %3315 = vmatpush1.msra.mxu0 0.0
    %3316 = vmatprep.subr.mxu0 0.0
    %3317 = vmatpush1.msra.mxu0 0.0
    %3318 = vmatprep.subr.mxu0 0.0
    %3319 = vmatpush1.msra.mxu0 0.0
    %3320 = vmatprep.subr.mxu0 0.0
    %3321 = vmatpush1.msra.mxu0 0.0
    %3322 = vmatprep.subr.mxu0 0.0
    %3323 = vmatpush1.msra.mxu0 0.0
    %3324 = vmatprep.subr.mxu0 0.0
    %3325 = vmatpush1.msra.mxu0 0.0
    %3326 = vmatprep.subr.mxu0 0.0
    %3327 = vmatpush1.msra.mxu0 0.0
    %3328 = vmatprep.subr.mxu0 0.0
    %3329 = vmatpush1.msra.mxu0 0.0
    %3330 = vmatprep.subr.mxu0 0.0
    %3331 = vmatpush1.msra.mxu0 0.0
    %3332 = vmatprep.mubr.f32.mxu0 0.0
    %3333 = vmatmul.mubr.f32.gmra.mrb[0].mxu0 %v3263
    %v3334 = vpop.f32.mrb[0].mxu0
    %v3335 = vadd.f32 0.0, %v3334
    %v3336 = vpop.f32.mrb[0].mxu0
    %3337 = vmatprep.mubr.f32.mxu0 0.0
    %3338 = vmatmul.mubr.f32.gmra.mrb[0].mxu0 %v3266
    %v3339 = vpop.f32.mrb[0].mxu0
    %v3340 = vadd.f32 0.0, %v3339
    %v3341 = vpop.f32.mrb[0].mxu0
    %3342 = vdwg.mxu0
    %v3343 = vadd.f32 %v3254, %v3335
    %v3344 = vadd.f32 %v3259, %v3340
    %3345 = vmatprep.subr.mxu0 0.0
    %3346 = vmatpush1.msra.mxu0 %v3343
    %3347 = vmatprep.subr.mxu0 0.0
    %3348 = vmatpush1.msra.mxu0 %v3344
    %3349 = vmatprep.subr.mxu0 0.0
    %3350 = vmatpush1.msra.mxu0 0.0
    %3351 = vmatprep.subr.mxu0 0.0
    %3352 = vmatpush1.msra.mxu0 0.0
    %3353 = vmatprep.subr.mxu0 0.0
    %3354 = vmatpush1.msra.mxu0 0.0
    %3355 = vmatprep.subr.mxu0 0.0
    %3356 = vmatpush1.msra.mxu0 0.0
    %3357 = vmatprep.subr.mxu0 0.0
    %3358 = vmatpush1.msra.mxu0 0.0
    %3359 = vmatprep.subr.mxu0 0.0
    %3360 = vmatpush1.msra.mxu0 0.0
    %3361 = vmatprep.subr.mxu0 0.0
    %3362 = vmatpush1.msra.mxu0 0.0
    %3363 = vmatprep.subr.mxu0 0.0
    %3364 = vmatpush1.msra.mxu0 0.0
    %3365 = vmatprep.subr.mxu0 0.0
    %3366 = vmatpush1.msra.mxu0 0.0
    %3367 = vmatprep.subr.mxu0 0.0
    %3368 = vmatpush1.msra.mxu0 0.0
    %3369 = vmatprep.subr.mxu0 0.0
    %3370 = vmatpush1.msra.mxu0 0.0
    %3371 = vmatprep.subr.mxu0 0.0
    %3372 = vmatpush1.msra.mxu0 0.0
    %3373 = vmatprep.subr.mxu0 0.0
    %3374 = vmatpush1.msra.mxu0 0.0
    %3375 = vmatprep.subr.mxu0 0.0
    %3376 = vmatpush1.msra.mxu0 0.0
    %3377 = vmatprep.subr.mxu0 0.0
    %3378 = vmatpush1.msra.mxu0 0.0
    %3379 = vmatprep.subr.mxu0 0.0
    %3380 = vmatpush1.msra.mxu0 0.0
    %3381 = vmatprep.subr.mxu0 0.0
    %3382 = vmatpush1.msra.mxu0 0.0
    %3383 = vmatprep.subr.mxu0 0.0
    %3384 = vmatpush1.msra.mxu0 0.0
    %3385 = vmatprep.subr.mxu0 0.0
    %3386 = vmatpush1.msra.mxu0 0.0
    %3387 = vmatprep.subr.mxu0 0.0
    %3388 = vmatpush1.msra.mxu0 0.0
    %3389 = vmatprep.subr.mxu0 0.0
    %3390 = vmatpush1.msra.mxu0 0.0
    %3391 = vmatprep.subr.mxu0 0.0
    %3392 = vmatpush1.msra.mxu0 0.0
    %3393 = vmatprep.subr.mxu0 0.0
    %3394 = vmatpush1.msra.mxu0 0.0
    %3395 = vmatprep.subr.mxu0 0.0
    %3396 = vmatpush1.msra.mxu0 0.0
    %3397 = vmatprep.subr.mxu0 0.0
    %3398 = vmatpush1.msra.mxu0 0.0
    %3399 = vmatprep.subr.mxu0 0.0
    %3400 = vmatpush1.msra.mxu0 0.0
    %3401 = vmatprep.subr.mxu0 0.0
    %3402 = vmatpush1.msra.mxu0 0.0
    %3403 = vmatprep.subr.mxu0 0.0
    %3404 = vmatpush1.msra.mxu0 0.0
    %3405 = vmatprep.subr.mxu0 0.0
    %3406 = vmatpush1.msra.mxu0 0.0
    %3407 = vmatprep.subr.mxu0 0.0
    %3408 = vmatpush1.msra.mxu0 0.0
    %3409 = vmatprep.mubr.f32.mxu0 0.0
    %3410 = vmatmul.mubr.f32.gmra.mrb[0].mxu0 %v134
    %v3411 = vpop.f32.mrb[0].mxu0
    %v3412 = vadd.f32 %v102, %v3411
    %v3413 = vpop.f32.mrb[0].mxu0
    %3414 = vmatprep.mubr.f32.mxu0 0.0
    %3415 = vmatmul.mubr.f32.gmra.mrb[0].mxu0 %v137
    %v3416 = vpop.f32.mrb[0].mxu0
    %v3417 = vadd.f32 %v102, %v3416
    %v3418 = vpop.f32.mrb[0].mxu0
    %3419 = vdwg.mxu0
    %v3420 = vmul.f32 %v3412, 0.01
    %v3421 = vmul.f32 %v3417, 0.01
    %v3422 = vmax.f32 %v3412, %v3420
    %v3423 = vmax.f32 %v3417, %v3421
    %v3425 = vsel %vm779, %v3422, 0
    %v3428 = vsel %vm779, %v3423, 0
    %3430 = vmatprep.subr.mxu0 0.0
    %3431 = vmatpush1.msra.mxu0 %v104
    %3432 = vmatprep.subr.mxu0 0.0
    %3433 = vmatpush1.msra.mxu0 %v105
    %3434 = vmatprep.subr.mxu0 0.0
    %3435 = vmatpush1.msra.mxu0 %v106
    %3436 = vmatprep.subr.mxu0 0.0
    %3437 = vmatpush1.msra.mxu0 %v107
    %3438 = vmatprep.subr.mxu0 0.0
    %3439 = vmatpush1.msra.mxu0 %v108
    %3440 = vmatprep.subr.mxu0 0.0
    %3441 = vmatpush1.msra.mxu0 %v109
    %3442 = vmatprep.subr.mxu0 0.0
    %3443 = vmatpush1.msra.mxu0 %v110
    %3444 = vmatprep.subr.mxu0 0.0
    %3445 = vmatpush1.msra.mxu0 %v111
    %3446 = vmatprep.subr.mxu0 0.0
    %3447 = vmatpush1.msra.mxu0 %v112
    %3448 = vmatprep.subr.mxu0 0.0
    %3449 = vmatpush1.msra.mxu0 0.0
    %3450 = vmatprep.subr.mxu0 0.0
    %3451 = vmatpush1.msra.mxu0 0.0
    %3452 = vmatprep.subr.mxu0 0.0
    %3453 = vmatpush1.msra.mxu0 0.0
    %3454 = vmatprep.subr.mxu0 0.0
    %3455 = vmatpush1.msra.mxu0 0.0
    %3456 = vmatprep.subr.mxu0 0.0
    %3457 = vmatpush1.msra.mxu0 0.0
    %3458 = vmatprep.subr.mxu0 0.0
    %3459 = vmatpush1.msra.mxu0 0.0
    %3460 = vmatprep.subr.mxu0 0.0
    %3461 = vmatpush1.msra.mxu0 0.0
    %3462 = vmatprep.subr.mxu0 0.0
    %3463 = vmatpush1.msra.mxu0 0.0
    %3464 = vmatprep.subr.mxu0 0.0
    %3465 = vmatpush1.msra.mxu0 0.0
    %3466 = vmatprep.subr.mxu0 0.0
    %3467 = vmatpush1.msra.mxu0 0.0
    %3468 = vmatprep.subr.mxu0 0.0
    %3469 = vmatpush1.msra.mxu0 0.0
    %3470 = vmatprep.subr.mxu0 0.0
    %3471 = vmatpush1.msra.mxu0 0.0
    %3472 = vmatprep.subr.mxu0 0.0
    %3473 = vmatpush1.msra.mxu0 0.0
    %3474 = vmatprep.subr.mxu0 0.0
    %3475 = vmatpush1.msra.mxu0 0.0
    %3476 = vmatprep.subr.mxu0 0.0
    %3477 = vmatpush1.msra.mxu0 0.0
    %3478 = vmatprep.subr.mxu0 0.0
    %3479 = vmatpush1.msra.mxu0 0.0
    %3480 = vmatprep.subr.mxu0 0.0
    %3481 = vmatpush1.msra.mxu0 0.0
    %3482 = vmatprep.subr.mxu0 0.0
    %3483 = vmatpush1.msra.mxu0 0.0
    %3484 = vmatprep.subr.mxu0 0.0
    %3485 = vmatpush1.msra.mxu0 0.0
    %3486 = vmatprep.subr.mxu0 0.0
    %3487 = vmatpush1.msra.mxu0 0.0
    %3488 = vmatprep.subr.mxu0 0.0
    %3489 = vmatpush1.msra.mxu0 0.0
    %3490 = vmatprep.subr.mxu0 0.0
    %3491 = vmatpush1.msra.mxu0 0.0
    %3492 = vmatprep.subr.mxu0 0.0
    %3493 = vmatpush1.msra.mxu0 0.0
    %3494 = vmatprep.mubr.f32.mxu0 0.0
    %3495 = vmatmul.mubr.f32.gmra.mrb[0].mxu0 %v3425
    %v3496 = vpop.f32.mrb[0].mxu0
    %v3497 = vadd.f32 0.0, %v3496
    %v3498 = vpop.f32.mrb[0].mxu0
    %3499 = vmatprep.mubr.f32.mxu0 0.0
    %3500 = vmatmul.mubr.f32.gmra.mrb[0].mxu0 %v3428
    %v3501 = vpop.f32.mrb[0].mxu0
    %v3502 = vadd.f32 0.0, %v3501
    %v3503 = vpop.f32.mrb[0].mxu0
    %3504 = vdwg.mxu0
    %3505 = vmatprep.subr.mxu0 0.0
    %3506 = vmatpush1.msra.mxu0 %v3497
    %3507 = vmatprep.subr.mxu0 0.0
    %3508 = vmatpush1.msra.mxu0 %v3502
    %3509 = vmatprep.subr.mxu0 0.0
    %3510 = vmatpush1.msra.mxu0 0.0
    %3511 = vmatprep.subr.mxu0 0.0
    %3512 = vmatpush1.msra.mxu0 0.0
    %3513 = vmatprep.subr.mxu0 0.0
    %3514 = vmatpush1.msra.mxu0 0.0
    %3515 = vmatprep.subr.mxu0 0.0
    %3516 = vmatpush1.msra.mxu0 0.0
    %3517 = vmatprep.subr.mxu0 0.0
    %3518 = vmatpush1.msra.mxu0 0.0
    %3519 = vmatprep.subr.mxu0 0.0
    %3520 = vmatpush1.msra.mxu0 0.0
    %3521 = vmatprep.subr.mxu0 0.0
    %3522 = vmatpush1.msra.mxu0 0.0
    %3523 = vmatprep.subr.mxu0 0.0
    %3524 = vmatpush1.msra.mxu0 0.0
    %3525 = vmatprep.subr.mxu0 0.0
    %3526 = vmatpush1.msra.mxu0 0.0
    %3527 = vmatprep.subr.mxu0 0.0
    %3528 = vmatpush1.msra.mxu0 0.0
    %3529 = vmatprep.subr.mxu0 0.0
    %3530 = vmatpush1.msra.mxu0 0.0
    %3531 = vmatprep.subr.mxu0 0.0
    %3532 = vmatpush1.msra.mxu0 0.0
    %3533 = vmatprep.subr.mxu0 0.0
    %3534 = vmatpush1.msra.mxu0 0.0
    %3535 = vmatprep.subr.mxu0 0.0
    %3536 = vmatpush1.msra.mxu0 0.0
    %3537 = vmatprep.subr.mxu0 0.0
    %3538 = vmatpush1.msra.mxu0 0.0
    %3539 = vmatprep.subr.mxu0 0.0
    %3540 = vmatpush1.msra.mxu0 0.0
    %3541 = vmatprep.subr.mxu0 0.0
    %3542 = vmatpush1.msra.mxu0 0.0
    %3543 = vmatprep.subr.mxu0 0.0
    %3544 = vmatpush1.msra.mxu0 0.0
    %3545 = vmatprep.subr.mxu0 0.0
    %3546 = vmatpush1.msra.mxu0 0.0
    %3547 = vmatprep.subr.mxu0 0.0
    %3548 = vmatpush1.msra.mxu0 0.0
    %3549 = vmatprep.subr.mxu0 0.0
    %3550 = vmatpush1.msra.mxu0 0.0
    %3551 = vmatprep.subr.mxu0 0.0
    %3552 = vmatpush1.msra.mxu0 0.0
    %3553 = vmatprep.subr.mxu0 0.0
    %3554 = vmatpush1.msra.mxu0 0.0
    %3555 = vmatprep.subr.mxu0 0.0
    %3556 = vmatpush1.msra.mxu0 0.0
    %3557 = vmatprep.subr.mxu0 0.0
    %3558 = vmatpush1.msra.mxu0 0.0
    %3559 = vmatprep.subr.mxu0 0.0
    %3560 = vmatpush1.msra.mxu0 0.0
    %3561 = vmatprep.subr.mxu0 0.0
    %3562 = vmatpush1.msra.mxu0 0.0
    %3563 = vmatprep.subr.mxu0 0.0
    %3564 = vmatpush1.msra.mxu0 0.0
    %3565 = vmatprep.subr.mxu0 0.0
    %3566 = vmatpush1.msra.mxu0 0.0
    %3567 = vmatprep.subr.mxu0 0.0
    %3568 = vmatpush1.msra.mxu0 0.0
    %3569 = vmatprep.mubr.f32.mxu0 0.0
    %3570 = vmatmul.mubr.f32.gmra.mrb[0].mxu0 %v134
    %v3571 = vpop.f32.mrb[0].mxu0
    %v3572 = vadd.f32 %v118, %v3571
    %v3573 = vpop.f32.mrb[0].mxu0
    %3574 = vmatprep.mubr.f32.mxu0 0.0
    %3575 = vmatmul.mubr.f32.gmra.mrb[0].mxu0 %v137
    %v3576 = vpop.f32.mrb[0].mxu0
    %v3577 = vadd.f32 %v118, %v3576
    %v3578 = vpop.f32.mrb[0].mxu0
    %3579 = vdwg.mxu0
    %3580 = vrot.lane.b32.xlu0 %v1810, 1
    %v3581 = vpop.permute.xlu0 %3580
    %3582 = vrot.lane.b32.xlu0 %v1815, 1
    %v3583 = vpop.permute.xlu0 %3582
    %3586 = vrot.lane.b32.xlu0 %v2691, 2
    %v3587 = vpop.permute.xlu0 %3586
    %3588 = vrot.lane.b32.xlu0 %v2696, 2
    %v3589 = vpop.permute.xlu0 %3588
    %3594 = vrot.lane.b32.xlu0 %v3572, 3
    %v3595 = vpop.permute.xlu0 %3594
    %3596 = vrot.lane.b32.xlu0 %v3577, 3
    %v3597 = vpop.permute.xlu0 %3596
    %vm3600 = vcmask 7168
    %v3601 = vsel %vm3600, %v928, %v3581
    %v3602 = vsel %vm3600, %v933, %v3583
    %vm3603 = vcmask 15360
    %v3604 = vsel %vm3603, %v3601, %v3587
    %v3605 = vsel %vm3603, %v3602, %v3589
    %vm3606 = vcmask 23552
    %v3607 = vsel %vm3606, %v3604, %v3595
    %v3608 = vsel %vm3606, %v3605, %v3597
    %vm3609 = vcmask 31744
    %3610 = vst.msk [vmem:[%s12] sm:$0xff] %vm3609, %v3607
    %3611 = vst.msk [vmem:[%s12 + $0x8] sm:$0xff] %vm3609, %v3608
    // Predicated region
    $region58: #{tpu_custom_call.1} parent=1 // pred_check
      _
    $region59: #{tpu_custom_call.1} parent=1 // pred_check_branch
      %3613 = sbr.rel (0) target = $region61
    $region60: #{tpu_custom_call.1} parent=1 // pred_region
      _
    $region61: #{tpu_custom_call.1} parent=1 // pred_fallthru
      _
    // Predicated region
    $region62: #{tpu_custom_call.1} parent=1 // pred_check
      _
    $region63: #{tpu_custom_call.1} parent=1 // pred_check_branch
      %3615 = sbr.rel (0) target = $region65
    $region64: #{tpu_custom_call.1} parent=1 // pred_region
      _
    $region65: #{tpu_custom_call.1} parent=1 // pred_fallthru
      _
    %3616 = vsyncpa [#allocation4], 1
    %3617 = vsyncpa [#allocation6], 1

</llo_original>
